<compile_context>
chip_gen: v5e
topology: v5e:2x2
jax: 0.10.0
libtpu: 0.0.40
codegen_flags: <defaults>
</compile_context>

<pallas_src>
import functools

import numpy as np
import jax
import jax.numpy as jnp
from jax.experimental import pallas as pl
from jax.experimental.pallas import tpu as pltpu

EXPANSION = 4
BN_EPS = 1e-5


def _sigmoid(x):
    return 1.0 / (1.0 + jnp.exp(-x))


# ----------------------------- Pallas kernels ------------------------------

def _gemm_bn_act_kernel(x_ref, w_ref, scale_ref, bias_ref, o_ref, *, act):
    """(tm, K) @ (K, N) -> folded-BN affine (f32) -> optional ReLU."""
    acc = jnp.dot(x_ref[...], w_ref[...], preferred_element_type=jnp.float32)
    y = acc * scale_ref[...] + bias_ref[...]
    if act == "relu":
        y = jnp.maximum(y, 0.0)
    o_ref[...] = y.astype(o_ref.dtype)


def gemm_bn_act(x, w, scale, bias, act="none", out_dtype=None):
    """Fused 1x1-conv GEMM + BatchNorm (folded) + activation, tiled over rows.

    The (K, N) weight and (1, N) scale/bias blocks have constant index maps so
    they stay VMEM-resident across the row grid; activation rows stream through
    double-buffered (tm, K) tiles.  Grid uses cdiv (no M % tm assert)."""
    M, K = x.shape
    N = w.shape[1]
    out_dtype = out_dtype or x.dtype
    # Large row tiles amortize per-step overhead on the HBM-bound 1x1 GEMMs;
    # cap when the resident weight is large to stay inside the scoped VMEM.
    tm = 256 if K >= 2048 else 512
    tm = min(tm, M)
    # TODO(synk): on v7x (64 MiB VMEM), mark w/scale/bias with
    # pipeline_mode=pl.Buffered(1) to drop the redundant second weight buffer.
    return pl.pallas_call(
        functools.partial(_gemm_bn_act_kernel, act=act),
        out_shape=jax.ShapeDtypeStruct((M, N), out_dtype),
        grid=(pl.cdiv(M, tm),),
        in_specs=[
            pl.BlockSpec((tm, K), lambda i: (i, 0)),
            pl.BlockSpec((K, N), lambda i: (0, 0)),
            pl.BlockSpec((1, N), lambda i: (0, 0)),
            pl.BlockSpec((1, N), lambda i: (0, 0)),
        ],
        out_specs=pl.BlockSpec((tm, N), lambda i: (i, 0)),
        compiler_params=pltpu.CompilerParams(dimension_semantics=("parallel",)),
    )(x, w, scale, bias)


def _conv3x3_bn_relu_kernel(ph_ref, w_ref, scale_ref, bias_ref, o_ref, acc_ref,
                            *, stride, ho, wo, wq):
    """3x3 conv as 9 shifted GEMM accumulations (no materialized im2col).

    ph_ref holds the stride-phase-decomposed, row-flattened, padded input with
    block shape (1, stride*stride, Hq*Wq, C).  Each tap (dy, dx) is a
    contiguous row window of one phase; all taps accumulate into a
    "padded-row-space" f32 scratch of (Ho-1)*Wq + Wo rows (the junk columns are
    sliced away by the wrapper)."""
    r = (ho - 1) * wq + wo
    acc_ref[...] = jnp.zeros(acc_ref.shape, acc_ref.dtype)
    for dy in range(3):
        for dx in range(3):
            phase = (dy % stride) * stride + (dx % stride)
            base = (dy // stride) * wq + (dx // stride)
            lhs = ph_ref[0, phase, pl.ds(base, r), :]
            acc_ref[...] += jnp.dot(lhs, w_ref[3 * dy + dx],
                                    preferred_element_type=jnp.float32)
    y = acc_ref[...] * scale_ref[...] + bias_ref[...]
    o_ref[0] = jnp.maximum(y, 0.0).astype(o_ref.dtype)


def conv3x3_bn_relu(x_nhwc, w_oihw, scale, bias, stride, out_dtype):
    """3x3 / stride-s conv + folded BN + ReLU, gridded over batch images."""
    n, h, w, c = x_nhwc.shape
    cout = w_oihw.shape[0]
    ho = (h - 1) // stride + 1
    wo = (w - 1) // stride + 1
    xp = jnp.pad(x_nhwc, ((0, 0), (1, 1), (1, 1), (0, 0)))
    hp, wp = h + 2, w + 2
    hq, wq = -(-hp // stride), -(-wp // stride)
    # stride-phase decomposition: for stride==1 this is just xp (no extra copy);
    # for stride==2 it is a one-shot ~1x re-layout instead of a 9x im2col.
    phases = []
    for ry in range(stride):
        for rx in range(stride):
            ph = xp[:, ry::stride, rx::stride, :]
            ph = jnp.pad(ph, ((0, 0), (0, hq - ph.shape[1]),
                              (0, wq - ph.shape[2]), (0, 0)))
            phases.append(ph.reshape(n, 1, hq * wq, c))
    ph_stack = phases[0] if stride == 1 else jnp.concatenate(phases, axis=1)
    wmat = jnp.transpose(w_oihw, (2, 3, 1, 0)).reshape(9, c, cout)
    wmat = wmat.astype(x_nhwc.dtype)
    r = (ho - 1) * wq + wo
    out = pl.pallas_call(
        functools.partial(_conv3x3_bn_relu_kernel,
                          stride=stride, ho=ho, wo=wo, wq=wq),
        out_shape=jax.ShapeDtypeStruct((n, r, cout), out_dtype),
        grid=(n,),
        in_specs=[
            pl.BlockSpec((1, stride * stride, hq * wq, c),
                         lambda i: (i, 0, 0, 0)),
            pl.BlockSpec((9, c, cout), lambda i: (0, 0, 0)),
            pl.BlockSpec((1, cout), lambda i: (0, 0)),
            pl.BlockSpec((1, cout), lambda i: (0, 0)),
        ],
        out_specs=pl.BlockSpec((1, r, cout), lambda i: (i, 0, 0)),
        scratch_shapes=[pltpu.VMEM((r, cout), jnp.float32)],
        compiler_params=pltpu.CompilerParams(dimension_semantics=("parallel",)),
    )(ph_stack, wmat, scale, bias)
    # Compact the padded-row space back to (n, ho, wo, cout) -- tiny JAX ops.
    out = jnp.pad(out, ((0, 0), (0, ho * wq - r), (0, 0)))
    return out.reshape(n, ho, wq, cout)[:, :, :wo, :]


def _ca_weights_kernel(x_ref, w1_ref, w2_ref, att_ref, sum_ref, max_ref,
                       *, l_total):
    """Chunked global avg/max pool over HW -> shared MLP -> sigmoid gate."""
    j = pl.program_id(1)

    @pl.when(j == 0)
    def _():
        sum_ref[...] = jnp.zeros(sum_ref.shape, sum_ref.dtype)
        max_ref[...] = jnp.full(max_ref.shape, -jnp.inf, max_ref.dtype)

    x = x_ref[0].astype(jnp.float32)                       # (tl, C)
    tl = x.shape[0]
    row = j * tl + jax.lax.broadcasted_iota(jnp.int32, (tl, 1), 0)
    valid = row < l_total                                  # mask ragged tail
    sum_ref[...] += jnp.sum(jnp.where(valid, x, 0.0), axis=0, keepdims=True)
    max_ref[...] = jnp.maximum(
        max_ref[...],
        jnp.max(jnp.where(valid, x, -jnp.inf), axis=0, keepdims=True))

    @pl.when(j == pl.num_programs(1) - 1)
    def _():
        avg_p = sum_ref[...] * (1.0 / l_total)             # (1, C) f32
        max_p = max_ref[...]

        def mlp(v):
            hdn = jnp.dot(v, w1_ref[...], preferred_element_type=jnp.float32)
            return jnp.dot(jnp.maximum(hdn, 0.0), w2_ref[...],
                           preferred_element_type=jnp.float32)

        att = 1.0 / (1.0 + jnp.exp(-(mlp(avg_p) + mlp(max_p))))
        att_ref[0] = att.astype(att_ref.dtype)


def channel_attention_weights(h3_nlc, w1, w2):
    """CBAM channel attention gate: (n, l, c) -> (n, 1, c) f32 gate."""
    n, l, c = h3_nlc.shape
    tl = min(512, l)
    return pl.pallas_call(
        functools.partial(_ca_weights_kernel, l_total=l),
        out_shape=jax.ShapeDtypeStruct((n, 1, c), jnp.float32),
        grid=(n, pl.cdiv(l, tl)),
        in_specs=[
            pl.BlockSpec((1, tl, c), lambda i, j: (i, j, 0)),
            pl.BlockSpec(w1.shape, lambda i, j: (0, 0)),
            pl.BlockSpec(w2.shape, lambda i, j: (0, 0)),
        ],
        out_specs=pl.BlockSpec((1, 1, c), lambda i, j: (i, 0, 0)),
        scratch_shapes=[pltpu.VMEM((1, c), jnp.float32),
                        pltpu.VMEM((1, c), jnp.float32)],
        compiler_params=pltpu.CompilerParams(
            dimension_semantics=("parallel", "arbitrary")),
    )(h3_nlc, w1, w2)


def _ca_stats_maps_kernel(x_ref, att_ref, maps_ref):
    """Apply channel gate on the fly, emit per-pixel channel mean/max as one
    lane-merged (tl, 2) map (single output, no separate width-1 stores)."""
    g = x_ref[0].astype(jnp.float32) * att_ref[0]          # (tl, C)
    mean_c = jnp.mean(g, axis=-1, keepdims=True)
    max_c = jnp.max(g, axis=-1, keepdims=True)
    maps_ref[0] = jnp.concatenate([mean_c, max_c], axis=-1).astype(maps_ref.dtype)


def channel_stats_maps(h3_nlc, att):
    n, l, c = h3_nlc.shape
    tl = min(512, l)
    return pl.pallas_call(
        _ca_stats_maps_kernel,
        out_shape=jax.ShapeDtypeStruct((n, l, 2), jnp.float32),
        grid=(n, pl.cdiv(l, tl)),
        in_specs=[
            pl.BlockSpec((1, tl, c), lambda i, j: (i, j, 0)),
            pl.BlockSpec((1, 1, c), lambda i, j: (i, 0, 0)),
        ],
        out_specs=pl.BlockSpec((1, tl, 2), lambda i, j: (i, j, 0)),
        compiler_params=pltpu.CompilerParams(
            dimension_semantics=("parallel", "parallel")),
    )(h3_nlc, att)


def _spatial_gate_kernel(p_ref, w_ref, x_ref, att_ref, sc_ref, o_ref):
    """7x7 spatial-attention conv (im2col GEMM) + sigmoid gate applied to the
    channel-gated features + residual add + final ReLU, fused per row tile."""
    s = jnp.dot(p_ref[0], w_ref[...], preferred_element_type=jnp.float32)  # (tl,1)
    gate = 1.0 / (1.0 + jnp.exp(-s))
    g = x_ref[0].astype(jnp.float32) * att_ref[0]          # recompute channel gate
    y = gate * g + sc_ref[0].astype(jnp.float32)
    o_ref[0] = jnp.maximum(y, 0.0).astype(o_ref.dtype)


def spatial_gate(patches, w_sa, h3_nlc, att, shortcut, out_dtype):
    n, l, c = h3_nlc.shape
    kdim = patches.shape[-1]
    tl = min(512, l)
    return pl.pallas_call(
        _spatial_gate_kernel,
        out_shape=jax.ShapeDtypeStruct((n, l, c), out_dtype),
        grid=(n, pl.cdiv(l, tl)),
        in_specs=[
            pl.BlockSpec((1, tl, kdim), lambda i, j: (i, j, 0)),
            pl.BlockSpec((kdim, 1), lambda i, j: (0, 0)),
            pl.BlockSpec((1, tl, c), lambda i, j: (i, j, 0)),
            pl.BlockSpec((1, 1, c), lambda i, j: (i, 0, 0)),
            pl.BlockSpec((1, tl, c), lambda i, j: (i, j, 0)),
        ],
        out_specs=pl.BlockSpec((1, tl, c), lambda i, j: (i, j, 0)),
        compiler_params=pltpu.CompilerParams(
            dimension_semantics=("parallel", "parallel")),
    )(patches, w_sa, h3_nlc, att, shortcut)


# ------------------------------- JAX glue ----------------------------------

def _fold_bn(gamma, beta, mean, var):
    # TODO(synk): BatchNorm implemented in inference mode (folded running
    # stats); train-mode batch statistics are not computed in-kernel.
    scale = gamma / jnp.sqrt(var + BN_EPS)
    bias = beta - mean * scale
    return scale.reshape(1, -1), bias.reshape(1, -1)


def _extract_patches(x, k, stride):
    """x: (N, Hp, Wp, C) already padded -> (N, Ho, Wo, k*k*C), tap order (dy,dx,c).
    Only used for the tiny 2-channel spatial-attention map (7x7 conv)."""
    n, hp, wp, c = x.shape
    ho = (hp - k) // stride + 1
    wo = (wp - k) // stride + 1
    cols = []
    for dy in range(k):
        for dx in range(k):
            cols.append(x[:, dy:dy + stride * (ho - 1) + 1:stride,
                          dx:dx + stride * (wo - 1) + 1:stride, :])
    return jnp.concatenate(cols, axis=-1)


def _oihw_to_mat(w):
    """PyTorch (Cout, Cin, kh, kw) -> (kh*kw*Cin, Cout) matching tap order."""
    co, ci, kh, kw = w.shape
    return jnp.transpose(w, (2, 3, 1, 0)).reshape(kh * kw * ci, co)


def init_params(key, in_planes, planes, stride):
    out_planes = EXPANSION * planes
    hidden = max(out_planes // 16, 1)
    keys = jax.random.split(key, 12)

    def conv_w(k, co, ci, kh, kw):
        fan_in = ci * kh * kw
        return jax.random.normal(k, (co, ci, kh, kw), jnp.float32) / jnp.sqrt(fan_in)

    def bn(kg, c):
        k1, k2, k3, k4 = jax.random.split(kg, 4)
        gamma = 1.0 + 0.1 * jax.random.normal(k1, (c,), jnp.float32)
        beta = 0.1 * jax.random.normal(k2, (c,), jnp.float32)
        mean = 0.1 * jax.random.normal(k3, (c,), jnp.float32)
        var = 1.0 + 0.1 * jax.random.uniform(k4, (c,), jnp.float32)
        return gamma, beta, mean, var

    params = dict(
        stride=stride, in_planes=in_planes, planes=planes, out_planes=out_planes,
        w_conv1=conv_w(keys[0], planes, in_planes, 1, 1),
        bn1=bn(keys[1], planes),
        w_conv2=conv_w(keys[2], planes, planes, 3, 3),
        bn2=bn(keys[3], planes),
        w_conv3=conv_w(keys[4], out_planes, planes, 1, 1),
        bn3=bn(keys[5], out_planes),
        # TODO(synk): the original module constructs ChannelAttention(planes) but
        # applies it to expansion*planes channels (shape mismatch in PyTorch);
        # we use expansion*planes channels as in the canonical CBAM-ResNet.
        w_ca1=conv_w(keys[6], hidden, out_planes, 1, 1),
        w_ca2=conv_w(keys[7], out_planes, hidden, 1, 1),
        w_sa=conv_w(keys[8], 1, 2, 7, 7),
    )
    if stride != 1 or in_planes != out_planes:
        params["w_sc"] = conv_w(keys[9], out_planes, in_planes, 1, 1)
        params["bn_sc"] = bn(keys[10], out_planes)
    return params


def bottleneck_forward(params, x_nchw, compute_dtype=jnp.bfloat16):
    """CBAM Bottleneck forward.  compute_dtype controls the storage / MXU
    operand dtype for the conv GEMMs (accumulation and all attention math in
    f32).  Output is always f32."""
    stride = params["stride"]
    planes = params["planes"]
    out_planes = params["out_planes"]
    cd = compute_dtype

    x = jnp.transpose(x_nchw, (0, 2, 3, 1))                # NHWC
    n, h, w, cin = x.shape
    x_c = x.astype(cd)

    # conv1 (1x1) + bn1 + relu
    s1, b1 = _fold_bn(*params["bn1"])
    h1 = gemm_bn_act(x_c.reshape(n * h * w, cin),
                     _oihw_to_mat(params["w_conv1"]).astype(cd),
                     s1, b1, act="relu", out_dtype=cd).reshape(n, h, w, planes)

    # conv2 (3x3, stride, pad=1) + bn2 + relu  (shifted-GEMM accumulation)
    s2, b2 = _fold_bn(*params["bn2"])
    h2 = conv3x3_bn_relu(h1, params["w_conv2"], s2, b2, stride, out_dtype=cd)
    _, ho, wo, _ = h2.shape
    l = ho * wo

    # conv3 (1x1) + bn3
    s3, b3 = _fold_bn(*params["bn3"])
    h3 = gemm_bn_act(h2.reshape(n * l, planes),
                     _oihw_to_mat(params["w_conv3"]).astype(cd),
                     s3, b3, act="none", out_dtype=cd).reshape(n, l, out_planes)

    # shortcut branch
    if "w_sc" in params:
        ssc, bsc = _fold_bn(*params["bn_sc"])
        # TODO(synk): the stride subsampling is a JAX strided slice; folding it
        # into the GEMM input BlockSpec index_map would save one HBM round-trip.
        xs = x_c[:, ::stride, ::stride, :]
        sc = gemm_bn_act(xs.reshape(n * l, cin),
                         _oihw_to_mat(params["w_sc"]).astype(cd),
                         ssc, bsc, act="none",
                         out_dtype=cd).reshape(n, l, out_planes)
    else:
        sc = x_c.reshape(n, l, out_planes)

    # channel attention: pooled-stats + MLP + sigmoid (pass A), then per-pixel
    # channel mean/max maps of the gated features (pass B, lane-merged output).
    w_ca1 = _oihw_to_mat(params["w_ca1"])                  # (C, hidden) f32
    w_ca2 = _oihw_to_mat(params["w_ca2"])                  # (hidden, C) f32
    att = channel_attention_weights(h3, w_ca1, w_ca2)      # (n, 1, C) f32
    maps = channel_stats_maps(h3, att)                     # (n, l, 2) f32

    # spatial attention (7x7 conv via im2col on the tiny 2-channel map)
    maps_p = jnp.pad(maps.reshape(n, ho, wo, 2), ((0, 0), (3, 3), (3, 3), (0, 0)))
    patches = _extract_patches(maps_p, 7, 1).reshape(n, l, 98)
    w_sa = _oihw_to_mat(params["w_sa"])                    # (98, 1) f32

    out = spatial_gate(patches, w_sa, h3, att, sc, out_dtype=jnp.float32)
    out = out.reshape(n, ho, wo, out_planes)
    return jnp.transpose(out, (0, 3, 1, 2))                # NCHW


# --------------------------- pure-JAX reference -----------------------------

def _conv_nchw(x, w, stride=1, padding=0):
    return jax.lax.conv_general_dilated(
        x, w, window_strides=(stride, stride),
        padding=((padding, padding), (padding, padding)),
        dimension_numbers=("NCHW", "OIHW", "NCHW"),
        precision=jax.lax.Precision.HIGHEST)


def _bn_nchw(x, p):
    gamma, beta, mean, var = p
    inv = gamma / jnp.sqrt(var + BN_EPS)
    return (x - mean[None, :, None, None]) * inv[None, :, None, None] \
        + beta[None, :, None, None]


def bottleneck_reference(params, x):
    stride = params["stride"]
    out = jax.nn.relu(_bn_nchw(_conv_nchw(x, params["w_conv1"]), params["bn1"]))
    out = jax.nn.relu(_bn_nchw(_conv_nchw(out, params["w_conv2"], stride, 1),
                               params["bn2"]))
    out = _bn_nchw(_conv_nchw(out, params["w_conv3"]), params["bn3"])

    avg_p = jnp.mean(out, axis=(2, 3), keepdims=True)
    max_p = jnp.max(out, axis=(2, 3), keepdims=True)

    def ca_mlp(v):
        return _conv_nchw(jax.nn.relu(_conv_nchw(v, params["w_ca1"])),
                          params["w_ca2"])

    out = _sigmoid(ca_mlp(avg_p) + ca_mlp(max_p)) * out

    avg_c = jnp.mean(out, axis=1, keepdims=True)
    max_c = jnp.max(out, axis=1, keepdims=True)
    sa = _sigmoid(_conv_nchw(jnp.concatenate([avg_c, max_c], axis=1),
                             params["w_sa"], 1, 3))
    out = sa * out

    if "w_sc" in params:
        shortcut = _bn_nchw(_conv_nchw(x, params["w_sc"], stride, 0),
                            params["bn_sc"])
    else:
        shortcut = x
    return jax.nn.relu(out + shortcut)


# ---------------------------------- main ------------------------------------

if __name__ == "__main__":
    key = jax.random.PRNGKey(0)
    kx, kp, kx2, kp2 = jax.random.split(key, 4)

    # Config A: projection shortcut, stride 2 (out channels = 4 * planes = 16).
    in_planes, planes, stride = 8, 4, 2
    x = jax.random.normal(kx, (2, in_planes, 16, 16), jnp.float32)
    params = init_params(kp, in_planes, planes, stride)
    ref = bottleneck_reference(params, x)

    out_f32 = jax.block_until_ready(
        jax.jit(lambda xx: bottleneck_forward(params, xx,
                                              compute_dtype=jnp.float32))(x))
    np.testing.assert_allclose(np.asarray(out_f32), np.asarray(ref),
                               atol=5e-3, rtol=5e-3)

    # bf16 storage / MXU operands (f32 accumulation) vs the f32 reference.
    out_bf16 = jax.block_until_ready(
        jax.jit(lambda xx: bottleneck_forward(params, xx,
                                              compute_dtype=jnp.bfloat16))(x))
    np.testing.assert_allclose(np.asarray(out_bf16), np.asarray(ref),
                               atol=8e-2, rtol=8e-2)

    # Config B: identity shortcut, stride 1 (exercises the single-phase conv2
    # path and the identity residual).
    in_planes2, planes2, stride2 = 16, 4, 1
    x2 = jax.random.normal(kx2, (2, in_planes2, 8, 8), jnp.float32)
    params2 = init_params(kp2, in_planes2, planes2, stride2)
    ref2 = bottleneck_reference(params2, x2)
    out2 = jax.block_until_ready(
        jax.jit(lambda xx: bottleneck_forward(params2, xx,
                                              compute_dtype=jnp.float32))(x2))
    np.testing.assert_allclose(np.asarray(out2), np.asarray(ref2),
                               atol=5e-3, rtol=5e-3)

    print("KERNEL_OK")
</pallas_src>

<mosaic_0001>
module attributes {stable_mosaic.version = 11 : i64} {
  func.func @_gemm_bn_act_kernel(%arg0: i32, %arg1: memref<512x8xf32, #tpu.memory_space<vmem>>, %arg2: memref<8x4xf32, #tpu.memory_space<vmem>>, %arg3: memref<1x4xf32, #tpu.memory_space<vmem>>, %arg4: memref<1x4xf32, #tpu.memory_space<vmem>>, %arg5: memref<512x4xf32, #tpu.memory_space<vmem>>) attributes {dimension_semantics = [#tpu.dimension_semantics<parallel>], iteration_bounds = array<i64: 1>, scalar_prefetch = 0 : i64, scratch_operands = 0 : i64, tpu.core_type = #tpu.core_type<tc>, window_params = [{transform_indices = @transform_0, window_bounds = array<i64: 512, 8>}, {pipeline_mode = #tpu.pipeline_mode<synchronous>, transform_indices = @transform_1, window_bounds = array<i64: 8, 4>}, {pipeline_mode = #tpu.pipeline_mode<synchronous>, transform_indices = @transform_2, window_bounds = array<i64: 1, 4>}, {pipeline_mode = #tpu.pipeline_mode<synchronous>, transform_indices = @transform_3, window_bounds = array<i64: 1, 4>}, {transform_indices = @transform_4, window_bounds = array<i64: 512, 4>}]} {
    %c0 = arith.constant 0 : index
    %c0_0 = arith.constant 0 : index
    %0 = vector.load %arg1[%c0, %c0_0] : memref<512x8xf32, #tpu.memory_space<vmem>>, vector<512x8xf32>
    %c0_1 = arith.constant 0 : index
    %c0_2 = arith.constant 0 : index
    %1 = vector.load %arg2[%c0_1, %c0_2] : memref<8x4xf32, #tpu.memory_space<vmem>>, vector<8x4xf32>
    %cst = arith.constant dense<0.000000e+00> : vector<512x4xf32>
    %2 = tpu.matmul %0, %1, %cst {dimension_numbers = #tpu.dot_dimension_numbers<[1], [0], [0], [1], [0, 0, 1, 1], [], []>} : vector<512x8xf32>, vector<8x4xf32>, vector<512x4xf32> -> vector<512x4xf32>
    %c0_3 = arith.constant 0 : index
    %c0_4 = arith.constant 0 : index
    %3 = vector.load %arg3[%c0_3, %c0_4] : memref<1x4xf32, #tpu.memory_space<vmem>>, vector<1x4xf32>
    %4 = vector.broadcast %3 : vector<1x4xf32> to vector<512x4xf32>
    %5 = arith.mulf %2, %4 : vector<512x4xf32>
    %c0_5 = arith.constant 0 : index
    %c0_6 = arith.constant 0 : index
    %6 = vector.load %arg4[%c0_5, %c0_6] : memref<1x4xf32, #tpu.memory_space<vmem>>, vector<1x4xf32>
    %7 = vector.broadcast %6 : vector<1x4xf32> to vector<512x4xf32>
    %8 = arith.addf %5, %7 : vector<512x4xf32>
    %cst_7 = arith.constant 0.000000e+00 : f32
    %9 = vector.broadcast %cst_7 : f32 to vector<512x4xf32>
    %10 = arith.maximumf %8, %9 : vector<512x4xf32>
    %c0_8 = arith.constant 0 : index
    %c0_9 = arith.constant 0 : index
    %11 = vector.load %arg5[%c0_8, %c0_9] : memref<512x4xf32, #tpu.memory_space<vmem>>, vector<512x4xf32>
    tpu.vector_store %arg5[%c0_8, %c0_9], %10 {strides = array<i32>} : memref<512x4xf32, #tpu.memory_space<vmem>>, vector<512x4xf32>,
    return
  }
  func.func @transform_0(%arg0: i32) -> (i32, i32) {
    %c0_i32 = arith.constant 0 : i32
    %c0_i32_0 = arith.constant 0 : i32
    return %arg0, %c0_i32 : i32, i32
  }
  func.func @transform_1(%arg0: i32) -> (i32, i32) {
    %c0_i32 = arith.constant 0 : i32
    %c0_i32_0 = arith.constant 0 : i32
    %c0_i32_1 = arith.constant 0 : i32
    return %c0_i32, %c0_i32_0 : i32, i32
  }
  func.func @transform_2(%arg0: i32) -> (i32, i32) {
    %c0_i32 = arith.constant 0 : i32
    %c0_i32_0 = arith.constant 0 : i32
    %c0_i32_1 = arith.constant 0 : i32
    return %c0_i32, %c0_i32_0 : i32, i32
  }
  func.func @transform_3(%arg0: i32) -> (i32, i32) {
    %c0_i32 = arith.constant 0 : i32
    %c0_i32_0 = arith.constant 0 : i32
    %c0_i32_1 = arith.constant 0 : i32
    return %c0_i32, %c0_i32_0 : i32, i32
  }
  func.func @transform_4(%arg0: i32) -> (i32, i32) {
    %c0_i32 = arith.constant 0 : i32
    %c0_i32_0 = arith.constant 0 : i32
    return %arg0, %c0_i32 : i32, i32
  }
}

module attributes {stable_mosaic.version = 11 : i64} {
  func.func @_conv3x3_bn_relu_kernel(%arg0: i32, %arg1: memref<1x4x81x4xf32, #tpu.memory_space<vmem>>, %arg2: memref<9x4x4xf32, #tpu.memory_space<vmem>>, %arg3: memref<1x4xf32, #tpu.memory_space<vmem>>, %arg4: memref<1x4xf32, #tpu.memory_space<vmem>>, %arg5: memref<1x71x4xf32, #tpu.memory_space<vmem>>, %arg6: memref<71x4xf32, #tpu.memory_space<vmem>>) attributes {dimension_semantics = [#tpu.dimension_semantics<parallel>], iteration_bounds = array<i64: 2>, scalar_prefetch = 0 : i64, scratch_operands = 1 : i64, tpu.core_type = #tpu.core_type<tc>, window_params = [{transform_indices = @transform_0, window_bounds = array<i64: 1, 4, 81, 4>}, {pipeline_mode = #tpu.pipeline_mode<synchronous>, transform_indices = @transform_1, window_bounds = array<i64: 9, 4, 4>}, {pipeline_mode = #tpu.pipeline_mode<synchronous>, transform_indices = @transform_2, window_bounds = array<i64: 1, 4>}, {pipeline_mode = #tpu.pipeline_mode<synchronous>, transform_indices = @transform_3, window_bounds = array<i64: 1, 4>}, {transform_indices = @transform_4, window_bounds = array<i64: 1, 71, 4>}]} {
    %cst = arith.constant 0.000000e+00 : f32
    %0 = vector.broadcast %cst : f32 to vector<71x4xf32>
    %c0 = arith.constant 0 : index
    %c0_0 = arith.constant 0 : index
    %1 = vector.load %arg6[%c0, %c0_0] : memref<71x4xf32, #tpu.memory_space<vmem>>, vector<71x4xf32>
    tpu.vector_store %arg6[%c0, %c0_0], %0 {strides = array<i32>} : memref<71x4xf32, #tpu.memory_space<vmem>>, vector<71x4xf32>,
    %c0_1 = arith.constant 0 : index
    %c0_2 = arith.constant 0 : index
    %c0_3 = arith.constant 0 : index
    %c0_4 = arith.constant 0 : index
    %2 = vector.load %arg1[%c0_1, %c0_2, %c0_3, %c0_4] : memref<1x4x81x4xf32, #tpu.memory_space<vmem>>, vector<1x1x71x4xf32>
    %3 = vector.shape_cast %2 : vector<1x1x71x4xf32> to vector<71x4xf32>
    %c0_5 = arith.constant 0 : index
    %c0_6 = arith.constant 0 : index
    %4 = vector.load %arg6[%c0_5, %c0_6] : memref<71x4xf32, #tpu.memory_space<vmem>>, vector<71x4xf32>
    %c0_7 = arith.constant 0 : index
    %c0_8 = arith.constant 0 : index
    %c0_9 = arith.constant 0 : index
    %5 = vector.load %arg2[%c0_7, %c0_8, %c0_9] : memref<9x4x4xf32, #tpu.memory_space<vmem>>, vector<1x4x4xf32>
    %6 = vector.shape_cast %5 : vector<1x4x4xf32> to vector<4x4xf32>
    %cst_10 = arith.constant dense<0.000000e+00> : vector<71x4xf32>
    %7 = tpu.matmul %3, %6, %cst_10 {dimension_numbers = #tpu.dot_dimension_numbers<[1], [0], [0], [1], [0, 0, 1, 1], [], []>} : vector<71x4xf32>, vector<4x4xf32>, vector<71x4xf32> -> vector<71x4xf32>
    %8 = arith.addf %4, %7 : vector<71x4xf32>
    %c0_11 = arith.constant 0 : index
    %c0_12 = arith.constant 0 : index
    %9 = vector.load %arg6[%c0_11, %c0_12] : memref<71x4xf32, #tpu.memory_space<vmem>>, vector<71x4xf32>
    tpu.vector_store %arg6[%c0_11, %c0_12], %8 {strides = array<i32>} : memref<71x4xf32, #tpu.memory_space<vmem>>, vector<71x4xf32>,
    %c0_13 = arith.constant 0 : index
    %c1 = arith.constant 1 : index
    %c0_14 = arith.constant 0 : index
    %c0_15 = arith.constant 0 : index
    %10 = vector.load %arg1[%c0_13, %c1, %c0_14, %c0_15] : memref<1x4x81x4xf32, #tpu.memory_space<vmem>>, vector<1x1x71x4xf32>
    %11 = vector.shape_cast %10 : vector<1x1x71x4xf32> to vector<71x4xf32>
    %c0_16 = arith.constant 0 : index
    %c0_17 = arith.constant 0 : index
    %12 = vector.load %arg6[%c0_16, %c0_17] : memref<71x4xf32, #tpu.memory_space<vmem>>, vector<71x4xf32>
    %c1_18 = arith.constant 1 : index
    %c0_19 = arith.constant 0 : index
    %c0_20 = arith.constant 0 : index
    %13 = vector.load %arg2[%c1_18, %c0_19, %c0_20] : memref<9x4x4xf32, #tpu.memory_space<vmem>>, vector<1x4x4xf32>
    %14 = vector.shape_cast %13 : vector<1x4x4xf32> to vector<4x4xf32>
    %cst_21 = arith.constant dense<0.000000e+00> : vector<71x4xf32>
    %15 = tpu.matmul %11, %14, %cst_21 {dimension_numbers = #tpu.dot_dimension_numbers<[1], [0], [0], [1], [0, 0, 1, 1], [], []>} : vector<71x4xf32>, vector<4x4xf32>, vector<71x4xf32> -> vector<71x4xf32>
    %16 = arith.addf %12, %15 : vector<71x4xf32>
    %c0_22 = arith.constant 0 : index
    %c0_23 = arith.constant 0 : index
    %17 = vector.load %arg6[%c0_22, %c0_23] : memref<71x4xf32, #tpu.memory_space<vmem>>, vector<71x4xf32>
    tpu.vector_store %arg6[%c0_22, %c0_23], %16 {strides = array<i32>} : memref<71x4xf32, #tpu.memory_space<vmem>>, vector<71x4xf32>,
    %c0_24 = arith.constant 0 : index
    %c0_25 = arith.constant 0 : index
    %c1_26 = arith.constant 1 : index
    %c0_27 = arith.constant 0 : index
    %18 = vector.load %arg1[%c0_24, %c0_25, %c1_26, %c0_27] : memref<1x4x81x4xf32, #tpu.memory_space<vmem>>, vector<1x1x71x4xf32>
    %19 = vector.shape_cast %18 : vector<1x1x71x4xf32> to vector<71x4xf32>
    %c0_28 = arith.constant 0 : index
    %c0_29 = arith.constant 0 : index
    %20 = vector.load %arg6[%c0_28, %c0_29] : memref<71x4xf32, #tpu.memory_space<vmem>>, vector<71x4xf32>
    %c2 = arith.constant 2 : index
    %c0_30 = arith.constant 0 : index
    %c0_31 = arith.constant 0 : index
    %21 = vector.load %arg2[%c2, %c0_30, %c0_31] : memref<9x4x4xf32, #tpu.memory_space<vmem>>, vector<1x4x4xf32>
    %22 = vector.shape_cast %21 : vector<1x4x4xf32> to vector<4x4xf32>
    %cst_32 = arith.constant dense<0.000000e+00> : vector<71x4xf32>
    %23 = tpu.matmul %19, %22, %cst_32 {dimension_numbers = #tpu.dot_dimension_numbers<[1], [0], [0], [1], [0, 0, 1, 1], [], []>} : vector<71x4xf32>, vector<4x4xf32>, vector<71x4xf32> -> vector<71x4xf32>
    %24 = arith.addf %20, %23 : vector<71x4xf32>
    %c0_33 = arith.constant 0 : index
    %c0_34 = arith.constant 0 : index
    %25 = vector.load %arg6[%c0_33, %c0_34] : memref<71x4xf32, #tpu.memory_space<vmem>>, vector<71x4xf32>
    tpu.vector_store %arg6[%c0_33, %c0_34], %24 {strides = array<i32>} : memref<71x4xf32, #tpu.memory_space<vmem>>, vector<71x4xf32>,
    %c0_35 = arith.constant 0 : index
    %c2_36 = arith.constant 2 : index
    %c0_37 = arith.constant 0 : index
    %c0_38 = arith.constant 0 : index
    %26 = vector.load %arg1[%c0_35, %c2_36, %c0_37, %c0_38] : memref<1x4x81x4xf32, #tpu.memory_space<vmem>>, vector<1x1x71x4xf32>
    %27 = vector.shape_cast %26 : vector<1x1x71x4xf32> to vector<71x4xf32>
    %c0_39 = arith.constant 0 : index
    %c0_40 = arith.constant 0 : index
    %28 = vector.load %arg6[%c0_39, %c0_40] : memref<71x4xf32, #tpu.memory_space<vmem>>, vector<71x4xf32>
    %c3 = arith.constant 3 : index
    %c0_41 = arith.constant 0 : index
    %c0_42 = arith.constant 0 : index
    %29 = vector.load %arg2[%c3, %c0_41, %c0_42] : memref<9x4x4xf32, #tpu.memory_space<vmem>>, vector<1x4x4xf32>
    %30 = vector.shape_cast %29 : vector<1x4x4xf32> to vector<4x4xf32>
    %cst_43 = arith.constant dense<0.000000e+00> : vector<71x4xf32>
    %31 = tpu.matmul %27, %30, %cst_43 {dimension_numbers = #tpu.dot_dimension_numbers<[1], [0], [0], [1], [0, 0, 1, 1], [], []>} : vector<71x4xf32>, vector<4x4xf32>, vector<71x4xf32> -> vector<71x4xf32>
    %32 = arith.addf %28, %31 : vector<71x4xf32>
    %c0_44 = arith.constant 0 : index
    %c0_45 = arith.constant 0 : index
    %33 = vector.load %arg6[%c0_44, %c0_45] : memref<71x4xf32, #tpu.memory_space<vmem>>, vector<71x4xf32>
    tpu.vector_store %arg6[%c0_44, %c0_45], %32 {strides = array<i32>} : memref<71x4xf32, #tpu.memory_space<vmem>>, vector<71x4xf32>,
    %c0_46 = arith.constant 0 : index
    %c3_47 = arith.constant 3 : index
    %c0_48 = arith.constant 0 : index
    %c0_49 = arith.constant 0 : index
    %34 = vector.load %arg1[%c0_46, %c3_47, %c0_48, %c0_49] : memref<1x4x81x4xf32, #tpu.memory_space<vmem>>, vector<1x1x71x4xf32>
    %35 = vector.shape_cast %34 : vector<1x1x71x4xf32> to vector<71x4xf32>
    %c0_50 = arith.constant 0 : index
    %c0_51 = arith.constant 0 : index
    %36 = vector.load %arg6[%c0_50, %c0_51] : memref<71x4xf32, #tpu.memory_space<vmem>>, vector<71x4xf32>
    %c4 = arith.constant 4 : index
    %c0_52 = arith.constant 0 : index
    %c0_53 = arith.constant 0 : index
    %37 = vector.load %arg2[%c4, %c0_52, %c0_53] : memref<9x4x4xf32, #tpu.memory_space<vmem>>, vector<1x4x4xf32>
    %38 = vector.shape_cast %37 : vector<1x4x4xf32> to vector<4x4xf32>
    %cst_54 = arith.constant dense<0.000000e+00> : vector<71x4xf32>
    %39 = tpu.matmul %35, %38, %cst_54 {dimension_numbers = #tpu.dot_dimension_numbers<[1], [0], [0], [1], [0, 0, 1, 1], [], []>} : vector<71x4xf32>, vector<4x4xf32>, vector<71x4xf32> -> vector<71x4xf32>
    %40 = arith.addf %36, %39 : vector<71x4xf32>
    %c0_55 = arith.constant 0 : index
    %c0_56 = arith.constant 0 : index
    %41 = vector.load %arg6[%c0_55, %c0_56] : memref<71x4xf32, #tpu.memory_space<vmem>>, vector<71x4xf32>
    tpu.vector_store %arg6[%c0_55, %c0_56], %40 {strides = array<i32>} : memref<71x4xf32, #tpu.memory_space<vmem>>, vector<71x4xf32>,
    %c0_57 = arith.constant 0 : index
    %c2_58 = arith.constant 2 : index
    %c1_59 = arith.constant 1 : index
    %c0_60 = arith.constant 0 : index
    %42 = vector.load %arg1[%c0_57, %c2_58, %c1_59, %c0_60] : memref<1x4x81x4xf32, #tpu.memory_space<vmem>>, vector<1x1x71x4xf32>
    %43 = vector.shape_cast %42 : vector<1x1x71x4xf32> to vector<71x4xf32>
    %c0_61 = arith.constant 0 : index
    %c0_62 = arith.constant 0 : index
    %44 = vector.load %arg6[%c0_61, %c0_62] : memref<71x4xf32, #tpu.memory_space<vmem>>, vector<71x4xf32>
    %c5 = arith.constant 5 : index
    %c0_63 = arith.constant 0 : index
    %c0_64 = arith.constant 0 : index
    %45 = vector.load %arg2[%c5, %c0_63, %c0_64] : memref<9x4x4xf32, #tpu.memory_space<vmem>>, vector<1x4x4xf32>
    %46 = vector.shape_cast %45 : vector<1x4x4xf32> to vector<4x4xf32>
    %cst_65 = arith.constant dense<0.000000e+00> : vector<71x4xf32>
    %47 = tpu.matmul %43, %46, %cst_65 {dimension_numbers = #tpu.dot_dimension_numbers<[1], [0], [0], [1], [0, 0, 1, 1], [], []>} : vector<71x4xf32>, vector<4x4xf32>, vector<71x4xf32> -> vector<71x4xf32>
    %48 = arith.addf %44, %47 : vector<71x4xf32>
    %c0_66 = arith.constant 0 : index
    %c0_67 = arith.constant 0 : index
    %49 = vector.load %arg6[%c0_66, %c0_67] : memref<71x4xf32, #tpu.memory_space<vmem>>, vector<71x4xf32>
    tpu.vector_store %arg6[%c0_66, %c0_67], %48 {strides = array<i32>} : memref<71x4xf32, #tpu.memory_space<vmem>>, vector<71x4xf32>,
    %c0_68 = arith.constant 0 : index
    %c0_69 = arith.constant 0 : index
    %c9 = arith.constant 9 : index
    %c0_70 = arith.constant 0 : index
    %50 = vector.load %arg1[%c0_68, %c0_69, %c9, %c0_70] : memref<1x4x81x4xf32, #tpu.memory_space<vmem>>, vector<1x1x71x4xf32>
    %51 = vector.shape_cast %50 : vector<1x1x71x4xf32> to vector<71x4xf32>
    %c0_71 = arith.constant 0 : index
    %c0_72 = arith.constant 0 : index
    %52 = vector.load %arg6[%c0_71, %c0_72] : memref<71x4xf32, #tpu.memory_space<vmem>>, vector<71x4xf32>
    %c6 = arith.constant 6 : index
    %c0_73 = arith.constant 0 : index
    %c0_74 = arith.constant 0 : index
    %53 = vector.load %arg2[%c6, %c0_73, %c0_74] : memref<9x4x4xf32, #tpu.memory_space<vmem>>, vector<1x4x4xf32>
    %54 = vector.shape_cast %53 : vector<1x4x4xf32> to vector<4x4xf32>
    %cst_75 = arith.constant dense<0.000000e+00> : vector<71x4xf32>
    %55 = tpu.matmul %51, %54, %cst_75 {dimension_numbers = #tpu.dot_dimension_numbers<[1], [0], [0], [1], [0, 0, 1, 1], [], []>} : vector<71x4xf32>, vector<4x4xf32>, vector<71x4xf32> -> vector<71x4xf32>
    %56 = arith.addf %52, %55 : vector<71x4xf32>
    %c0_76 = arith.constant 0 : index
    %c0_77 = arith.constant 0 : index
    %57 = vector.load %arg6[%c0_76, %c0_77] : memref<71x4xf32, #tpu.memory_space<vmem>>, vector<71x4xf32>
    tpu.vector_store %arg6[%c0_76, %c0_77], %56 {strides = array<i32>} : memref<71x4xf32, #tpu.memory_space<vmem>>, vector<71x4xf32>,
    %c0_78 = arith.constant 0 : index
    %c1_79 = arith.constant 1 : index
    %c9_80 = arith.constant 9 : index
    %c0_81 = arith.constant 0 : index
    %58 = vector.load %arg1[%c0_78, %c1_79, %c9_80, %c0_81] : memref<1x4x81x4xf32, #tpu.memory_space<vmem>>, vector<1x1x71x4xf32>
    %59 = vector.shape_cast %58 : vector<1x1x71x4xf32> to vector<71x4xf32>
    %c0_82 = arith.constant 0 : index
    %c0_83 = arith.constant 0 : index
    %60 = vector.load %arg6[%c0_82, %c0_83] : memref<71x4xf32, #tpu.memory_space<vmem>>, vector<71x4xf32>
    %c7 = arith.constant 7 : index
    %c0_84 = arith.constant 0 : index
    %c0_85 = arith.constant 0 : index
    %61 = vector.load %arg2[%c7, %c0_84, %c0_85] : memref<9x4x4xf32, #tpu.memory_space<vmem>>, vector<1x4x4xf32>
    %62 = vector.shape_cast %61 : vector<1x4x4xf32> to vector<4x4xf32>
    %cst_86 = arith.constant dense<0.000000e+00> : vector<71x4xf32>
    %63 = tpu.matmul %59, %62, %cst_86 {dimension_numbers = #tpu.dot_dimension_numbers<[1], [0], [0], [1], [0, 0, 1, 1], [], []>} : vector<71x4xf32>, vector<4x4xf32>, vector<71x4xf32> -> vector<71x4xf32>
    %64 = arith.addf %60, %63 : vector<71x4xf32>
    %c0_87 = arith.constant 0 : index
    %c0_88 = arith.constant 0 : index
    %65 = vector.load %arg6[%c0_87, %c0_88] : memref<71x4xf32, #tpu.memory_space<vmem>>, vector<71x4xf32>
    tpu.vector_store %arg6[%c0_87, %c0_88], %64 {strides = array<i32>} : memref<71x4xf32, #tpu.memory_space<vmem>>, vector<71x4xf32>,
    %c0_89 = arith.constant 0 : index
    %c0_90 = arith.constant 0 : index
    %c10 = arith.constant 10 : index
    %c0_91 = arith.constant 0 : index
    %66 = vector.load %arg1[%c0_89, %c0_90, %c10, %c0_91] : memref<1x4x81x4xf32, #tpu.memory_space<vmem>>, vector<1x1x71x4xf32>
    %67 = vector.shape_cast %66 : vector<1x1x71x4xf32> to vector<71x4xf32>
    %c0_92 = arith.constant 0 : index
    %c0_93 = arith.constant 0 : index
    %68 = vector.load %arg6[%c0_92, %c0_93] : memref<71x4xf32, #tpu.memory_space<vmem>>, vector<71x4xf32>
    %c8 = arith.constant 8 : index
    %c0_94 = arith.constant 0 : index
    %c0_95 = arith.constant 0 : index
    %69 = vector.load %arg2[%c8, %c0_94, %c0_95] : memref<9x4x4xf32, #tpu.memory_space<vmem>>, vector<1x4x4xf32>
    %70 = vector.shape_cast %69 : vector<1x4x4xf32> to vector<4x4xf32>
    %cst_96 = arith.constant dense<0.000000e+00> : vector<71x4xf32>
    %71 = tpu.matmul %67, %70, %cst_96 {dimension_numbers = #tpu.dot_dimension_numbers<[1], [0], [0], [1], [0, 0, 1, 1], [], []>} : vector<71x4xf32>, vector<4x4xf32>, vector<71x4xf32> -> vector<71x4xf32>
    %72 = arith.addf %68, %71 : vector<71x4xf32>
    %c0_97 = arith.constant 0 : index
    %c0_98 = arith.constant 0 : index
    %73 = vector.load %arg6[%c0_97, %c0_98] : memref<71x4xf32, #tpu.memory_space<vmem>>, vector<71x4xf32>
    tpu.vector_store %arg6[%c0_97, %c0_98], %72 {strides = array<i32>} : memref<71x4xf32, #tpu.memory_space<vmem>>, vector<71x4xf32>,
    %c0_99 = arith.constant 0 : index
    %c0_100 = arith.constant 0 : index
    %74 = vector.load %arg6[%c0_99, %c0_100] : memref<71x4xf32, #tpu.memory_space<vmem>>, vector<71x4xf32>
    %c0_101 = arith.constant 0 : index
    %c0_102 = arith.constant 0 : index
    %75 = vector.load %arg3[%c0_101, %c0_102] : memref<1x4xf32, #tpu.memory_space<vmem>>, vector<1x4xf32>
    %76 = vector.broadcast %75 : vector<1x4xf32> to vector<71x4xf32>
    %77 = arith.mulf %74, %76 : vector<71x4xf32>
    %c0_103 = arith.constant 0 : index
    %c0_104 = arith.constant 0 : index
    %78 = vector.load %arg4[%c0_103, %c0_104] : memref<1x4xf32, #tpu.memory_space<vmem>>, vector<1x4xf32>
    %79 = vector.broadcast %78 : vector<1x4xf32> to vector<71x4xf32>
    %80 = arith.addf %77, %79 : vector<71x4xf32>
    %cst_105 = arith.constant 0.000000e+00 : f32
    %81 = vector.broadcast %cst_105 : f32 to vector<71x4xf32>
    %82 = arith.maximumf %80, %81 : vector<71x4xf32>
    %c0_106 = arith.constant 0 : index
    %c0_107 = arith.constant 0 : index
    %c0_108 = arith.constant 0 : index
    %83 = vector.load %arg5[%c0_106, %c0_107, %c0_108] : memref<1x71x4xf32, #tpu.memory_space<vmem>>, vector<1x71x4xf32>
    %84 = vector.shape_cast %83 : vector<1x71x4xf32> to vector<71x4xf32>
    %85 = vector.shape_cast %82 : vector<71x4xf32> to vector<1x71x4xf32>
    tpu.vector_store %arg5[%c0_106, %c0_107, %c0_108], %85 {strides = array<i32>} : memref<1x71x4xf32, #tpu.memory_space<vmem>>, vector<1x71x4xf32>,
    return
  }
  func.func @transform_0(%arg0: i32) -> (i32, i32, i32, i32) {
    %c0_i32 = arith.constant 0 : i32
    %c0_i32_0 = arith.constant 0 : i32
    %c0_i32_1 = arith.constant 0 : i32
    %c0_i32_2 = arith.constant 0 : i32
    return %arg0, %c0_i32, %c0_i32_0, %c0_i32_1 : i32, i32, i32, i32
  }
  func.func @transform_1(%arg0: i32) -> (i32, i32, i32) {
    %c0_i32 = arith.constant 0 : i32
    %c0_i32_0 = arith.constant 0 : i32
    %c0_i32_1 = arith.constant 0 : i32
    %c0_i32_2 = arith.constant 0 : i32
    return %c0_i32, %c0_i32_0, %c0_i32_1 : i32, i32, i32
  }
  func.func @transform_2(%arg0: i32) -> (i32, i32) {
    %c0_i32 = arith.constant 0 : i32
    %c0_i32_0 = arith.constant 0 : i32
    %c0_i32_1 = arith.constant 0 : i32
    return %c0_i32, %c0_i32_0 : i32, i32
  }
  func.func @transform_3(%arg0: i32) -> (i32, i32) {
    %c0_i32 = arith.constant 0 : i32
    %c0_i32_0 = arith.constant 0 : i32
    %c0_i32_1 = arith.constant 0 : i32
    return %c0_i32, %c0_i32_0 : i32, i32
  }
  func.func @transform_4(%arg0: i32) -> (i32, i32, i32) {
    %c0_i32 = arith.constant 0 : i32
    %c0_i32_0 = arith.constant 0 : i32
    %c0_i32_1 = arith.constant 0 : i32
    return %arg0, %c0_i32, %c0_i32_0 : i32, i32, i32
  }
}

module attributes {stable_mosaic.version = 11 : i64} {
  func.func @_gemm_bn_act_kernel(%arg0: i32, %arg1: memref<128x4xf32, #tpu.memory_space<vmem>>, %arg2: memref<4x16xf32, #tpu.memory_space<vmem>>, %arg3: memref<1x16xf32, #tpu.memory_space<vmem>>, %arg4: memref<1x16xf32, #tpu.memory_space<vmem>>, %arg5: memref<128x16xf32, #tpu.memory_space<vmem>>) attributes {dimension_semantics = [#tpu.dimension_semantics<parallel>], iteration_bounds = array<i64: 1>, scalar_prefetch = 0 : i64, scratch_operands = 0 : i64, tpu.core_type = #tpu.core_type<tc>, window_params = [{transform_indices = @transform_0, window_bounds = array<i64: 128, 4>}, {pipeline_mode = #tpu.pipeline_mode<synchronous>, transform_indices = @transform_1, window_bounds = array<i64: 4, 16>}, {pipeline_mode = #tpu.pipeline_mode<synchronous>, transform_indices = @transform_2, window_bounds = array<i64: 1, 16>}, {pipeline_mode = #tpu.pipeline_mode<synchronous>, transform_indices = @transform_3, window_bounds = array<i64: 1, 16>}, {transform_indices = @transform_4, window_bounds = array<i64: 128, 16>}]} {
    %c0 = arith.constant 0 : index
    %c0_0 = arith.constant 0 : index
    %0 = vector.load %arg1[%c0, %c0_0] : memref<128x4xf32, #tpu.memory_space<vmem>>, vector<128x4xf32>
    %c0_1 = arith.constant 0 : index
    %c0_2 = arith.constant 0 : index
    %1 = vector.load %arg2[%c0_1, %c0_2] : memref<4x16xf32, #tpu.memory_space<vmem>>, vector<4x16xf32>
    %cst = arith.constant dense<0.000000e+00> : vector<128x16xf32>
    %2 = tpu.matmul %0, %1, %cst {dimension_numbers = #tpu.dot_dimension_numbers<[1], [0], [0], [1], [0, 0, 1, 1], [], []>} : vector<128x4xf32>, vector<4x16xf32>, vector<128x16xf32> -> vector<128x16xf32>
    %c0_3 = arith.constant 0 : index
    %c0_4 = arith.constant 0 : index
    %3 = vector.load %arg3[%c0_3, %c0_4] : memref<1x16xf32, #tpu.memory_space<vmem>>, vector<1x16xf32>
    %4 = vector.broadcast %3 : vector<1x16xf32> to vector<128x16xf32>
    %5 = arith.mulf %2, %4 : vector<128x16xf32>
    %c0_5 = arith.constant 0 : index
    %c0_6 = arith.constant 0 : index
    %6 = vector.load %arg4[%c0_5, %c0_6] : memref<1x16xf32, #tpu.memory_space<vmem>>, vector<1x16xf32>
    %7 = vector.broadcast %6 : vector<1x16xf32> to vector<128x16xf32>
    %8 = arith.addf %5, %7 : vector<128x16xf32>
    %c0_7 = arith.constant 0 : index
    %c0_8 = arith.constant 0 : index
    %9 = vector.load %arg5[%c0_7, %c0_8] : memref<128x16xf32, #tpu.memory_space<vmem>>, vector<128x16xf32>
    tpu.vector_store %arg5[%c0_7, %c0_8], %8 {strides = array<i32>} : memref<128x16xf32, #tpu.memory_space<vmem>>, vector<128x16xf32>,
    return
  }
  func.func @transform_0(%arg0: i32) -> (i32, i32) {
    %c0_i32 = arith.constant 0 : i32
    %c0_i32_0 = arith.constant 0 : i32
    return %arg0, %c0_i32 : i32, i32
  }
  func.func @transform_1(%arg0: i32) -> (i32, i32) {
    %c0_i32 = arith.constant 0 : i32
    %c0_i32_0 = arith.constant 0 : i32
    %c0_i32_1 = arith.constant 0 : i32
    return %c0_i32, %c0_i32_0 : i32, i32
  }
  func.func @transform_2(%arg0: i32) -> (i32, i32) {
    %c0_i32 = arith.constant 0 : i32
    %c0_i32_0 = arith.constant 0 : i32
    %c0_i32_1 = arith.constant 0 : i32
    return %c0_i32, %c0_i32_0 : i32, i32
  }
  func.func @transform_3(%arg0: i32) -> (i32, i32) {
    %c0_i32 = arith.constant 0 : i32
    %c0_i32_0 = arith.constant 0 : i32
    %c0_i32_1 = arith.constant 0 : i32
    return %c0_i32, %c0_i32_0 : i32, i32
  }
  func.func @transform_4(%arg0: i32) -> (i32, i32) {
    %c0_i32 = arith.constant 0 : i32
    %c0_i32_0 = arith.constant 0 : i32
    return %arg0, %c0_i32 : i32, i32
  }
}

module attributes {stable_mosaic.version = 11 : i64} {
  func.func @_ca_weights_kernel(%arg0: i32, %arg1: i32, %arg2: memref<1x64x16xf32, #tpu.memory_space<vmem>>, %arg3: memref<16x1xf32, #tpu.memory_space<vmem>>, %arg4: memref<1x16xf32, #tpu.memory_space<vmem>>, %arg5: memref<1x1x16xf32, #tpu.memory_space<vmem>>, %arg6: memref<1x16xf32, #tpu.memory_space<vmem>>, %arg7: memref<1x16xf32, #tpu.memory_space<vmem>>) attributes {dimension_semantics = [#tpu.dimension_semantics<parallel>, #tpu.dimension_semantics<arbitrary>], iteration_bounds = array<i64: 2, 1>, scalar_prefetch = 0 : i64, scratch_operands = 2 : i64, tpu.core_type = #tpu.core_type<tc>, window_params = [{transform_indices = @transform_0, window_bounds = array<i64: 1, 64, 16>}, {pipeline_mode = #tpu.pipeline_mode<synchronous>, transform_indices = @transform_1, window_bounds = array<i64: 16, 1>}, {pipeline_mode = #tpu.pipeline_mode<synchronous>, transform_indices = @transform_2, window_bounds = array<i64: 1, 16>}, {transform_indices = @transform_3, window_bounds = array<i64: 1, 1, 16>}]} {
    %c0_i32 = arith.constant 0 : i32
    %0 = arith.cmpi eq, %arg1, %c0_i32 : i32
    %1 = arith.extui %0 : i1 to i32
    %c0_i32_0 = arith.constant 0 : i32
    %2 = arith.cmpi ne, %1, %c0_i32_0 : i32
    scf.if %2 {
      %cst_17 = arith.constant 0.000000e+00 : f32
      %32 = vector.broadcast %cst_17 : f32 to vector<1x16xf32>
      %c0_18 = arith.constant 0 : index
      %c0_19 = arith.constant 0 : index
      %33 = vector.load %arg6[%c0_18, %c0_19] : memref<1x16xf32, #tpu.memory_space<vmem>>, vector<1x16xf32>
      tpu.vector_store %arg6[%c0_18, %c0_19], %32 {strides = array<i32>} : memref<1x16xf32, #tpu.memory_space<vmem>>, vector<1x16xf32>,
      %cst_20 = arith.constant 0xFF800000 : f32
      %34 = vector.broadcast %cst_20 : f32 to vector<1x16xf32>
      %c0_21 = arith.constant 0 : index
      %c0_22 = arith.constant 0 : index
      %35 = vector.load %arg7[%c0_21, %c0_22] : memref<1x16xf32, #tpu.memory_space<vmem>>, vector<1x16xf32>
      tpu.vector_store %arg7[%c0_21, %c0_22], %34 {strides = array<i32>} : memref<1x16xf32, #tpu.memory_space<vmem>>, vector<1x16xf32>,
    } else {
    }
    %c0 = arith.constant 0 : index
    %c0_1 = arith.constant 0 : index
    %c0_2 = arith.constant 0 : index
    %3 = vector.load %arg2[%c0, %c0_1, %c0_2] : memref<1x64x16xf32, #tpu.memory_space<vmem>>, vector<1x64x16xf32>
    %4 = vector.shape_cast %3 : vector<1x64x16xf32> to vector<64x16xf32>
    %c64_i32 = arith.constant 64 : i32
    %5 = arith.muli %arg1, %c64_i32 : i32
    %6 = tpu.iota {dimensions = array<i32: 0>} : vector<64x1xi32>
    %7 = vector.broadcast %5 : i32 to vector<64x1xi32>
    %8 = arith.addi %7, %6 : vector<64x1xi32>
    %c64_i32_3 = arith.constant 64 : i32
    %9 = vector.broadcast %c64_i32_3 : i32 to vector<64x1xi32>
    %10 = arith.cmpi slt, %8, %9 : vector<64x1xi32>
    %c0_4 = arith.constant 0 : index
    %c0_5 = arith.constant 0 : index
    %11 = vector.load %arg6[%c0_4, %c0_5] : memref<1x16xf32, #tpu.memory_space<vmem>>, vector<1x16xf32>
    %cst = arith.constant 0.000000e+00 : f32
    %12 = vector.shape_cast %10 : vector<64x1xi1> to vector<64x1xi1>
    %13 = vector.broadcast %12 : vector<64x1xi1> to vector<64x16xi1>
    %14 = vector.broadcast %cst : f32 to vector<64x16xf32>
    %15 = arith.select %13, %4, %14 : vector<64x16xi1>, vector<64x16xf32>
    %cst_6 = arith.constant dense<0.000000e+00> : vector<16xf32>
    %16 = vector.multi_reduction <add>, %15, %cst_6 [0] : vector<64x16xf32> to vector<16xf32>
    %17 = vector.shape_cast %16 : vector<16xf32> to vector<1x16xf32>
    %18 = arith.addf %11, %17 : vector<1x16xf32>
    %c0_7 = arith.constant 0 : index
    %c0_8 = arith.constant 0 : index
    %19 = vector.load %arg6[%c0_7, %c0_8] : memref<1x16xf32, #tpu.memory_space<vmem>>, vector<1x16xf32>
    tpu.vector_store %arg6[%c0_7, %c0_8], %18 {strides = array<i32>} : memref<1x16xf32, #tpu.memory_space<vmem>>, vector<1x16xf32>,
    %c0_9 = arith.constant 0 : index
    %c0_10 = arith.constant 0 : index
    %20 = vector.load %arg7[%c0_9, %c0_10] : memref<1x16xf32, #tpu.memory_space<vmem>>, vector<1x16xf32>
    %cst_11 = arith.constant 0xFF800000 : f32
    %21 = vector.shape_cast %10 : vector<64x1xi1> to vector<64x1xi1>
    %22 = vector.broadcast %21 : vector<64x1xi1> to vector<64x16xi1>
    %23 = vector.broadcast %cst_11 : f32 to vector<64x16xf32>
    %24 = arith.select %22, %4, %23 : vector<64x16xi1>, vector<64x16xf32>
    %cst_12 = arith.constant dense<0xFF800000> : vector<16xf32>
    %25 = vector.multi_reduction <maximumf>, %24, %cst_12 [0] : vector<64x16xf32> to vector<16xf32>
    %26 = vector.shape_cast %25 : vector<16xf32> to vector<1x16xf32>
    %27 = arith.maximumf %20, %26 : vector<1x16xf32>
    %c0_13 = arith.constant 0 : index
    %c0_14 = arith.constant 0 : index
    %28 = vector.load %arg7[%c0_13, %c0_14] : memref<1x16xf32, #tpu.memory_space<vmem>>, vector<1x16xf32>
    tpu.vector_store %arg7[%c0_13, %c0_14], %27 {strides = array<i32>} : memref<1x16xf32, #tpu.memory_space<vmem>>, vector<1x16xf32>,
    %c0_i32_15 = arith.constant 0 : i32
    %29 = arith.cmpi eq, %arg1, %c0_i32_15 : i32
    %30 = arith.extui %29 : i1 to i32
    %c0_i32_16 = arith.constant 0 : i32
    %31 = arith.cmpi ne, %30, %c0_i32_16 : i32
    scf.if %31 {
      %c0_17 = arith.constant 0 : index
      %c0_18 = arith.constant 0 : index
      %32 = vector.load %arg6[%c0_17, %c0_18] : memref<1x16xf32, #tpu.memory_space<vmem>>, vector<1x16xf32>
      %cst_19 = arith.constant 1.562500e-02 : f32
      %33 = vector.broadcast %cst_19 : f32 to vector<1x16xf32>
      %34 = arith.mulf %32, %33 : vector<1x16xf32>
      %c0_20 = arith.constant 0 : index
      %c0_21 = arith.constant 0 : index
      %35 = vector.load %arg7[%c0_20, %c0_21] : memref<1x16xf32, #tpu.memory_space<vmem>>, vector<1x16xf32>
      %c0_22 = arith.constant 0 : index
      %c0_23 = arith.constant 0 : index
      %36 = vector.load %arg3[%c0_22, %c0_23] : memref<16x1xf32, #tpu.memory_space<vmem>>, vector<16x1xf32>
      %cst_24 = arith.constant dense<0.000000e+00> : vector<1x1xf32>
      %37 = tpu.matmul %34, %36, %cst_24 {dimension_numbers = #tpu.dot_dimension_numbers<[1], [0], [0], [1], [0, 0, 1, 1], [], []>} : vector<1x16xf32>, vector<16x1xf32>, vector<1x1xf32> -> vector<1x1xf32>
      %cst_25 = arith.constant 0.000000e+00 : f32
      %38 = vector.broadcast %cst_25 : f32 to vector<1x1xf32>
      %39 = arith.maximumf %37, %38 : vector<1x1xf32>
      %c0_26 = arith.constant 0 : index
      %c0_27 = arith.constant 0 : index
      %40 = vector.load %arg4[%c0_26, %c0_27] : memref<1x16xf32, #tpu.memory_space<vmem>>, vector<1x16xf32>
      %cst_28 = arith.constant dense<0.000000e+00> : vector<1x16xf32>
      %41 = tpu.matmul %39, %40, %cst_28 {dimension_numbers = #tpu.dot_dimension_numbers<[1], [0], [0], [1], [0, 0, 1, 1], [], []>} : vector<1x1xf32>, vector<1x16xf32>, vector<1x16xf32> -> vector<1x16xf32>
      %c0_29 = arith.constant 0 : index
      %c0_30 = arith.constant 0 : index
      %42 = vector.load %arg3[%c0_29, %c0_30] : memref<16x1xf32, #tpu.memory_space<vmem>>, vector<16x1xf32>
      %cst_31 = arith.constant dense<0.000000e+00> : vector<1x1xf32>
      %43 = tpu.matmul %35, %42, %cst_31 {dimension_numbers = #tpu.dot_dimension_numbers<[1], [0], [0], [1], [0, 0, 1, 1], [], []>} : vector<1x16xf32>, vector<16x1xf32>, vector<1x1xf32> -> vector<1x1xf32>
      %cst_32 = arith.constant 0.000000e+00 : f32
      %44 = vector.broadcast %cst_32 : f32 to vector<1x1xf32>
      %45 = arith.maximumf %43, %44 : vector<1x1xf32>
      %c0_33 = arith.constant 0 : index
      %c0_34 = arith.constant 0 : index
      %46 = vector.load %arg4[%c0_33, %c0_34] : memref<1x16xf32, #tpu.memory_space<vmem>>, vector<1x16xf32>
      %cst_35 = arith.constant dense<0.000000e+00> : vector<1x16xf32>
      %47 = tpu.matmul %45, %46, %cst_35 {dimension_numbers = #tpu.dot_dimension_numbers<[1], [0], [0], [1], [0, 0, 1, 1], [], []>} : vector<1x1xf32>, vector<1x16xf32>, vector<1x16xf32> -> vector<1x16xf32>
      %48 = arith.addf %41, %47 : vector<1x16xf32>
      %cst_36 = arith.constant 0.000000e+00 : f32
      %49 = vector.broadcast %cst_36 : f32 to vector<1x16xf32>
      %50 = arith.subf %49, %48 : vector<1x16xf32>
      %51 = math.exp %50 : vector<1x16xf32>
      %cst_37 = arith.constant 1.000000e+00 : f32
      %52 = vector.broadcast %cst_37 : f32 to vector<1x16xf32>
      %53 = arith.addf %52, %51 : vector<1x16xf32>
      %cst_38 = arith.constant 1.000000e+00 : f32
      %54 = vector.broadcast %cst_38 : f32 to vector<1x16xf32>
      %55 = arith.divf %54, %53 : vector<1x16xf32>
      %c0_39 = arith.constant 0 : index
      %c0_40 = arith.constant 0 : index
      %c0_41 = arith.constant 0 : index
      %56 = vector.load %arg5[%c0_39, %c0_40, %c0_41] : memref<1x1x16xf32, #tpu.memory_space<vmem>>, vector<1x1x16xf32>
      %57 = vector.shape_cast %56 : vector<1x1x16xf32> to vector<1x16xf32>
      %58 = vector.shape_cast %55 : vector<1x16xf32> to vector<1x1x16xf32>
      tpu.vector_store %arg5[%c0_39, %c0_40, %c0_41], %58 {strides = array<i32>} : memref<1x1x16xf32, #tpu.memory_space<vmem>>, vector<1x1x16xf32>,
    } else {
    }
    return
  }
  func.func @transform_0(%arg0: i32, %arg1: i32) -> (i32, i32, i32) {
    %c0_i32 = arith.constant 0 : i32
    %c0_i32_0 = arith.constant 0 : i32
    return %arg0, %arg1, %c0_i32 : i32, i32, i32
  }
  func.func @transform_1(%arg0: i32, %arg1: i32) -> (i32, i32) {
    %c0_i32 = arith.constant 0 : i32
    %c0_i32_0 = arith.constant 0 : i32
    %c0_i32_1 = arith.constant 0 : i32
    return %c0_i32, %c0_i32_0 : i32, i32
  }
  func.func @transform_2(%arg0: i32, %arg1: i32) -> (i32, i32) {
    %c0_i32 = arith.constant 0 : i32
    %c0_i32_0 = arith.constant 0 : i32
    %c0_i32_1 = arith.constant 0 : i32
    return %c0_i32, %c0_i32_0 : i32, i32
  }
  func.func @transform_3(%arg0: i32, %arg1: i32) -> (i32, i32, i32) {
    %c0_i32 = arith.constant 0 : i32
    %c0_i32_0 = arith.constant 0 : i32
    %c0_i32_1 = arith.constant 0 : i32
    return %arg0, %c0_i32, %c0_i32_0 : i32, i32, i32
  }
}

module attributes {stable_mosaic.version = 11 : i64} {
  func.func @_ca_stats_maps_kernel(%arg0: i32, %arg1: i32, %arg2: memref<1x64x16xf32, #tpu.memory_space<vmem>>, %arg3: memref<1x1x16xf32, #tpu.memory_space<vmem>>, %arg4: memref<1x64x2xf32, #tpu.memory_space<vmem>>) attributes {dimension_semantics = [#tpu.dimension_semantics<parallel>, #tpu.dimension_semantics<parallel>], iteration_bounds = array<i64: 2, 1>, scalar_prefetch = 0 : i64, scratch_operands = 0 : i64, tpu.core_type = #tpu.core_type<tc>, window_params = [{transform_indices = @transform_0, window_bounds = array<i64: 1, 64, 16>}, {transform_indices = @transform_1, window_bounds = array<i64: 1, 1, 16>}, {transform_indices = @transform_2, window_bounds = array<i64: 1, 64, 2>}]} {
    %c0 = arith.constant 0 : index
    %c0_0 = arith.constant 0 : index
    %c0_1 = arith.constant 0 : index
    %0 = vector.load %arg2[%c0, %c0_0, %c0_1] : memref<1x64x16xf32, #tpu.memory_space<vmem>>, vector<1x64x16xf32>
    %1 = vector.shape_cast %0 : vector<1x64x16xf32> to vector<64x16xf32>
    %c0_2 = arith.constant 0 : index
    %c0_3 = arith.constant 0 : index
    %c0_4 = arith.constant 0 : index
    %2 = vector.load %arg3[%c0_2, %c0_3, %c0_4] : memref<1x1x16xf32, #tpu.memory_space<vmem>>, vector<1x1x16xf32>
    %3 = vector.shape_cast %2 : vector<1x1x16xf32> to vector<1x16xf32>
    %4 = vector.broadcast %3 : vector<1x16xf32> to vector<64x16xf32>
    %5 = arith.mulf %1, %4 : vector<64x16xf32>
    %cst = arith.constant dense<0.000000e+00> : vector<64xf32>
    %6 = vector.multi_reduction <add>, %5, %cst [1] : vector<64x16xf32> to vector<64xf32>
    %7 = vector.shape_cast %6 : vector<64xf32> to vector<64x1xf32>
    %cst_5 = arith.constant 1.600000e+01 : f32
    %8 = vector.broadcast %cst_5 : f32 to vector<64x1xf32>
    %9 = arith.divf %7, %8 : vector<64x1xf32>
    %cst_6 = arith.constant dense<0xFF800000> : vector<64xf32>
    %10 = vector.multi_reduction <maximumf>, %5, %cst_6 [1] : vector<64x16xf32> to vector<64xf32>
    %11 = vector.shape_cast %10 : vector<64xf32> to vector<64x1xf32>
    %12 = tpu.concatenate %9, %11 in 1 : vector<64x1xf32>, vector<64x1xf32> -> vector<64x2xf32>
    %c0_7 = arith.constant 0 : index
    %c0_8 = arith.constant 0 : index
    %c0_9 = arith.constant 0 : index
    %13 = vector.load %arg4[%c0_7, %c0_8, %c0_9] : memref<1x64x2xf32, #tpu.memory_space<vmem>>, vector<1x64x2xf32>
    %14 = vector.shape_cast %13 : vector<1x64x2xf32> to vector<64x2xf32>
    %15 = vector.shape_cast %12 : vector<64x2xf32> to vector<1x64x2xf32>
    tpu.vector_store %arg4[%c0_7, %c0_8, %c0_9], %15 {strides = array<i32>} : memref<1x64x2xf32, #tpu.memory_space<vmem>>, vector<1x64x2xf32>,
    return
  }
  func.func @transform_0(%arg0: i32, %arg1: i32) -> (i32, i32, i32) {
    %c0_i32 = arith.constant 0 : i32
    %c0_i32_0 = arith.constant 0 : i32
    return %arg0, %arg1, %c0_i32 : i32, i32, i32
  }
  func.func @transform_1(%arg0: i32, %arg1: i32) -> (i32, i32, i32) {
    %c0_i32 = arith.constant 0 : i32
    %c0_i32_0 = arith.constant 0 : i32
    %c0_i32_1 = arith.constant 0 : i32
    return %arg0, %c0_i32, %c0_i32_0 : i32, i32, i32
  }
  func.func @transform_2(%arg0: i32, %arg1: i32) -> (i32, i32, i32) {
    %c0_i32 = arith.constant 0 : i32
    %c0_i32_0 = arith.constant 0 : i32
    return %arg0, %arg1, %c0_i32 : i32, i32, i32
  }
}

module attributes {stable_mosaic.version = 11 : i64} {
  func.func @_spatial_gate_kernel(%arg0: i32, %arg1: i32, %arg2: memref<1x64x98xf32, #tpu.memory_space<vmem>>, %arg3: memref<98x1xf32, #tpu.memory_space<vmem>>, %arg4: memref<1x64x16xf32, #tpu.memory_space<vmem>>, %arg5: memref<1x1x16xf32, #tpu.memory_space<vmem>>, %arg6: memref<1x64x16xf32, #tpu.memory_space<vmem>>, %arg7: memref<1x64x16xf32, #tpu.memory_space<vmem>>) attributes {dimension_semantics = [#tpu.dimension_semantics<parallel>, #tpu.dimension_semantics<parallel>], iteration_bounds = array<i64: 2, 1>, scalar_prefetch = 0 : i64, scratch_operands = 0 : i64, tpu.core_type = #tpu.core_type<tc>, window_params = [{transform_indices = @transform_0, window_bounds = array<i64: 1, 64, 98>}, {pipeline_mode = #tpu.pipeline_mode<synchronous>, transform_indices = @transform_1, window_bounds = array<i64: 98, 1>}, {transform_indices = @transform_2, window_bounds = array<i64: 1, 64, 16>}, {transform_indices = @transform_3, window_bounds = array<i64: 1, 1, 16>}, {transform_indices = @transform_4, window_bounds = array<i64: 1, 64, 16>}, {transform_indices = @transform_5, window_bounds = array<i64: 1, 64, 16>}]} {
    %c0 = arith.constant 0 : index
    %c0_0 = arith.constant 0 : index
    %c0_1 = arith.constant 0 : index
    %0 = vector.load %arg2[%c0, %c0_0, %c0_1] : memref<1x64x98xf32, #tpu.memory_space<vmem>>, vector<1x64x98xf32>
    %1 = vector.shape_cast %0 : vector<1x64x98xf32> to vector<64x98xf32>
    %c0_2 = arith.constant 0 : index
    %c0_3 = arith.constant 0 : index
    %2 = vector.load %arg3[%c0_2, %c0_3] : memref<98x1xf32, #tpu.memory_space<vmem>>, vector<98x1xf32>
    %cst = arith.constant dense<0.000000e+00> : vector<64x1xf32>
    %3 = tpu.matmul %1, %2, %cst {dimension_numbers = #tpu.dot_dimension_numbers<[1], [0], [0], [1], [0, 0, 1, 1], [], []>} : vector<64x98xf32>, vector<98x1xf32>, vector<64x1xf32> -> vector<64x1xf32>
    %cst_4 = arith.constant 0.000000e+00 : f32
    %4 = vector.broadcast %cst_4 : f32 to vector<64x1xf32>
    %5 = arith.subf %4, %3 : vector<64x1xf32>
    %6 = math.exp %5 : vector<64x1xf32>
    %cst_5 = arith.constant 1.000000e+00 : f32
    %7 = vector.broadcast %cst_5 : f32 to vector<64x1xf32>
    %8 = arith.addf %7, %6 : vector<64x1xf32>
    %cst_6 = arith.constant 1.000000e+00 : f32
    %9 = vector.broadcast %cst_6 : f32 to vector<64x1xf32>
    %10 = arith.divf %9, %8 : vector<64x1xf32>
    %c0_7 = arith.constant 0 : index
    %c0_8 = arith.constant 0 : index
    %c0_9 = arith.constant 0 : index
    %11 = vector.load %arg4[%c0_7, %c0_8, %c0_9] : memref<1x64x16xf32, #tpu.memory_space<vmem>>, vector<1x64x16xf32>
    %12 = vector.shape_cast %11 : vector<1x64x16xf32> to vector<64x16xf32>
    %c0_10 = arith.constant 0 : index
    %c0_11 = arith.constant 0 : index
    %c0_12 = arith.constant 0 : index
    %13 = vector.load %arg5[%c0_10, %c0_11, %c0_12] : memref<1x1x16xf32, #tpu.memory_space<vmem>>, vector<1x1x16xf32>
    %14 = vector.shape_cast %13 : vector<1x1x16xf32> to vector<1x16xf32>
    %15 = vector.broadcast %14 : vector<1x16xf32> to vector<64x16xf32>
    %16 = arith.mulf %12, %15 : vector<64x16xf32>
    %17 = vector.broadcast %10 : vector<64x1xf32> to vector<64x16xf32>
    %18 = arith.mulf %17, %16 : vector<64x16xf32>
    %c0_13 = arith.constant 0 : index
    %c0_14 = arith.constant 0 : index
    %c0_15 = arith.constant 0 : index
    %19 = vector.load %arg6[%c0_13, %c0_14, %c0_15] : memref<1x64x16xf32, #tpu.memory_space<vmem>>, vector<1x64x16xf32>
    %20 = vector.shape_cast %19 : vector<1x64x16xf32> to vector<64x16xf32>
    %21 = arith.addf %18, %20 : vector<64x16xf32>
    %cst_16 = arith.constant 0.000000e+00 : f32
    %22 = vector.broadcast %cst_16 : f32 to vector<64x16xf32>
    %23 = arith.maximumf %21, %22 : vector<64x16xf32>
    %c0_17 = arith.constant 0 : index
    %c0_18 = arith.constant 0 : index
    %c0_19 = arith.constant 0 : index
    %24 = vector.load %arg7[%c0_17, %c0_18, %c0_19] : memref<1x64x16xf32, #tpu.memory_space<vmem>>, vector<1x64x16xf32>
    %25 = vector.shape_cast %24 : vector<1x64x16xf32> to vector<64x16xf32>
    %26 = vector.shape_cast %23 : vector<64x16xf32> to vector<1x64x16xf32>
    tpu.vector_store %arg7[%c0_17, %c0_18, %c0_19], %26 {strides = array<i32>} : memref<1x64x16xf32, #tpu.memory_space<vmem>>, vector<1x64x16xf32>,
    return
  }
  func.func @transform_0(%arg0: i32, %arg1: i32) -> (i32, i32, i32) {
    %c0_i32 = arith.constant 0 : i32
    %c0_i32_0 = arith.constant 0 : i32
    return %arg0, %arg1, %c0_i32 : i32, i32, i32
  }
  func.func @transform_1(%arg0: i32, %arg1: i32) -> (i32, i32) {
    %c0_i32 = arith.constant 0 : i32
    %c0_i32_0 = arith.constant 0 : i32
    %c0_i32_1 = arith.constant 0 : i32
    return %c0_i32, %c0_i32_0 : i32, i32
  }
  func.func @transform_2(%arg0: i32, %arg1: i32) -> (i32, i32, i32) {
    %c0_i32 = arith.constant 0 : i32
    %c0_i32_0 = arith.constant 0 : i32
    return %arg0, %arg1, %c0_i32 : i32, i32, i32
  }
  func.func @transform_3(%arg0: i32, %arg1: i32) -> (i32, i32, i32) {
    %c0_i32 = arith.constant 0 : i32
    %c0_i32_0 = arith.constant 0 : i32
    %c0_i32_1 = arith.constant 0 : i32
    return %arg0, %c0_i32, %c0_i32_0 : i32, i32, i32
  }
  func.func @transform_4(%arg0: i32, %arg1: i32) -> (i32, i32, i32) {
    %c0_i32 = arith.constant 0 : i32
    %c0_i32_0 = arith.constant 0 : i32
    return %arg0, %arg1, %c0_i32 : i32, i32, i32
  }
  func.func @transform_5(%arg0: i32, %arg1: i32) -> (i32, i32, i32) {
    %c0_i32 = arith.constant 0 : i32
    %c0_i32_0 = arith.constant 0 : i32
    return %arg0, %arg1, %c0_i32 : i32, i32, i32
  }
}

module attributes {stable_mosaic.version = 11 : i64} {
  func.func @_gemm_bn_act_kernel(%arg0: i32, %arg1: memref<128x8xf32, #tpu.memory_space<vmem>>, %arg2: memref<8x16xf32, #tpu.memory_space<vmem>>, %arg3: memref<1x16xf32, #tpu.memory_space<vmem>>, %arg4: memref<1x16xf32, #tpu.memory_space<vmem>>, %arg5: memref<128x16xf32, #tpu.memory_space<vmem>>) attributes {dimension_semantics = [#tpu.dimension_semantics<parallel>], iteration_bounds = array<i64: 1>, scalar_prefetch = 0 : i64, scratch_operands = 0 : i64, tpu.core_type = #tpu.core_type<tc>, window_params = [{transform_indices = @transform_0, window_bounds = array<i64: 128, 8>}, {pipeline_mode = #tpu.pipeline_mode<synchronous>, transform_indices = @transform_1, window_bounds = array<i64: 8, 16>}, {pipeline_mode = #tpu.pipeline_mode<synchronous>, transform_indices = @transform_2, window_bounds = array<i64: 1, 16>}, {pipeline_mode = #tpu.pipeline_mode<synchronous>, transform_indices = @transform_3, window_bounds = array<i64: 1, 16>}, {transform_indices = @transform_4, window_bounds = array<i64: 128, 16>}]} {
    %c0 = arith.constant 0 : index
    %c0_0 = arith.constant 0 : index
    %0 = vector.load %arg1[%c0, %c0_0] : memref<128x8xf32, #tpu.memory_space<vmem>>, vector<128x8xf32>
    %c0_1 = arith.constant 0 : index
    %c0_2 = arith.constant 0 : index
    %1 = vector.load %arg2[%c0_1, %c0_2] : memref<8x16xf32, #tpu.memory_space<vmem>>, vector<8x16xf32>
    %cst = arith.constant dense<0.000000e+00> : vector<128x16xf32>
    %2 = tpu.matmul %0, %1, %cst {dimension_numbers = #tpu.dot_dimension_numbers<[1], [0], [0], [1], [0, 0, 1, 1], [], []>} : vector<128x8xf32>, vector<8x16xf32>, vector<128x16xf32> -> vector<128x16xf32>
    %c0_3 = arith.constant 0 : index
    %c0_4 = arith.constant 0 : index
    %3 = vector.load %arg3[%c0_3, %c0_4] : memref<1x16xf32, #tpu.memory_space<vmem>>, vector<1x16xf32>
    %4 = vector.broadcast %3 : vector<1x16xf32> to vector<128x16xf32>
    %5 = arith.mulf %2, %4 : vector<128x16xf32>
    %c0_5 = arith.constant 0 : index
    %c0_6 = arith.constant 0 : index
    %6 = vector.load %arg4[%c0_5, %c0_6] : memref<1x16xf32, #tpu.memory_space<vmem>>, vector<1x16xf32>
    %7 = vector.broadcast %6 : vector<1x16xf32> to vector<128x16xf32>
    %8 = arith.addf %5, %7 : vector<128x16xf32>
    %c0_7 = arith.constant 0 : index
    %c0_8 = arith.constant 0 : index
    %9 = vector.load %arg5[%c0_7, %c0_8] : memref<128x16xf32, #tpu.memory_space<vmem>>, vector<128x16xf32>
    tpu.vector_store %arg5[%c0_7, %c0_8], %8 {strides = array<i32>} : memref<128x16xf32, #tpu.memory_space<vmem>>, vector<128x16xf32>,
    return
  }
  func.func @transform_0(%arg0: i32) -> (i32, i32) {
    %c0_i32 = arith.constant 0 : i32
    %c0_i32_0 = arith.constant 0 : i32
    return %arg0, %c0_i32 : i32, i32
  }
  func.func @transform_1(%arg0: i32) -> (i32, i32) {
    %c0_i32 = arith.constant 0 : i32
    %c0_i32_0 = arith.constant 0 : i32
    %c0_i32_1 = arith.constant 0 : i32
    return %c0_i32, %c0_i32_0 : i32, i32
  }
  func.func @transform_2(%arg0: i32) -> (i32, i32) {
    %c0_i32 = arith.constant 0 : i32
    %c0_i32_0 = arith.constant 0 : i32
    %c0_i32_1 = arith.constant 0 : i32
    return %c0_i32, %c0_i32_0 : i32, i32
  }
  func.func @transform_3(%arg0: i32) -> (i32, i32) {
    %c0_i32 = arith.constant 0 : i32
    %c0_i32_0 = arith.constant 0 : i32
    %c0_i32_1 = arith.constant 0 : i32
    return %c0_i32, %c0_i32_0 : i32, i32
  }
  func.func @transform_4(%arg0: i32) -> (i32, i32) {
    %c0_i32 = arith.constant 0 : i32
    %c0_i32_0 = arith.constant 0 : i32
    return %arg0, %c0_i32 : i32, i32
  }
}

</mosaic_0001>

<llo_original>
// kernel: _lambda_.7
$region0: #{_lambda_.7}
  #allocation0 [shape = 'u32[]', space=smem, size = 0x4, offset = 0x4, fixed_abs, tag = 'smem constant byte address 0x4 - core index']
  #allocation1 [shape = 'u32[72,128]{1,0:T(1,128)}', space=vmem, size = 0x9000, scoped, tag = 'internal scratch']
  %s0 = inlined_call_operand.vmem [shape: f32[512,8], index: 0, kind: input, shape index: {}]
  %s1 = inlined_call_operand.vmem [shape: f32[8,4], index: 1, kind: input, shape index: {}]
  %s2 = inlined_call_operand.vmem [shape: f32[1,4], index: 2, kind: input, shape index: {}]
  %s3 = inlined_call_operand.vmem [shape: f32[1,4], index: 3, kind: input, shape index: {}]
  %s4 = inlined_call_operand.vmem [shape: f32[512,4], index: 4, kind: output, shape index: {}]
  %s5 = sld [smem:[#allocation0]]
  $region26: #{_lambda_.7} parent=0
    _
  %s7 = ssub.s32 1, %s5
  %s8 = scalar_select 0, %s7, %s5
  // Predicated region
  $region2: #{_lambda_.7} parent=0 // pred_check
    _
  $region3: #{_lambda_.7} parent=0 // pred_check_branch
    %10 = sbr.rel (0) target = $region5
  $region4: #{_lambda_.7} parent=0 // pred_region
    _
  $region5: #{_lambda_.7} parent=0 // pred_fallthru
    _
  // Predicated region
  $region6: #{_lambda_.7} parent=0 // pred_check
    _
  $region7: #{_lambda_.7} parent=0 // pred_check_branch
    %12 = sbr.rel (0) target = $region9
  $region8: #{_lambda_.7} parent=0 // pred_region
    _
  $region9: #{_lambda_.7} parent=0 // pred_fallthru
    _
  // Predicated region
  $region10: #{_lambda_.7} parent=0 // pred_check
    _
  $region11: #{_lambda_.7} parent=0 // pred_check_branch
    %14 = sbr.rel (0) target = $region13
  $region12: #{_lambda_.7} parent=0 // pred_region
    _
  $region13: #{_lambda_.7} parent=0 // pred_fallthru
    _
  // Predicated region
  $region14: #{_lambda_.7} parent=0 // pred_check
    _
  $region15: #{_lambda_.7} parent=0 // pred_check_branch
    %16 = sbr.rel (0) target = $region17
  $region16: #{_lambda_.7} parent=0 // pred_region
    _
  $region17: #{_lambda_.7} parent=0 // pred_fallthru
    _
  %v17 = vld [vmem:[%s0] sm:$0xff]
  %v18 = vld [vmem:[%s0 + $0x8] sm:$0xff]
  %v19 = vld [vmem:[%s0 + $0x10] sm:$0xff]
  %v20 = vld [vmem:[%s0 + $0x18] sm:$0xff]
  %v21 = vld [vmem:[%s0 + $0x20] sm:$0xff]
  %v22 = vld [vmem:[%s0 + $0x28] sm:$0xff]
  %v23 = vld [vmem:[%s0 + $0x30] sm:$0xff]
  %v24 = vld [vmem:[%s0 + $0x38] sm:$0xff]
  %v25 = vld [vmem:[%s0 + $0x40] sm:$0xff]
  %v26 = vld [vmem:[%s0 + $0x48] sm:$0xff]
  %v27 = vld [vmem:[%s0 + $0x50] sm:$0xff]
  %v28 = vld [vmem:[%s0 + $0x58] sm:$0xff]
  %v29 = vld [vmem:[%s0 + $0x60] sm:$0xff]
  %v30 = vld [vmem:[%s0 + $0x68] sm:$0xff]
  %v31 = vld [vmem:[%s0 + $0x70] sm:$0xff]
  %v32 = vld [vmem:[%s0 + $0x78] sm:$0xff]
  %v33 = vld [vmem:[%s0 + $0x80] sm:$0xff]
  %v34 = vld [vmem:[%s0 + $0x88] sm:$0xff]
  %v35 = vld [vmem:[%s0 + $0x90] sm:$0xff]
  %v36 = vld [vmem:[%s0 + $0x98] sm:$0xff]
  %v37 = vld [vmem:[%s0 + $0xa0] sm:$0xff]
  %v38 = vld [vmem:[%s0 + $0xa8] sm:$0xff]
  %v39 = vld [vmem:[%s0 + $0xb0] sm:$0xff]
  %v40 = vld [vmem:[%s0 + $0xb8] sm:$0xff]
  %v41 = vld [vmem:[%s0 + $0xc0] sm:$0xff]
  %v42 = vld [vmem:[%s0 + $0xc8] sm:$0xff]
  %v43 = vld [vmem:[%s0 + $0xd0] sm:$0xff]
  %v44 = vld [vmem:[%s0 + $0xd8] sm:$0xff]
  %v45 = vld [vmem:[%s0 + $0xe0] sm:$0xff]
  %v46 = vld [vmem:[%s0 + $0xe8] sm:$0xff]
  %v47 = vld [vmem:[%s0 + $0xf0] sm:$0xff]
  %v48 = vld [vmem:[%s0 + $0xf8] sm:$0xff]
  %v49 = vld [vmem:[%s0 + $0x100] sm:$0xff]
  %v50 = vld [vmem:[%s0 + $0x108] sm:$0xff]
  %v51 = vld [vmem:[%s0 + $0x110] sm:$0xff]
  %v52 = vld [vmem:[%s0 + $0x118] sm:$0xff]
  %v53 = vld [vmem:[%s0 + $0x120] sm:$0xff]
  %v54 = vld [vmem:[%s0 + $0x128] sm:$0xff]
  %v55 = vld [vmem:[%s0 + $0x130] sm:$0xff]
  %v56 = vld [vmem:[%s0 + $0x138] sm:$0xff]
  %v57 = vld [vmem:[%s0 + $0x140] sm:$0xff]
  %v58 = vld [vmem:[%s0 + $0x148] sm:$0xff]
  %v59 = vld [vmem:[%s0 + $0x150] sm:$0xff]
  %v60 = vld [vmem:[%s0 + $0x158] sm:$0xff]
  %v61 = vld [vmem:[%s0 + $0x160] sm:$0xff]
  %v62 = vld [vmem:[%s0 + $0x168] sm:$0xff]
  %v63 = vld [vmem:[%s0 + $0x170] sm:$0xff]
  %v64 = vld [vmem:[%s0 + $0x178] sm:$0xff]
  %v65 = vld [vmem:[%s0 + $0x180] sm:$0xff]
  %v66 = vld [vmem:[%s0 + $0x188] sm:$0xff]
  %v67 = vld [vmem:[%s0 + $0x190] sm:$0xff]
  %v68 = vld [vmem:[%s0 + $0x198] sm:$0xff]
  %v69 = vld [vmem:[%s0 + $0x1a0] sm:$0xff]
  %v70 = vld [vmem:[%s0 + $0x1a8] sm:$0xff]
  %v71 = vld [vmem:[%s0 + $0x1b0] sm:$0xff]
  %v72 = vld [vmem:[%s0 + $0x1b8] sm:$0xff]
  %v73 = vld [vmem:[%s0 + $0x1c0] sm:$0xff]
  %v74 = vld [vmem:[%s0 + $0x1c8] sm:$0xff]
  %v75 = vld [vmem:[%s0 + $0x1d0] sm:$0xff]
  %v76 = vld [vmem:[%s0 + $0x1d8] sm:$0xff]
  %v77 = vld [vmem:[%s0 + $0x1e0] sm:$0xff]
  %v78 = vld [vmem:[%s0 + $0x1e8] sm:$0xff]
  %v79 = vld [vmem:[%s0 + $0x1f0] sm:$0xff]
  %v80 = vld [vmem:[%s0 + $0x1f8] sm:$0xff]
  %v81 = vld [vmem:[%s1] sm:$0xff]
  %vm82 = vcmask 64512
  %v84 = vsel %vm82, %v17, 0
  %v87 = vsel %vm82, %v18, 0
  %v90 = vsel %vm82, %v19, 0
  %v93 = vsel %vm82, %v20, 0
  %v96 = vsel %vm82, %v21, 0
  %v99 = vsel %vm82, %v22, 0
  %v102 = vsel %vm82, %v23, 0
  %v105 = vsel %vm82, %v24, 0
  %v108 = vsel %vm82, %v25, 0
  %v111 = vsel %vm82, %v26, 0
  %v114 = vsel %vm82, %v27, 0
  %v117 = vsel %vm82, %v28, 0
  %v120 = vsel %vm82, %v29, 0
  %v123 = vsel %vm82, %v30, 0
  %v126 = vsel %vm82, %v31, 0
  %v129 = vsel %vm82, %v32, 0
  %v132 = vsel %vm82, %v33, 0
  %v135 = vsel %vm82, %v34, 0
  %v138 = vsel %vm82, %v35, 0
  %v141 = vsel %vm82, %v36, 0
  %v144 = vsel %vm82, %v37, 0
  %v147 = vsel %vm82, %v38, 0
  %v150 = vsel %vm82, %v39, 0
  %v153 = vsel %vm82, %v40, 0
  %v156 = vsel %vm82, %v41, 0
  %v159 = vsel %vm82, %v42, 0
  %v162 = vsel %vm82, %v43, 0
  %v165 = vsel %vm82, %v44, 0
  %v168 = vsel %vm82, %v45, 0
  %v171 = vsel %vm82, %v46, 0
  %v174 = vsel %vm82, %v47, 0
  %v177 = vsel %vm82, %v48, 0
  %v180 = vsel %vm82, %v49, 0
  %v183 = vsel %vm82, %v50, 0
  %v186 = vsel %vm82, %v51, 0
  %v189 = vsel %vm82, %v52, 0
  %v192 = vsel %vm82, %v53, 0
  %v195 = vsel %vm82, %v54, 0
  %v198 = vsel %vm82, %v55, 0
  %v201 = vsel %vm82, %v56, 0
  %v204 = vsel %vm82, %v57, 0
  %v207 = vsel %vm82, %v58, 0
  %v210 = vsel %vm82, %v59, 0
  %v213 = vsel %vm82, %v60, 0
  %v216 = vsel %vm82, %v61, 0
  %v219 = vsel %vm82, %v62, 0
  %v222 = vsel %vm82, %v63, 0
  %v225 = vsel %vm82, %v64, 0
  %v228 = vsel %vm82, %v65, 0
  %v231 = vsel %vm82, %v66, 0
  %v234 = vsel %vm82, %v67, 0
  %v237 = vsel %vm82, %v68, 0
  %v240 = vsel %vm82, %v69, 0
  %v243 = vsel %vm82, %v70, 0
  %v246 = vsel %vm82, %v71, 0
  %v249 = vsel %vm82, %v72, 0
  %v252 = vsel %vm82, %v73, 0
  %v255 = vsel %vm82, %v74, 0
  %v258 = vsel %vm82, %v75, 0
  %v261 = vsel %vm82, %v76, 0
  %v264 = vsel %vm82, %v77, 0
  %v267 = vsel %vm82, %v78, 0
  %v270 = vsel %vm82, %v79, 0
  %v273 = vsel %vm82, %v80, 0
  %275 = vmatpush.msra.mxu0 0.0
  %276 = vmatpush.msra.mxu0 0.0
  %277 = vmatpush.msra.mxu0 0.0
  %278 = vmatpush.msra.mxu0 0.0
  %279 = vmatpush.msra.mxu0 0.0
  %280 = vmatpush.msra.mxu0 0.0
  %281 = vmatpush.msra.mxu0 0.0
  %282 = vmatpush.msra.mxu0 0.0
  %283 = vmatpush.msra.mxu0 0.0
  %284 = vmatpush.msra.mxu0 0.0
  %285 = vmatpush.msra.mxu0 0.0
  %286 = vmatpush.msra.mxu0 0.0
  %287 = vmatpush.msra.mxu0 0.0
  %288 = vmatpush.msra.mxu0 0.0
  %289 = vmatpush.msra.mxu0 0.0
  %290 = vmatpush.msra.mxu0 %v81
  %291 = vmatmul.f32.gmra.mxu0 %v84
  %v292 = vpop.f32.mrf.mxu0
  %v293 = vadd.f32 0.0, %v292
  %294 = vmatmul.f32.gmra.mxu0 %v87
  %v295 = vpop.f32.mrf.mxu0
  %v296 = vadd.f32 0.0, %v295
  %297 = vmatmul.f32.gmra.mxu0 %v90
  %v298 = vpop.f32.mrf.mxu0
  %v299 = vadd.f32 0.0, %v298
  %300 = vmatmul.f32.gmra.mxu0 %v93
  %v301 = vpop.f32.mrf.mxu0
  %v302 = vadd.f32 0.0, %v301
  %303 = vmatmul.f32.gmra.mxu0 %v96
  %v304 = vpop.f32.mrf.mxu0
  %v305 = vadd.f32 0.0, %v304
  %306 = vmatmul.f32.gmra.mxu0 %v99
  %v307 = vpop.f32.mrf.mxu0
  %v308 = vadd.f32 0.0, %v307
  %309 = vmatmul.f32.gmra.mxu0 %v102
  %v310 = vpop.f32.mrf.mxu0
  %v311 = vadd.f32 0.0, %v310
  %312 = vmatmul.f32.gmra.mxu0 %v105
  %v313 = vpop.f32.mrf.mxu0
  %v314 = vadd.f32 0.0, %v313
  %315 = vmatmul.f32.gmra.mxu0 %v108
  %v316 = vpop.f32.mrf.mxu0
  %v317 = vadd.f32 0.0, %v316
  %318 = vmatmul.f32.gmra.mxu0 %v111
  %v319 = vpop.f32.mrf.mxu0
  %v320 = vadd.f32 0.0, %v319
  %321 = vmatmul.f32.gmra.mxu0 %v114
  %v322 = vpop.f32.mrf.mxu0
  %v323 = vadd.f32 0.0, %v322
  %324 = vmatmul.f32.gmra.mxu0 %v117
  %v325 = vpop.f32.mrf.mxu0
  %v326 = vadd.f32 0.0, %v325
  %327 = vmatmul.f32.gmra.mxu0 %v120
  %v328 = vpop.f32.mrf.mxu0
  %v329 = vadd.f32 0.0, %v328
  %330 = vmatmul.f32.gmra.mxu0 %v123
  %v331 = vpop.f32.mrf.mxu0
  %v332 = vadd.f32 0.0, %v331
  %333 = vmatmul.f32.gmra.mxu0 %v126
  %v334 = vpop.f32.mrf.mxu0
  %v335 = vadd.f32 0.0, %v334
  %336 = vmatmul.f32.gmra.mxu0 %v129
  %v337 = vpop.f32.mrf.mxu0
  %v338 = vadd.f32 0.0, %v337
  %339 = vmatmul.f32.gmra.mxu0 %v132
  %v340 = vpop.f32.mrf.mxu0
  %v341 = vadd.f32 0.0, %v340
  %342 = vmatmul.f32.gmra.mxu0 %v135
  %v343 = vpop.f32.mrf.mxu0
  %v344 = vadd.f32 0.0, %v343
  %345 = vmatmul.f32.gmra.mxu0 %v138
  %v346 = vpop.f32.mrf.mxu0
  %v347 = vadd.f32 0.0, %v346
  %348 = vmatmul.f32.gmra.mxu0 %v141
  %v349 = vpop.f32.mrf.mxu0
  %v350 = vadd.f32 0.0, %v349
  %351 = vmatmul.f32.gmra.mxu0 %v144
  %v352 = vpop.f32.mrf.mxu0
  %v353 = vadd.f32 0.0, %v352
  %354 = vmatmul.f32.gmra.mxu0 %v147
  %v355 = vpop.f32.mrf.mxu0
  %v356 = vadd.f32 0.0, %v355
  %357 = vmatmul.f32.gmra.mxu0 %v150
  %v358 = vpop.f32.mrf.mxu0
  %v359 = vadd.f32 0.0, %v358
  %360 = vmatmul.f32.gmra.mxu0 %v153
  %v361 = vpop.f32.mrf.mxu0
  %v362 = vadd.f32 0.0, %v361
  %363 = vmatmul.f32.gmra.mxu0 %v156
  %v364 = vpop.f32.mrf.mxu0
  %v365 = vadd.f32 0.0, %v364
  %366 = vmatmul.f32.gmra.mxu0 %v159
  %v367 = vpop.f32.mrf.mxu0
  %v368 = vadd.f32 0.0, %v367
  %369 = vmatmul.f32.gmra.mxu0 %v162
  %v370 = vpop.f32.mrf.mxu0
  %v371 = vadd.f32 0.0, %v370
  %372 = vmatmul.f32.gmra.mxu0 %v165
  %v373 = vpop.f32.mrf.mxu0
  %v374 = vadd.f32 0.0, %v373
  %375 = vmatmul.f32.gmra.mxu0 %v168
  %v376 = vpop.f32.mrf.mxu0
  %v377 = vadd.f32 0.0, %v376
  %378 = vmatmul.f32.gmra.mxu0 %v171
  %v379 = vpop.f32.mrf.mxu0
  %v380 = vadd.f32 0.0, %v379
  %381 = vmatmul.f32.gmra.mxu0 %v174
  %v382 = vpop.f32.mrf.mxu0
  %v383 = vadd.f32 0.0, %v382
  %384 = vmatmul.f32.gmra.mxu0 %v177
  %v385 = vpop.f32.mrf.mxu0
  %v386 = vadd.f32 0.0, %v385
  %387 = vmatmul.f32.gmra.mxu0 %v180
  %v388 = vpop.f32.mrf.mxu0
  %v389 = vadd.f32 0.0, %v388
  %390 = vmatmul.f32.gmra.mxu0 %v183
  %v391 = vpop.f32.mrf.mxu0
  %v392 = vadd.f32 0.0, %v391
  %393 = vmatmul.f32.gmra.mxu0 %v186
  %v394 = vpop.f32.mrf.mxu0
  %v395 = vadd.f32 0.0, %v394
  %396 = vmatmul.f32.gmra.mxu0 %v189
  %v397 = vpop.f32.mrf.mxu0
  %v398 = vadd.f32 0.0, %v397
  %399 = vmatmul.f32.gmra.mxu0 %v192
  %v400 = vpop.f32.mrf.mxu0
  %v401 = vadd.f32 0.0, %v400
  %402 = vmatmul.f32.gmra.mxu0 %v195
  %v403 = vpop.f32.mrf.mxu0
  %v404 = vadd.f32 0.0, %v403
  %405 = vmatmul.f32.gmra.mxu0 %v198
  %v406 = vpop.f32.mrf.mxu0
  %v407 = vadd.f32 0.0, %v406
  %408 = vmatmul.f32.gmra.mxu0 %v201
  %v409 = vpop.f32.mrf.mxu0
  %v410 = vadd.f32 0.0, %v409
  %411 = vmatmul.f32.gmra.mxu0 %v204
  %v412 = vpop.f32.mrf.mxu0
  %v413 = vadd.f32 0.0, %v412
  %414 = vmatmul.f32.gmra.mxu0 %v207
  %v415 = vpop.f32.mrf.mxu0
  %v416 = vadd.f32 0.0, %v415
  %417 = vmatmul.f32.gmra.mxu0 %v210
  %v418 = vpop.f32.mrf.mxu0
  %v419 = vadd.f32 0.0, %v418
  %420 = vmatmul.f32.gmra.mxu0 %v213
  %v421 = vpop.f32.mrf.mxu0
  %v422 = vadd.f32 0.0, %v421
  %423 = vmatmul.f32.gmra.mxu0 %v216
  %v424 = vpop.f32.mrf.mxu0
  %v425 = vadd.f32 0.0, %v424
  %426 = vmatmul.f32.gmra.mxu0 %v219
  %v427 = vpop.f32.mrf.mxu0
  %v428 = vadd.f32 0.0, %v427
  %429 = vmatmul.f32.gmra.mxu0 %v222
  %v430 = vpop.f32.mrf.mxu0
  %v431 = vadd.f32 0.0, %v430
  %432 = vmatmul.f32.gmra.mxu0 %v225
  %v433 = vpop.f32.mrf.mxu0
  %v434 = vadd.f32 0.0, %v433
  %435 = vmatmul.f32.gmra.mxu0 %v228
  %v436 = vpop.f32.mrf.mxu0
  %v437 = vadd.f32 0.0, %v436
  %438 = vmatmul.f32.gmra.mxu0 %v231
  %v439 = vpop.f32.mrf.mxu0
  %v440 = vadd.f32 0.0, %v439
  %441 = vmatmul.f32.gmra.mxu0 %v234
  %v442 = vpop.f32.mrf.mxu0
  %v443 = vadd.f32 0.0, %v442
  %444 = vmatmul.f32.gmra.mxu0 %v237
  %v445 = vpop.f32.mrf.mxu0
  %v446 = vadd.f32 0.0, %v445
  %447 = vmatmul.f32.gmra.mxu0 %v240
  %v448 = vpop.f32.mrf.mxu0
  %v449 = vadd.f32 0.0, %v448
  %450 = vmatmul.f32.gmra.mxu0 %v243
  %v451 = vpop.f32.mrf.mxu0
  %v452 = vadd.f32 0.0, %v451
  %453 = vmatmul.f32.gmra.mxu0 %v246
  %v454 = vpop.f32.mrf.mxu0
  %v455 = vadd.f32 0.0, %v454
  %456 = vmatmul.f32.gmra.mxu0 %v249
  %v457 = vpop.f32.mrf.mxu0
  %v458 = vadd.f32 0.0, %v457
  %459 = vmatmul.f32.gmra.mxu0 %v252
  %v460 = vpop.f32.mrf.mxu0
  %v461 = vadd.f32 0.0, %v460
  %462 = vmatmul.f32.gmra.mxu0 %v255
  %v463 = vpop.f32.mrf.mxu0
  %v464 = vadd.f32 0.0, %v463
  %465 = vmatmul.f32.gmra.mxu0 %v258
  %v466 = vpop.f32.mrf.mxu0
  %v467 = vadd.f32 0.0, %v466
  %468 = vmatmul.f32.gmra.mxu0 %v261
  %v469 = vpop.f32.mrf.mxu0
  %v470 = vadd.f32 0.0, %v469
  %471 = vmatmul.f32.gmra.mxu0 %v264
  %v472 = vpop.f32.mrf.mxu0
  %v473 = vadd.f32 0.0, %v472
  %474 = vmatmul.f32.gmra.mxu0 %v267
  %v475 = vpop.f32.mrf.mxu0
  %v476 = vadd.f32 0.0, %v475
  %477 = vmatmul.f32.gmra.mxu0 %v270
  %v478 = vpop.f32.mrf.mxu0
  %v479 = vadd.f32 0.0, %v478
  %480 = vmatmul.f32.gmra.mxu0 %v273
  %v481 = vpop.f32.mrf.mxu0
  %v482 = vadd.f32 0.0, %v481
  %483 = vdwg.mxu0
  %v484 = vld [vmem:[%s2] sm:$0x1]
  %v486 = vperm.slane %v484, 0
  %v488 = vmul.f32 %v293, %v486
  %v489 = vmul.f32 %v296, %v486
  %v490 = vmul.f32 %v299, %v486
  %v491 = vmul.f32 %v302, %v486
  %v492 = vmul.f32 %v305, %v486
  %v493 = vmul.f32 %v308, %v486
  %v494 = vmul.f32 %v311, %v486
  %v495 = vmul.f32 %v314, %v486
  %v496 = vmul.f32 %v317, %v486
  %v497 = vmul.f32 %v320, %v486
  %v498 = vmul.f32 %v323, %v486
  %v499 = vmul.f32 %v326, %v486
  %v500 = vmul.f32 %v329, %v486
  %v501 = vmul.f32 %v332, %v486
  %v502 = vmul.f32 %v335, %v486
  %v503 = vmul.f32 %v338, %v486
  %v504 = vmul.f32 %v341, %v486
  %v505 = vmul.f32 %v344, %v486
  %v506 = vmul.f32 %v347, %v486
  %v507 = vmul.f32 %v350, %v486
  %v508 = vmul.f32 %v353, %v486
  %v509 = vmul.f32 %v356, %v486
  %v510 = vmul.f32 %v359, %v486
  %v511 = vmul.f32 %v362, %v486
  %v512 = vmul.f32 %v365, %v486
  %v513 = vmul.f32 %v368, %v486
  %v514 = vmul.f32 %v371, %v486
  %v515 = vmul.f32 %v374, %v486
  %v516 = vmul.f32 %v377, %v486
  %v517 = vmul.f32 %v380, %v486
  %v518 = vmul.f32 %v383, %v486
  %v519 = vmul.f32 %v386, %v486
  %v520 = vmul.f32 %v389, %v486
  %v521 = vmul.f32 %v392, %v486
  %v522 = vmul.f32 %v395, %v486
  %v523 = vmul.f32 %v398, %v486
  %v524 = vmul.f32 %v401, %v486
  %v525 = vmul.f32 %v404, %v486
  %v526 = vmul.f32 %v407, %v486
  %v527 = vmul.f32 %v410, %v486
  %v528 = vmul.f32 %v413, %v486
  %v529 = vmul.f32 %v416, %v486
  %v530 = vmul.f32 %v419, %v486
  %v531 = vmul.f32 %v422, %v486
  %v532 = vmul.f32 %v425, %v486
  %v533 = vmul.f32 %v428, %v486
  %v534 = vmul.f32 %v431, %v486
  %v535 = vmul.f32 %v434, %v486
  %v536 = vmul.f32 %v437, %v486
  %v537 = vmul.f32 %v440, %v486
  %v538 = vmul.f32 %v443, %v486
  %v539 = vmul.f32 %v446, %v486
  %v540 = vmul.f32 %v449, %v486
  %v541 = vmul.f32 %v452, %v486
  %v542 = vmul.f32 %v455, %v486
  %v543 = vmul.f32 %v458, %v486
  %v544 = vmul.f32 %v461, %v486
  %v545 = vmul.f32 %v464, %v486
  %v546 = vmul.f32 %v467, %v486
  %v547 = vmul.f32 %v470, %v486
  %v548 = vmul.f32 %v473, %v486
  %v549 = vmul.f32 %v476, %v486
  %v550 = vmul.f32 %v479, %v486
  %v551 = vmul.f32 %v482, %v486
  %v552 = vld [vmem:[%s3] sm:$0x1]
  %v554 = vperm.slane %v552, 0
  %v556 = vadd.f32 %v488, %v554
  %v557 = vadd.f32 %v489, %v554
  %v558 = vadd.f32 %v490, %v554
  %v559 = vadd.f32 %v491, %v554
  %v560 = vadd.f32 %v492, %v554
  %v561 = vadd.f32 %v493, %v554
  %v562 = vadd.f32 %v494, %v554
  %v563 = vadd.f32 %v495, %v554
  %v564 = vadd.f32 %v496, %v554
  %v565 = vadd.f32 %v497, %v554
  %v566 = vadd.f32 %v498, %v554
  %v567 = vadd.f32 %v499, %v554
  %v568 = vadd.f32 %v500, %v554
  %v569 = vadd.f32 %v501, %v554
  %v570 = vadd.f32 %v502, %v554
  %v571 = vadd.f32 %v503, %v554
  %v572 = vadd.f32 %v504, %v554
  %v573 = vadd.f32 %v505, %v554
  %v574 = vadd.f32 %v506, %v554
  %v575 = vadd.f32 %v507, %v554
  %v576 = vadd.f32 %v508, %v554
  %v577 = vadd.f32 %v509, %v554
  %v578 = vadd.f32 %v510, %v554
  %v579 = vadd.f32 %v511, %v554
  %v580 = vadd.f32 %v512, %v554
  %v581 = vadd.f32 %v513, %v554
  %v582 = vadd.f32 %v514, %v554
  %v583 = vadd.f32 %v515, %v554
  %v584 = vadd.f32 %v516, %v554
  %v585 = vadd.f32 %v517, %v554
  %v586 = vadd.f32 %v518, %v554
  %v587 = vadd.f32 %v519, %v554
  %v588 = vadd.f32 %v520, %v554
  %v589 = vadd.f32 %v521, %v554
  %v590 = vadd.f32 %v522, %v554
  %v591 = vadd.f32 %v523, %v554
  %v592 = vadd.f32 %v524, %v554
  %v593 = vadd.f32 %v525, %v554
  %v594 = vadd.f32 %v526, %v554
  %v595 = vadd.f32 %v527, %v554
  %v596 = vadd.f32 %v528, %v554
  %v597 = vadd.f32 %v529, %v554
  %v598 = vadd.f32 %v530, %v554
  %v599 = vadd.f32 %v531, %v554
  %v600 = vadd.f32 %v532, %v554
  %v601 = vadd.f32 %v533, %v554
  %v602 = vadd.f32 %v534, %v554
  %v603 = vadd.f32 %v535, %v554
  %v604 = vadd.f32 %v536, %v554
  %v605 = vadd.f32 %v537, %v554
  %v606 = vadd.f32 %v538, %v554
  %v607 = vadd.f32 %v539, %v554
  %v608 = vadd.f32 %v540, %v554
  %v609 = vadd.f32 %v541, %v554
  %v610 = vadd.f32 %v542, %v554
  %v611 = vadd.f32 %v543, %v554
  %v612 = vadd.f32 %v544, %v554
  %v613 = vadd.f32 %v545, %v554
  %v614 = vadd.f32 %v546, %v554
  %v615 = vadd.f32 %v547, %v554
  %v616 = vadd.f32 %v548, %v554
  %v617 = vadd.f32 %v549, %v554
  %v618 = vadd.f32 %v550, %v554
  %v619 = vadd.f32 %v551, %v554
  %v620 = vmax.f32 %v556, 0.0
  %v621 = vmax.f32 %v557, 0.0
  %v622 = vmax.f32 %v558, 0.0
  %v623 = vmax.f32 %v559, 0.0
  %v624 = vmax.f32 %v560, 0.0
  %v625 = vmax.f32 %v561, 0.0
  %v626 = vmax.f32 %v562, 0.0
  %v627 = vmax.f32 %v563, 0.0
  %v628 = vmax.f32 %v564, 0.0
  %v629 = vmax.f32 %v565, 0.0
  %v630 = vmax.f32 %v566, 0.0
  %v631 = vmax.f32 %v567, 0.0
  %v632 = vmax.f32 %v568, 0.0
  %v633 = vmax.f32 %v569, 0.0
  %v634 = vmax.f32 %v570, 0.0
  %v635 = vmax.f32 %v571, 0.0
  %v636 = vmax.f32 %v572, 0.0
  %v637 = vmax.f32 %v573, 0.0
  %v638 = vmax.f32 %v574, 0.0
  %v639 = vmax.f32 %v575, 0.0
  %v640 = vmax.f32 %v576, 0.0
  %v641 = vmax.f32 %v577, 0.0
  %v642 = vmax.f32 %v578, 0.0
  %v643 = vmax.f32 %v579, 0.0
  %v644 = vmax.f32 %v580, 0.0
  %v645 = vmax.f32 %v581, 0.0
  %v646 = vmax.f32 %v582, 0.0
  %v647 = vmax.f32 %v583, 0.0
  %v648 = vmax.f32 %v584, 0.0
  %v649 = vmax.f32 %v585, 0.0
  %v650 = vmax.f32 %v586, 0.0
  %v651 = vmax.f32 %v587, 0.0
  %v652 = vmax.f32 %v588, 0.0
  %v653 = vmax.f32 %v589, 0.0
  %v654 = vmax.f32 %v590, 0.0
  %v655 = vmax.f32 %v591, 0.0
  %v656 = vmax.f32 %v592, 0.0
  %v657 = vmax.f32 %v593, 0.0
  %v658 = vmax.f32 %v594, 0.0
  %v659 = vmax.f32 %v595, 0.0
  %v660 = vmax.f32 %v596, 0.0
  %v661 = vmax.f32 %v597, 0.0
  %v662 = vmax.f32 %v598, 0.0
  %v663 = vmax.f32 %v599, 0.0
  %v664 = vmax.f32 %v600, 0.0
  %v665 = vmax.f32 %v601, 0.0
  %v666 = vmax.f32 %v602, 0.0
  %v667 = vmax.f32 %v603, 0.0
  %v668 = vmax.f32 %v604, 0.0
  %v669 = vmax.f32 %v605, 0.0
  %v670 = vmax.f32 %v606, 0.0
  %v671 = vmax.f32 %v607, 0.0
  %v672 = vmax.f32 %v608, 0.0
  %v673 = vmax.f32 %v609, 0.0
  %v674 = vmax.f32 %v610, 0.0
  %v675 = vmax.f32 %v611, 0.0
  %v676 = vmax.f32 %v612, 0.0
  %v677 = vmax.f32 %v613, 0.0
  %v678 = vmax.f32 %v614, 0.0
  %v679 = vmax.f32 %v615, 0.0
  %v680 = vmax.f32 %v616, 0.0
  %v681 = vmax.f32 %v617, 0.0
  %v682 = vmax.f32 %v618, 0.0
  %v683 = vmax.f32 %v619, 0.0
  %vm684 = vcmask 31744
  %685 = vst.msk [vmem:[%s4] sm:$0xff] %vm684, %v620
  %686 = vst.msk [vmem:[%s4 + $0x8] sm:$0xff] %vm684, %v621
  %687 = vst.msk [vmem:[%s4 + $0x10] sm:$0xff] %vm684, %v622
  %688 = vst.msk [vmem:[%s4 + $0x18] sm:$0xff] %vm684, %v623
  %689 = vst.msk [vmem:[%s4 + $0x20] sm:$0xff] %vm684, %v624
  %690 = vst.msk [vmem:[%s4 + $0x28] sm:$0xff] %vm684, %v625
  %691 = vst.msk [vmem:[%s4 + $0x30] sm:$0xff] %vm684, %v626
  %692 = vst.msk [vmem:[%s4 + $0x38] sm:$0xff] %vm684, %v627
  %693 = vst.msk [vmem:[%s4 + $0x40] sm:$0xff] %vm684, %v628
  %694 = vst.msk [vmem:[%s4 + $0x48] sm:$0xff] %vm684, %v629
  %695 = vst.msk [vmem:[%s4 + $0x50] sm:$0xff] %vm684, %v630
  %696 = vst.msk [vmem:[%s4 + $0x58] sm:$0xff] %vm684, %v631
  %697 = vst.msk [vmem:[%s4 + $0x60] sm:$0xff] %vm684, %v632
  %698 = vst.msk [vmem:[%s4 + $0x68] sm:$0xff] %vm684, %v633
  %699 = vst.msk [vmem:[%s4 + $0x70] sm:$0xff] %vm684, %v634
  %700 = vst.msk [vmem:[%s4 + $0x78] sm:$0xff] %vm684, %v635
  %701 = vst.msk [vmem:[%s4 + $0x80] sm:$0xff] %vm684, %v636
  %702 = vst.msk [vmem:[%s4 + $0x88] sm:$0xff] %vm684, %v637
  %703 = vst.msk [vmem:[%s4 + $0x90] sm:$0xff] %vm684, %v638
  %704 = vst.msk [vmem:[%s4 + $0x98] sm:$0xff] %vm684, %v639
  %705 = vst.msk [vmem:[%s4 + $0xa0] sm:$0xff] %vm684, %v640
  %706 = vst.msk [vmem:[%s4 + $0xa8] sm:$0xff] %vm684, %v641
  %707 = vst.msk [vmem:[%s4 + $0xb0] sm:$0xff] %vm684, %v642
  %708 = vst.msk [vmem:[%s4 + $0xb8] sm:$0xff] %vm684, %v643
  %709 = vst.msk [vmem:[%s4 + $0xc0] sm:$0xff] %vm684, %v644
  %710 = vst.msk [vmem:[%s4 + $0xc8] sm:$0xff] %vm684, %v645
  %711 = vst.msk [vmem:[%s4 + $0xd0] sm:$0xff] %vm684, %v646
  %712 = vst.msk [vmem:[%s4 + $0xd8] sm:$0xff] %vm684, %v647
  %713 = vst.msk [vmem:[%s4 + $0xe0] sm:$0xff] %vm684, %v648
  %714 = vst.msk [vmem:[%s4 + $0xe8] sm:$0xff] %vm684, %v649
  %715 = vst.msk [vmem:[%s4 + $0xf0] sm:$0xff] %vm684, %v650
  %716 = vst.msk [vmem:[%s4 + $0xf8] sm:$0xff] %vm684, %v651
  %717 = vst.msk [vmem:[%s4 + $0x100] sm:$0xff] %vm684, %v652
  %718 = vst.msk [vmem:[%s4 + $0x108] sm:$0xff] %vm684, %v653
  %719 = vst.msk [vmem:[%s4 + $0x110] sm:$0xff] %vm684, %v654
  %720 = vst.msk [vmem:[%s4 + $0x118] sm:$0xff] %vm684, %v655
  %721 = vst.msk [vmem:[%s4 + $0x120] sm:$0xff] %vm684, %v656
  %722 = vst.msk [vmem:[%s4 + $0x128] sm:$0xff] %vm684, %v657
  %723 = vst.msk [vmem:[%s4 + $0x130] sm:$0xff] %vm684, %v658
  %724 = vst.msk [vmem:[%s4 + $0x138] sm:$0xff] %vm684, %v659
  %725 = vst.msk [vmem:[%s4 + $0x140] sm:$0xff] %vm684, %v660
  %726 = vst.msk [vmem:[%s4 + $0x148] sm:$0xff] %vm684, %v661
  %727 = vst.msk [vmem:[%s4 + $0x150] sm:$0xff] %vm684, %v662
  %728 = vst.msk [vmem:[%s4 + $0x158] sm:$0xff] %vm684, %v663
  %729 = vst.msk [vmem:[%s4 + $0x160] sm:$0xff] %vm684, %v664
  %730 = vst.msk [vmem:[%s4 + $0x168] sm:$0xff] %vm684, %v665
  %731 = vst.msk [vmem:[%s4 + $0x170] sm:$0xff] %vm684, %v666
  %732 = vst.msk [vmem:[%s4 + $0x178] sm:$0xff] %vm684, %v667
  %733 = vst.msk [vmem:[%s4 + $0x180] sm:$0xff] %vm684, %v668
  %734 = vst.msk [vmem:[%s4 + $0x188] sm:$0xff] %vm684, %v669
  %735 = vst.msk [vmem:[%s4 + $0x190] sm:$0xff] %vm684, %v670
  %736 = vst.msk [vmem:[%s4 + $0x198] sm:$0xff] %vm684, %v671
  %737 = vst.msk [vmem:[%s4 + $0x1a0] sm:$0xff] %vm684, %v672
  %738 = vst.msk [vmem:[%s4 + $0x1a8] sm:$0xff] %vm684, %v673
  %739 = vst.msk [vmem:[%s4 + $0x1b0] sm:$0xff] %vm684, %v674
  %740 = vst.msk [vmem:[%s4 + $0x1b8] sm:$0xff] %vm684, %v675
  %741 = vst.msk [vmem:[%s4 + $0x1c0] sm:$0xff] %vm684, %v676
  %742 = vst.msk [vmem:[%s4 + $0x1c8] sm:$0xff] %vm684, %v677
  %743 = vst.msk [vmem:[%s4 + $0x1d0] sm:$0xff] %vm684, %v678
  %744 = vst.msk [vmem:[%s4 + $0x1d8] sm:$0xff] %vm684, %v679
  %745 = vst.msk [vmem:[%s4 + $0x1e0] sm:$0xff] %vm684, %v680
  %746 = vst.msk [vmem:[%s4 + $0x1e8] sm:$0xff] %vm684, %v681
  %747 = vst.msk [vmem:[%s4 + $0x1f0] sm:$0xff] %vm684, %v682
  %748 = vst.msk [vmem:[%s4 + $0x1f8] sm:$0xff] %vm684, %v683
  // Predicated region
  $region18: #{_lambda_.7} parent=0 // pred_check
    _
  $region19: #{_lambda_.7} parent=0 // pred_check_branch
    %750 = sbr.rel (0) target = $region21
  $region20: #{_lambda_.7} parent=0 // pred_region
    _
  $region21: #{_lambda_.7} parent=0 // pred_fallthru
    _
  // Predicated region
  $region22: #{_lambda_.7} parent=0 // pred_check
    _
  $region23: #{_lambda_.7} parent=0 // pred_check_branch
    %752 = sbr.rel (0) target = $region25
  $region24: #{_lambda_.7} parent=0 // pred_region
    _
  $region25: #{_lambda_.7} parent=0 // pred_fallthru
    _

// kernel: _lambda_.9
$region0: #{_lambda_.9}
  #allocation0 [shape = 'u32[]', space=smem, size = 0x4, offset = 0x4, fixed_abs, tag = 'smem constant byte address 0x4 - core index']
  #allocation1 [shape = 'u32[72,128]{1,0:T(1,128)}', space=vmem, size = 0x9000, scoped, tag = 'internal scratch']
  %s0 = inlined_call_operand.vmem [shape: f32[128,4], index: 0, kind: input, shape index: {}]
  %s1 = inlined_call_operand.vmem [shape: f32[4,16], index: 1, kind: input, shape index: {}]
  %s2 = inlined_call_operand.vmem [shape: f32[1,16], index: 2, kind: input, shape index: {}]
  %s3 = inlined_call_operand.vmem [shape: f32[1,16], index: 3, kind: input, shape index: {}]
  %s4 = inlined_call_operand.vmem [shape: f32[128,16], index: 4, kind: output, shape index: {}]
  %s5 = sld [smem:[#allocation0]]
  $region26: #{_lambda_.9} parent=0
    _
  %s7 = ssub.s32 1, %s5
  %s8 = scalar_select 0, %s7, %s5
  // Predicated region
  $region2: #{_lambda_.9} parent=0 // pred_check
    _
  $region3: #{_lambda_.9} parent=0 // pred_check_branch
    %10 = sbr.rel (0) target = $region5
  $region4: #{_lambda_.9} parent=0 // pred_region
    _
  $region5: #{_lambda_.9} parent=0 // pred_fallthru
    _
  // Predicated region
  $region6: #{_lambda_.9} parent=0 // pred_check
    _
  $region7: #{_lambda_.9} parent=0 // pred_check_branch
    %12 = sbr.rel (0) target = $region9
  $region8: #{_lambda_.9} parent=0 // pred_region
    _
  $region9: #{_lambda_.9} parent=0 // pred_fallthru
    _
  // Predicated region
  $region10: #{_lambda_.9} parent=0 // pred_check
    _
  $region11: #{_lambda_.9} parent=0 // pred_check_branch
    %14 = sbr.rel (0) target = $region13
  $region12: #{_lambda_.9} parent=0 // pred_region
    _
  $region13: #{_lambda_.9} parent=0 // pred_fallthru
    _
  // Predicated region
  $region14: #{_lambda_.9} parent=0 // pred_check
    _
  $region15: #{_lambda_.9} parent=0 // pred_check_branch
    %16 = sbr.rel (0) target = $region17
  $region16: #{_lambda_.9} parent=0 // pred_region
    _
  $region17: #{_lambda_.9} parent=0 // pred_fallthru
    _
  %v17 = vld [vmem:[%s0] sm:$0xff]
  %v18 = vld [vmem:[%s0 + $0x8] sm:$0xff]
  %v19 = vld [vmem:[%s0 + $0x10] sm:$0xff]
  %v20 = vld [vmem:[%s0 + $0x18] sm:$0xff]
  %v21 = vld [vmem:[%s0 + $0x20] sm:$0xff]
  %v22 = vld [vmem:[%s0 + $0x28] sm:$0xff]
  %v23 = vld [vmem:[%s0 + $0x30] sm:$0xff]
  %v24 = vld [vmem:[%s0 + $0x38] sm:$0xff]
  %v25 = vld [vmem:[%s0 + $0x40] sm:$0xff]
  %v26 = vld [vmem:[%s0 + $0x48] sm:$0xff]
  %v27 = vld [vmem:[%s0 + $0x50] sm:$0xff]
  %v28 = vld [vmem:[%s0 + $0x58] sm:$0xff]
  %v29 = vld [vmem:[%s0 + $0x60] sm:$0xff]
  %v30 = vld [vmem:[%s0 + $0x68] sm:$0xff]
  %v31 = vld [vmem:[%s0 + $0x70] sm:$0xff]
  %v32 = vld [vmem:[%s0 + $0x78] sm:$0xff]
  %v33 = vld [vmem:[%s1] sm:$0xf]
  %vm34 = vcmask 31744
  %v36 = vsel %vm34, %v17, 0
  %v39 = vsel %vm34, %v18, 0
  %v42 = vsel %vm34, %v19, 0
  %v45 = vsel %vm34, %v20, 0
  %v48 = vsel %vm34, %v21, 0
  %v51 = vsel %vm34, %v22, 0
  %v54 = vsel %vm34, %v23, 0
  %v57 = vsel %vm34, %v24, 0
  %v60 = vsel %vm34, %v25, 0
  %v63 = vsel %vm34, %v26, 0
  %v66 = vsel %vm34, %v27, 0
  %v69 = vsel %vm34, %v28, 0
  %v72 = vsel %vm34, %v29, 0
  %v75 = vsel %vm34, %v30, 0
  %v78 = vsel %vm34, %v31, 0
  %v81 = vsel %vm34, %v32, 0
  %vm83 = vcmask 1043456
  %v85 = vsel %vm83, %v33, 0
  %87 = vmatpush.msra.mxu0 0.0
  %88 = vmatpush.msra.mxu0 0.0
  %89 = vmatpush.msra.mxu0 0.0
  %90 = vmatpush.msra.mxu0 0.0
  %91 = vmatpush.msra.mxu0 0.0
  %92 = vmatpush.msra.mxu0 0.0
  %93 = vmatpush.msra.mxu0 0.0
  %94 = vmatpush.msra.mxu0 0.0
  %95 = vmatpush.msra.mxu0 0.0
  %96 = vmatpush.msra.mxu0 0.0
  %97 = vmatpush.msra.mxu0 0.0
  %98 = vmatpush.msra.mxu0 0.0
  %99 = vmatpush.msra.mxu0 0.0
  %100 = vmatpush.msra.mxu0 0.0
  %101 = vmatpush.msra.mxu0 0.0
  %102 = vmatpush.msra.mxu0 %v85
  %103 = vmatmul.f32.gmra.mxu0 %v36
  %v104 = vpop.f32.mrf.mxu0
  %v105 = vadd.f32 0.0, %v104
  %106 = vmatmul.f32.gmra.mxu0 %v39
  %v107 = vpop.f32.mrf.mxu0
  %v108 = vadd.f32 0.0, %v107
  %109 = vmatmul.f32.gmra.mxu0 %v42
  %v110 = vpop.f32.mrf.mxu0
  %v111 = vadd.f32 0.0, %v110
  %112 = vmatmul.f32.gmra.mxu0 %v45
  %v113 = vpop.f32.mrf.mxu0
  %v114 = vadd.f32 0.0, %v113
  %115 = vmatmul.f32.gmra.mxu0 %v48
  %v116 = vpop.f32.mrf.mxu0
  %v117 = vadd.f32 0.0, %v116
  %118 = vmatmul.f32.gmra.mxu0 %v51
  %v119 = vpop.f32.mrf.mxu0
  %v120 = vadd.f32 0.0, %v119
  %121 = vmatmul.f32.gmra.mxu0 %v54
  %v122 = vpop.f32.mrf.mxu0
  %v123 = vadd.f32 0.0, %v122
  %124 = vmatmul.f32.gmra.mxu0 %v57
  %v125 = vpop.f32.mrf.mxu0
  %v126 = vadd.f32 0.0, %v125
  %127 = vmatmul.f32.gmra.mxu0 %v60
  %v128 = vpop.f32.mrf.mxu0
  %v129 = vadd.f32 0.0, %v128
  %130 = vmatmul.f32.gmra.mxu0 %v63
  %v131 = vpop.f32.mrf.mxu0
  %v132 = vadd.f32 0.0, %v131
  %133 = vmatmul.f32.gmra.mxu0 %v66
  %v134 = vpop.f32.mrf.mxu0
  %v135 = vadd.f32 0.0, %v134
  %136 = vmatmul.f32.gmra.mxu0 %v69
  %v137 = vpop.f32.mrf.mxu0
  %v138 = vadd.f32 0.0, %v137
  %139 = vmatmul.f32.gmra.mxu0 %v72
  %v140 = vpop.f32.mrf.mxu0
  %v141 = vadd.f32 0.0, %v140
  %142 = vmatmul.f32.gmra.mxu0 %v75
  %v143 = vpop.f32.mrf.mxu0
  %v144 = vadd.f32 0.0, %v143
  %145 = vmatmul.f32.gmra.mxu0 %v78
  %v146 = vpop.f32.mrf.mxu0
  %v147 = vadd.f32 0.0, %v146
  %148 = vmatmul.f32.gmra.mxu0 %v81
  %v149 = vpop.f32.mrf.mxu0
  %v150 = vadd.f32 0.0, %v149
  %151 = vdwg.mxu0
  %v152 = vld [vmem:[%s2] sm:$0x1]
  %v154 = vperm.slane %v152, 0
  %v156 = vmul.f32 %v105, %v154
  %v157 = vmul.f32 %v108, %v154
  %v158 = vmul.f32 %v111, %v154
  %v159 = vmul.f32 %v114, %v154
  %v160 = vmul.f32 %v117, %v154
  %v161 = vmul.f32 %v120, %v154
  %v162 = vmul.f32 %v123, %v154
  %v163 = vmul.f32 %v126, %v154
  %v164 = vmul.f32 %v129, %v154
  %v165 = vmul.f32 %v132, %v154
  %v166 = vmul.f32 %v135, %v154
  %v167 = vmul.f32 %v138, %v154
  %v168 = vmul.f32 %v141, %v154
  %v169 = vmul.f32 %v144, %v154
  %v170 = vmul.f32 %v147, %v154
  %v171 = vmul.f32 %v150, %v154
  %v172 = vld [vmem:[%s3] sm:$0x1]
  %v174 = vperm.slane %v172, 0
  %v176 = vadd.f32 %v156, %v174
  %v177 = vadd.f32 %v157, %v174
  %v178 = vadd.f32 %v158, %v174
  %v179 = vadd.f32 %v159, %v174
  %v180 = vadd.f32 %v160, %v174
  %v181 = vadd.f32 %v161, %v174
  %v182 = vadd.f32 %v162, %v174
  %v183 = vadd.f32 %v163, %v174
  %v184 = vadd.f32 %v164, %v174
  %v185 = vadd.f32 %v165, %v174
  %v186 = vadd.f32 %v166, %v174
  %v187 = vadd.f32 %v167, %v174
  %v188 = vadd.f32 %v168, %v174
  %v189 = vadd.f32 %v169, %v174
  %v190 = vadd.f32 %v170, %v174
  %v191 = vadd.f32 %v171, %v174
  %vm192 = vcmask 130048
  %193 = vst.msk [vmem:[%s4] sm:$0xff] %vm192, %v176
  %194 = vst.msk [vmem:[%s4 + $0x8] sm:$0xff] %vm192, %v177
  %195 = vst.msk [vmem:[%s4 + $0x10] sm:$0xff] %vm192, %v178
  %196 = vst.msk [vmem:[%s4 + $0x18] sm:$0xff] %vm192, %v179
  %197 = vst.msk [vmem:[%s4 + $0x20] sm:$0xff] %vm192, %v180
  %198 = vst.msk [vmem:[%s4 + $0x28] sm:$0xff] %vm192, %v181
  %199 = vst.msk [vmem:[%s4 + $0x30] sm:$0xff] %vm192, %v182
  %200 = vst.msk [vmem:[%s4 + $0x38] sm:$0xff] %vm192, %v183
  %201 = vst.msk [vmem:[%s4 + $0x40] sm:$0xff] %vm192, %v184
  %202 = vst.msk [vmem:[%s4 + $0x48] sm:$0xff] %vm192, %v185
  %203 = vst.msk [vmem:[%s4 + $0x50] sm:$0xff] %vm192, %v186
  %204 = vst.msk [vmem:[%s4 + $0x58] sm:$0xff] %vm192, %v187
  %205 = vst.msk [vmem:[%s4 + $0x60] sm:$0xff] %vm192, %v188
  %206 = vst.msk [vmem:[%s4 + $0x68] sm:$0xff] %vm192, %v189
  %207 = vst.msk [vmem:[%s4 + $0x70] sm:$0xff] %vm192, %v190
  %208 = vst.msk [vmem:[%s4 + $0x78] sm:$0xff] %vm192, %v191
  // Predicated region
  $region18: #{_lambda_.9} parent=0 // pred_check
    _
  $region19: #{_lambda_.9} parent=0 // pred_check_branch
    %210 = sbr.rel (0) target = $region21
  $region20: #{_lambda_.9} parent=0 // pred_region
    _
  $region21: #{_lambda_.9} parent=0 // pred_fallthru
    _
  // Predicated region
  $region22: #{_lambda_.9} parent=0 // pred_check
    _
  $region23: #{_lambda_.9} parent=0 // pred_check_branch
    %212 = sbr.rel (0) target = $region25
  $region24: #{_lambda_.9} parent=0 // pred_region
    _
  $region25: #{_lambda_.9} parent=0 // pred_fallthru
    _

// kernel: _lambda_.11
$region0: #{_lambda_.11}
  #allocation0 [shape = 'u32[]', space=smem, size = 0x4, offset = 0x4, fixed_abs, tag = 'smem constant byte address 0x4 - core index']
  #allocation1 [shape = 'u32[72,128]{1,0:T(1,128)}', space=vmem, size = 0x9000, scoped, tag = 'internal scratch']
  #allocation2 [shape = 'f32[1,16]{1,0:T(1,128)}', space=vmem, size = 0x200, scoped, tag = 'scratch operand']
  #allocation3 [shape = 'f32[1,16]{1,0:T(1,128)}', space=vmem, size = 0x200, scoped, tag = 'scratch operand']
  %s0 = inlined_call_operand.vmem [shape: f32[2,64,16], index: 0, kind: input, shape index: {}]
  %s1 = inlined_call_operand.vmem [shape: f32[16,1], index: 1, kind: input, shape index: {}]
  %s2 = inlined_call_operand.vmem [shape: f32[1,16], index: 2, kind: input, shape index: {}]
  %s3 = inlined_call_operand.vmem [shape: f32[2,1,16], index: 3, kind: output, shape index: {}]
  %s4 = sld [smem:[#allocation0]]
  $region53: #{_lambda_.11} parent=0
    _
  %s6 = ssub.s32 1, %s4
  %s7 = scalar_select 0, %s6, %s4
  loop: start=0, step=1, limit=4
  $region2: #{_lambda_.11} parent=0 // loop_pre_header
    _
  $region3: #{_lambda_.11} parent=0 // loop_header
    %s9 = sphi 0, %s13
    %p10 = scmp.ge.s32.totalorder %s9, 4
    %s16 = sphi 0, %s28
    %s17 = sphi 0, %s24
    %s18 = sphi 0, %s16
    %s19 = sphi 0, %s17
    %s20 = sphi 0, %s18
    %s21 = sphi 0, %s19
    %s33 = sphi 0, %s35
    %s36 = sphi 0, %s33
    %s37 = sphi 0, %s36
    %s53 = sphi 0, %s37
    %s57 = sphi 0, %s57
    %s59 = sphi 0, %s57
    %s60 = sphi 0, %s59
    %s74 = sphi 0, %s60
    %s78 = sphi 0, %s78
    %s80 = sphi 0, %s78
    %s81 = sphi 0, %s80
    %s95 = sphi 0, %s81
    %s101 = sphi 0, %s103
    %s104 = sphi 0, %s101
    %s105 = sphi 0, %s104
    %s121 = sphi 0, %s105
  $region4: #{_lambda_.11} parent=0 // loop_header_branch
    %12 = sbr.rel (%p10) target = $region8
  $region5: #{_lambda_.11} parent=0 // loop_body
    %s14 = ssub.s32 %s9, 1
    %s15 = ssub.s32 %s9, 2
    %s22 = sadd.s32 1, %s17
    %p23 = scmp.ge.s32.totalorder %s22, 1
    %s24 = scalar_select %p23, 0, %s22
    %s25 = sadd.s32 1, %s16
    %s26 = scalar_select %p23, %s25, %s16
    %p27 = scmp.ge.s32.totalorder %s26, 2
    %s28 = scalar_select %p27, 0, %s26
    %s29 = ssub.s32 %s16, %s28
    %s30 = ssub.s32 %s17, %s24
    %s31 = sor.u32 %s29, %s30
    %p32 = scmp.eq.s32.totalorder %s31, 0
    %s34 = sadd.s32 %s33, 1
    %s35 = scalar_select %p32, %s33, %s34
    %p38 = pneg %p32
    %p39 = scmp.eq.s32.totalorder %s9, 1
    %p40 = por %p38, %p39
    %p41 = scmp.ne.s32.totalorder %s33, %s36
    %p42 = scmp.eq.s32.totalorder %s9, 0
    %p43 = por %p41, %p42
    %p44 = scmp.ne.s32.totalorder %s33, %s36
    %p45 = scmp.eq.s32.totalorder %s14, 1
    %p46 = por %p44, %p45
    %p47 = scmp.ne.s32.totalorder %s36, %s37
    %p48 = scmp.eq.s32.totalorder %s14, 0
    %p49 = por %p47, %p48
    %p50 = scmp.ne.s32.totalorder %s36, %s37
    %p51 = scmp.eq.s32.totalorder %s15, 1
    %p52 = por %p50, %p51
    %p54 = scmp.ne.s32.totalorder %s37, %s53
    %p55 = scmp.eq.s32.totalorder %s15, 0
    %p56 = por %p54, %p55
    %s58 = sadd.s32 %s57, 1
    %p61 = scmp.eq.s32.totalorder %s9, 1
    %p62 = scmp.ne.s32.totalorder %s57, %s59
    %p63 = scmp.eq.s32.totalorder %s9, 0
    %p64 = por %p62, %p63
    %p65 = scmp.ne.s32.totalorder %s57, %s59
    %p66 = scmp.eq.s32.totalorder %s14, 1
    %p67 = por %p65, %p66
    %p68 = scmp.ne.s32.totalorder %s59, %s60
    %p69 = scmp.eq.s32.totalorder %s14, 0
    %p70 = por %p68, %p69
    %p71 = scmp.ne.s32.totalorder %s59, %s60
    %p72 = scmp.eq.s32.totalorder %s15, 1
    %p73 = por %p71, %p72
    %p75 = scmp.ne.s32.totalorder %s60, %s74
    %p76 = scmp.eq.s32.totalorder %s15, 0
    %p77 = por %p75, %p76
    %s79 = sadd.s32 %s78, 1
    %p82 = scmp.eq.s32.totalorder %s9, 1
    %p83 = scmp.ne.s32.totalorder %s78, %s80
    %p84 = scmp.eq.s32.totalorder %s9, 0
    %p85 = por %p83, %p84
    %p86 = scmp.ne.s32.totalorder %s78, %s80
    %p87 = scmp.eq.s32.totalorder %s14, 1
    %p88 = por %p86, %p87
    %p89 = scmp.ne.s32.totalorder %s80, %s81
    %p90 = scmp.eq.s32.totalorder %s14, 0
    %p91 = por %p89, %p90
    %p92 = scmp.ne.s32.totalorder %s80, %s81
    %p93 = scmp.eq.s32.totalorder %s15, 1
    %p94 = por %p92, %p93
    %p96 = scmp.ne.s32.totalorder %s81, %s95
    %p97 = scmp.eq.s32.totalorder %s15, 0
    %p98 = por %p96, %p97
    %s99 = ssub.s32 %s16, %s28
    %p100 = scmp.eq.s32.totalorder %s99, 0
    %s102 = sadd.s32 %s101, 1
    %s103 = scalar_select %p100, %s101, %s102
    %p106 = pneg %p100
    %p107 = scmp.eq.s32.totalorder %s9, 1
    %p108 = por %p106, %p107
    %p109 = scmp.ne.s32.totalorder %s101, %s104
    %p110 = scmp.eq.s32.totalorder %s9, 0
    %p111 = por %p109, %p110
    %p112 = scmp.ne.s32.totalorder %s101, %s104
    %p113 = scmp.eq.s32.totalorder %s14, 1
    %p114 = por %p112, %p113
    %p115 = scmp.ne.s32.totalorder %s104, %s105
    %p116 = scmp.eq.s32.totalorder %s14, 0
    %p117 = por %p115, %p116
    %p118 = scmp.ne.s32.totalorder %s104, %s105
    %p119 = scmp.eq.s32.totalorder %s15, 1
    %p120 = por %p118, %p119
    %p122 = scmp.ne.s32.totalorder %s105, %s121
    %p123 = scmp.eq.s32.totalorder %s15, 0
    %p124 = por %p122, %p123
    %p125 = scmp.le.s32.totalorder 1, %s9
    %p126 = scmp.lt.s32.totalorder %s9, 3
    %p127 = pnand %p125, %p126
    %p128 = pneg %p127
    // Predicated region
    $region9: #{_lambda_.11} parent=5 // pred_check
      _
    $region10: #{_lambda_.11} parent=5 // pred_check_branch
      %130 = sbr.rel (%p127) target = $region12
    $region11: #{_lambda_.11} parent=5 // pred_region
      %s131 = ssub.s32 %s9, 1
      // Predicated region
      $region13: #{_lambda_.11} parent=11 // pred_check
        %p132 = pneg %p70
      $region14: #{_lambda_.11} parent=11 // pred_check_branch
        %134 = sbr.rel (%p132) target = $region16
      $region15: #{_lambda_.11} parent=11 // pred_region
        _
      $region16: #{_lambda_.11} parent=11 // pred_fallthru
        _
      // Predicated region
      $region17: #{_lambda_.11} parent=11 // pred_check
        %p135 = pneg %p91
      $region18: #{_lambda_.11} parent=11 // pred_check_branch
        %137 = sbr.rel (%p135) target = $region20
      $region19: #{_lambda_.11} parent=11 // pred_region
        _
      $region20: #{_lambda_.11} parent=11 // pred_fallthru
        _
    $region12: #{_lambda_.11} parent=5 // pred_fallthru
      _
    %p138 = scmp.lt.s32.totalorder %s9, 2
    // Predicated region
    $region21: #{_lambda_.11} parent=5 // pred_check
      %p139 = pneg %p138
    $region22: #{_lambda_.11} parent=5 // pred_check_branch
      %141 = sbr.rel (%p139) target = $region24
    $region23: #{_lambda_.11} parent=5 // pred_region
      // Predicated region
      $region25: #{_lambda_.11} parent=23 // pred_check
        %p142 = pneg %p43
      $region26: #{_lambda_.11} parent=23 // pred_check_branch
        %144 = sbr.rel (%p142) target = $region28
      $region27: #{_lambda_.11} parent=23 // pred_region
        %s145 = smul.u32 8, %s17
        %p146 = scmp.lt.s32.totalorder %s16, 1
        %s147 = scalar_select %p146, %s16, 1
        %p148 = scmp.lt.s32.totalorder %s145, 7
        %s149 = scalar_select %p148, %s145, 7
        %s150 = smul.addr %s147, 8
        %s151 = sadd.s32 %s149, %s150
        %s152 = smul.addr %s151, 8
        %s153 = scalar_lea.vmem %s0, %s152
        %s154 = smul.u32 8, %s17
      $region28: #{_lambda_.11} parent=23 // pred_fallthru
        _
    $region24: #{_lambda_.11} parent=5 // pred_fallthru
      _
    %p155 = scmp.le.s32.totalorder 1, %s9
    %p156 = scmp.lt.s32.totalorder %s9, 3
    %p157 = pnand %p155, %p156
    %p158 = pneg %p157
    // Predicated region
    $region29: #{_lambda_.11} parent=5 // pred_check
      _
    $region30: #{_lambda_.11} parent=5 // pred_check_branch
      %160 = sbr.rel (%p157) target = $region32
    $region31: #{_lambda_.11} parent=5 // pred_region
      %s161 = ssub.s32 %s9, 1
      %s162 = smul.u32 8, %s19
      %p163 = scmp.lt.s32.totalorder %s18, 1
      %s164 = scalar_select %p163, %s18, 1
      %p165 = scmp.lt.s32.totalorder %s162, 7
      %s166 = scalar_select %p165, %s162, 7
      %s167 = smul.addr %s164, 8
      %s168 = sadd.s32 %s166, %s167
      %s169 = smul.addr %s168, 8
      %s170 = scalar_lea.vmem %s0, %s169
      %p171 = pneg %p49
      %p172 = pneg %p46
      %p173 = pneg %p70
      %p174 = pneg %p67
      %p175 = pneg %p91
      %p176 = pneg %p88
      %p177 = pneg %p117
      %p178 = pneg %p114
      %p179 = scmp.lt.s32.totalorder %s18, 1
      %s180 = scalar_select %p179, %s18, 1
      %s181 = scalar_lea.vmem %s3, %s180
      %s182 = smul.u32 8, %s19
      %p183 = scmp.lt.s32.totalorder %s18, 1
      %s184 = scalar_select %p183, %s18, 1
      %p185 = scmp.lt.s32.totalorder %s182, 7
      %s186 = scalar_select %p185, %s182, 7
      %s187 = smul.addr %s184, 8
      %s188 = sadd.s32 %s186, %s187
      %s189 = smul.addr %s188, 8
      %s190 = scalar_lea.vmem %s0, %s189
      %s191 = smul.u32 8, %s19
      %p192 = scmp.lt.s32.totalorder %s18, 1
      %s193 = scalar_select %p192, %s18, 1
      %s194 = scalar_lea.vmem %s3, %s193
      %p195 = scmp.eq.s32.totalorder %s19, 0
      // Predicated region
      $region33: #{_lambda_.11} parent=31 // pred_check
        %p196 = pneg %p195
      $region34: #{_lambda_.11} parent=31 // pred_check_branch
        %198 = sbr.rel (%p196) target = $region36
      $region35: #{_lambda_.11} parent=31 // pred_region
        %vm199 = vcmask 122880
        %200 = vst.msk [vmem:[#allocation2] sm:$0x1] %vm199, 0.0
        %201 = vst.msk [vmem:[#allocation3] sm:$0x1] %vm199, -inf
      $region36: #{_lambda_.11} parent=31 // pred_fallthru
        _
      %v202 = vld [vmem:[%s190] sm:$0xff]
      %v203 = vld [vmem:[%s190 + $0x8] sm:$0xff]
      %v204 = vld [vmem:[%s190 + $0x10] sm:$0xff]
      %v205 = vld [vmem:[%s190 + $0x18] sm:$0xff]
      %v206 = vld [vmem:[%s190 + $0x20] sm:$0xff]
      %v207 = vld [vmem:[%s190 + $0x28] sm:$0xff]
      %v208 = vld [vmem:[%s190 + $0x30] sm:$0xff]
      %v209 = vld [vmem:[%s190 + $0x38] sm:$0xff]
      %s210 = smul.u32 %s19, 64
      %v211 = vlaneseq
      %v212 = vshrl.u32 %v211, 7
      %v213 = vadd.s32 %v212, 8
      %v214 = vadd.s32 %v212, 16
      %v215 = vadd.s32 %v212, 24
      %v216 = vadd.s32 %v212, 32
      %v217 = vadd.s32 %v212, 40
      %v218 = vadd.s32 %v212, 48
      %v219 = vadd.s32 %v212, 56
      %v220 = vstv %s210
      %v221 = vadd.s32 %v220, %v212
      %v222 = vadd.s32 %v220, %v213
      %v223 = vadd.s32 %v220, %v214
      %v224 = vadd.s32 %v220, %v215
      %v225 = vadd.s32 %v220, %v216
      %v226 = vadd.s32 %v220, %v217
      %v227 = vadd.s32 %v220, %v218
      %v228 = vadd.s32 %v220, %v219
      %vm229 = vcmp.lt.s32.totalorder %v221, 64
      %vm230 = vcmp.lt.s32.totalorder %v222, 64
      %vm231 = vcmp.lt.s32.totalorder %v223, 64
      %vm232 = vcmp.lt.s32.totalorder %v224, 64
      %vm233 = vcmp.lt.s32.totalorder %v225, 64
      %vm234 = vcmp.lt.s32.totalorder %v226, 64
      %vm235 = vcmp.lt.s32.totalorder %v227, 64
      %vm236 = vcmp.lt.s32.totalorder %v228, 64
      %v237 = vld [vmem:[#allocation2] sm:$0x1]
      %v238 = vsel %vm229, 1, 0
      %v239 = vsel %vm230, 1, 0
      %v240 = vsel %vm231, 1, 0
      %v241 = vsel %vm232, 1, 0
      %v242 = vsel %vm233, 1, 0
      %v243 = vsel %vm234, 1, 0
      %v244 = vsel %vm235, 1, 0
      %v245 = vsel %vm236, 1, 0
      %vm246 = vcmp.eq.s32.totalorder %v238, 1
      %vm247 = vcmp.eq.s32.totalorder %v239, 1
      %vm248 = vcmp.eq.s32.totalorder %v240, 1
      %vm249 = vcmp.eq.s32.totalorder %v241, 1
      %vm250 = vcmp.eq.s32.totalorder %v242, 1
      %vm251 = vcmp.eq.s32.totalorder %v243, 1
      %vm252 = vcmp.eq.s32.totalorder %v244, 1
      %vm253 = vcmp.eq.s32.totalorder %v245, 1
      %v254 = vsel %vm246, %v202, 0.0
      %v255 = vsel %vm247, %v203, 0.0
      %v256 = vsel %vm248, %v204, 0.0
      %v257 = vsel %vm249, %v205, 0.0
      %v258 = vsel %vm250, %v206, 0.0
      %v259 = vsel %vm251, %v207, 0.0
      %v260 = vsel %vm252, %v208, 0.0
      %v261 = vsel %vm253, %v209, 0.0
      %vm262 = vcmask 130048
      %v263 = vsel %vm262, %v254, 0.0
      %v264 = vsel %vm262, %v255, 0.0
      %v265 = vadd.f32 %v263, %v264
      %v266 = vsel %vm262, %v256, 0.0
      %v267 = vadd.f32 %v265, %v266
      %v268 = vsel %vm262, %v257, 0.0
      %v269 = vadd.f32 %v267, %v268
      %v270 = vsel %vm262, %v258, 0.0
      %v271 = vadd.f32 %v269, %v270
      %v272 = vsel %vm262, %v259, 0.0
      %v273 = vadd.f32 %v271, %v272
      %v274 = vsel %vm262, %v260, 0.0
      %v275 = vadd.f32 %v273, %v274
      %v276 = vsel %vm262, %v261, 0.0
      %v277 = vadd.f32 %v275, %v276
      %v278 = vrot.slane %v277, 4
      %v279 = vadd.f32 %v277, %v278
      %v280 = vrot.slane %v279, 2
      %v281 = vadd.f32 %v279, %v280
      %v282 = vrot.slane %v281, 1
      %v283 = vadd.f32 %v281, %v282
      %v284 = vadd.f32 %v237, %v283
      %vm285 = vcmask 122880
      %286 = vst.msk [vmem:[#allocation2] sm:$0x1] %vm285, %v284
      %v287 = vld [vmem:[#allocation3] sm:$0x1]
      %v288 = vsel %vm246, %v202, -inf
      %v289 = vsel %vm247, %v203, -inf
      %v290 = vsel %vm248, %v204, -inf
      %v291 = vsel %vm249, %v205, -inf
      %v292 = vsel %vm250, %v206, -inf
      %v293 = vsel %vm251, %v207, -inf
      %v294 = vsel %vm252, %v208, -inf
      %v295 = vsel %vm253, %v209, -inf
      %v296 = vsel %vm262, %v288, -inf
      %v297 = vsel %vm262, %v289, -inf
      %v298 = vsel %vm262, %v290, -inf
      %v299 = vsel %vm262, %v291, -inf
      %v300 = vsel %vm262, %v292, -inf
      %v301 = vmax.f32 %v296, %v300
      %v302 = vsel %vm262, %v293, -inf
      %v303 = vmax.f32 %v297, %v302
      %v304 = vsel %vm262, %v294, -inf
      %v305 = vmax.f32 %v298, %v304
      %v306 = vsel %vm262, %v295, -inf
      %v307 = vmax.f32 %v299, %v306
      %v308 = vmax.f32 %v301, %v303
      %v309 = vmax.f32 %v305, %v307
      %v310 = vmax.f32 %v308, %v309
      %v311 = vrot.slane %v310, 4
      %v312 = vmax.f32 %v310, %v311
      %v313 = vrot.slane %v312, 2
      %v314 = vmax.f32 %v312, %v313
      %v315 = vrot.slane %v314, 1
      %v316 = vmax.f32 %v314, %v315
      %v317 = vmax.f32 %v287, %v316
      %318 = vst.msk [vmem:[#allocation3] sm:$0x1] %vm285, %v317
      // Predicated region
      $region37: #{_lambda_.11} parent=31 // pred_check
        %p319 = pneg %p195
      $region38: #{_lambda_.11} parent=31 // pred_check_branch
        %321 = sbr.rel (%p319) target = $region40
      $region39: #{_lambda_.11} parent=31 // pred_region
        %v322 = vld [vmem:[#allocation2] sm:$0x1]
        %v323 = vmul.f32 %v322, 0.015625
        %v324 = vld [vmem:[#allocation3] sm:$0x1]
        %v325 = vld [vmem:[%s1] sm:$0xff]
        %v326 = vld [vmem:[%s1 + $0x8] sm:$0xff]
        %v328 = vsel %vm262, %v323, 0
        %330 = vmatpush.msra.mxu0 0.0
        %331 = vmatpush.msra.mxu0 0.0
        %332 = vmatpush.msra.mxu0 0.0
        %333 = vmatpush.msra.mxu0 0.0
        %334 = vmatpush.msra.mxu0 0.0
        %335 = vmatpush.msra.mxu0 0.0
        %336 = vmatpush.msra.mxu0 0.0
        %337 = vmatpush.msra.mxu0 0.0
        %338 = vmatpush.msra.mxu0 0.0
        %339 = vmatpush.msra.mxu0 0.0
        %340 = vmatpush.msra.mxu0 0.0
        %341 = vmatpush.msra.mxu0 0.0
        %342 = vmatpush.msra.mxu0 0.0
        %343 = vmatpush.msra.mxu0 0.0
        %344 = vmatpush.msra.mxu0 %v326
        %345 = vmatpush.msra.mxu0 %v325
        %346 = vmatmul.f32.gmra.mxu0 %v328
        %v347 = vpop.f32.mrf.mxu0
        %v348 = vadd.f32 0.0, %v347
        %349 = vdwg.mxu0
        %v350 = vmax.f32 %v348, 0.0
        %v351 = vld [vmem:[%s2] sm:$0x1]
        %v353 = vsel %vm262, %v324, 0
        %355 = vmatpush.msra.mxu0 0.0
        %356 = vmatpush.msra.mxu0 0.0
        %357 = vmatpush.msra.mxu0 0.0
        %358 = vmatpush.msra.mxu0 0.0
        %359 = vmatpush.msra.mxu0 0.0
        %360 = vmatpush.msra.mxu0 0.0
        %361 = vmatpush.msra.mxu0 0.0
        %362 = vmatpush.msra.mxu0 0.0
        %363 = vmatpush.msra.mxu0 0.0
        %364 = vmatpush.msra.mxu0 0.0
        %365 = vmatpush.msra.mxu0 0.0
        %366 = vmatpush.msra.mxu0 0.0
        %367 = vmatpush.msra.mxu0 0.0
        %368 = vmatpush.msra.mxu0 0.0
        %369 = vmatpush.msra.mxu0 %v326
        %370 = vmatpush.msra.mxu0 %v325
        %371 = vmatmul.f32.gmra.mxu0 %v353
        %v372 = vpop.f32.mrf.mxu0
        %v373 = vadd.f32 0.0, %v372
        %374 = vdwg.mxu0
        %v375 = vmax.f32 %v373, 0.0
        %vm376 = vcmask 7168
        %v378 = vsel %vm376, %v375, 0
        %vm380 = vcmask 1040384
        %v382 = vsel %vm380, %v351, 0
        %384 = vmatpush.msra.mxu0 0.0
        %385 = vmatpush.msra.mxu0 0.0
        %386 = vmatpush.msra.mxu0 0.0
        %387 = vmatpush.msra.mxu0 0.0
        %388 = vmatpush.msra.mxu0 0.0
        %389 = vmatpush.msra.mxu0 0.0
        %390 = vmatpush.msra.mxu0 0.0
        %391 = vmatpush.msra.mxu0 0.0
        %392 = vmatpush.msra.mxu0 0.0
        %393 = vmatpush.msra.mxu0 0.0
        %394 = vmatpush.msra.mxu0 0.0
        %395 = vmatpush.msra.mxu0 0.0
        %396 = vmatpush.msra.mxu0 0.0
        %397 = vmatpush.msra.mxu0 0.0
        %398 = vmatpush.msra.mxu0 0.0
        %399 = vmatpush.msra.mxu0 %v382
        %400 = vmatmul.f32.gmra.mxu0 %v378
        %v401 = vpop.f32.mrf.mxu0
        %v402 = vadd.f32 0.0, %v401
        %403 = vdwg.mxu0
        %v405 = vsel %vm376, %v350, 0
        %407 = vmatpush.msra.mxu0 0.0
        %408 = vmatpush.msra.mxu0 0.0
        %409 = vmatpush.msra.mxu0 0.0
        %410 = vmatpush.msra.mxu0 0.0
        %411 = vmatpush.msra.mxu0 0.0
        %412 = vmatpush.msra.mxu0 0.0
        %413 = vmatpush.msra.mxu0 0.0
        %414 = vmatpush.msra.mxu0 0.0
        %415 = vmatpush.msra.mxu0 0.0
        %416 = vmatpush.msra.mxu0 0.0
        %417 = vmatpush.msra.mxu0 0.0
        %418 = vmatpush.msra.mxu0 0.0
        %419 = vmatpush.msra.mxu0 0.0
        %420 = vmatpush.msra.mxu0 0.0
        %421 = vmatpush.msra.mxu0 0.0
        %422 = vmatpush.msra.mxu0 %v382
        %423 = vmatmul.f32.gmra.mxu0 %v405
        %v424 = vpop.f32.mrf.mxu0
        %v425 = vadd.f32 %v402, %v424
        %426 = vdwg.mxu0
        %v427 = vsub.f32 0.0, %v425
        %v428 = vmul.f32 %v427, 1.442695
        %v429 = vpow.pop %v428
        %v430 = vadd.f32 %v429, 1.0
        %v431 = vrcp.pop %v430
        %v432 = vmul.f32 %v430, %v431
        %v433 = vsub.f32 1.0, %v432
        %v434 = vmul.f32 %v431, %v433
        %v435 = vadd.f32 %v431, %v434
        %vm436 = vweird.f32 %v430
        %vm437 = vweird.f32 %v431
        %vm438 = vmor %vm436, %vm437
        %v439 = vsel %vm438, %v431, %v435
        %v440 = vand.u32 2147483647, %v430
        %vm441 = vcmp.eq.f32.partialorder %v440, 8.507059e+37
        %v442 = vand.u32 %v430, 2147483648
        %v443 = vor.u32 1.1754944e-38, %v442
        %v444 = vsel %vm441, %v443, %v439
        %v445 = vmul.f32 1.0, %v444
        %446 = vst.msk [vmem:[%s194] sm:$0x1] %vm285, %v445
      $region40: #{_lambda_.11} parent=31 // pred_fallthru
        _
      %p447 = scmp.lt.s32.totalorder %s18, 1
      %s448 = scalar_select %p447, %s18, 1
      %s449 = scalar_lea.vmem %s3, %s448
      // Predicated region
      $region41: #{_lambda_.11} parent=31 // pred_check
        %p450 = pneg %p114
      $region42: #{_lambda_.11} parent=31 // pred_check_branch
        %452 = sbr.rel (%p450) target = $region44
      $region43: #{_lambda_.11} parent=31 // pred_region
        _
      $region44: #{_lambda_.11} parent=31 // pred_fallthru
        _
    $region32: #{_lambda_.11} parent=5 // pred_fallthru
      _
    %p453 = scmp.le.s32.totalorder 2, %s9
    // Predicated region
    $region45: #{_lambda_.11} parent=5 // pred_check
      %p454 = pneg %p453
    $region46: #{_lambda_.11} parent=5 // pred_check_branch
      %456 = sbr.rel (%p454) target = $region48
    $region47: #{_lambda_.11} parent=5 // pred_region
      %s457 = ssub.s32 %s9, 2
      // Predicated region
      $region49: #{_lambda_.11} parent=47 // pred_check
        %p458 = pneg %p120
      $region50: #{_lambda_.11} parent=47 // pred_check_branch
        %460 = sbr.rel (%p458) target = $region52
      $region51: #{_lambda_.11} parent=47 // pred_region
        %p461 = scmp.lt.s32.totalorder %s20, 1
        %s462 = scalar_select %p461, %s20, 1
        %s463 = scalar_lea.vmem %s3, %s462
      $region52: #{_lambda_.11} parent=47 // pred_fallthru
        _
    $region48: #{_lambda_.11} parent=5 // pred_fallthru
      _
  $region6: #{_lambda_.11} parent=0 // loop_footer
    %s13 = sadd.s32 1, %s9
  $region7: #{_lambda_.11} parent=0 // loop_footer_branch
    %8 = sbr.rel target = $region3
  $region8: #{_lambda_.11} parent=0 // loop_exit
    _

// kernel: _lambda_.12
$region0: #{_lambda_.12}
  #allocation0 [shape = 'u32[]', space=smem, size = 0x4, offset = 0x4, fixed_abs, tag = 'smem constant byte address 0x4 - core index']
  #allocation1 [shape = 'u32[72,128]{1,0:T(1,128)}', space=vmem, size = 0x9000, scoped, tag = 'internal scratch']
  %s0 = inlined_call_operand.vmem [shape: f32[2,64,16], index: 0, kind: input, shape index: {}]
  %s1 = inlined_call_operand.vmem [shape: f32[2,1,16], index: 1, kind: input, shape index: {}]
  %s2 = inlined_call_operand.vmem [shape: f32[2,64,2], index: 2, kind: output, shape index: {}]
  %s3 = sld [smem:[#allocation0]]
  $region41: #{_lambda_.12} parent=0
    _
  %s5 = ssub.s32 1, %s3
  %s6 = scalar_select 0, %s5, %s3
  loop: start=0, step=1, limit=4
  $region2: #{_lambda_.12} parent=0 // loop_pre_header
    _
  $region3: #{_lambda_.12} parent=0 // loop_header
    %s8 = sphi 0, %s12
    %p9 = scmp.ge.s32.totalorder %s8, 4
    %s15 = sphi 0, %s27
    %s16 = sphi 0, %s23
    %s17 = sphi 0, %s15
    %s18 = sphi 0, %s16
    %s19 = sphi 0, %s17
    %s20 = sphi 0, %s18
    %s32 = sphi 0, %s34
    %s35 = sphi 0, %s32
    %s36 = sphi 0, %s35
    %s52 = sphi 0, %s36
    %s58 = sphi 0, %s60
    %s61 = sphi 0, %s58
    %s62 = sphi 0, %s61
    %s78 = sphi 0, %s62
    %s86 = sphi 0, %s88
    %s89 = sphi 0, %s86
    %s90 = sphi 0, %s89
    %s106 = sphi 0, %s90
  $region4: #{_lambda_.12} parent=0 // loop_header_branch
    %11 = sbr.rel (%p9) target = $region8
  $region5: #{_lambda_.12} parent=0 // loop_body
    %s13 = ssub.s32 %s8, 1
    %s14 = ssub.s32 %s8, 2
    %s21 = sadd.s32 1, %s16
    %p22 = scmp.ge.s32.totalorder %s21, 1
    %s23 = scalar_select %p22, 0, %s21
    %s24 = sadd.s32 1, %s15
    %s25 = scalar_select %p22, %s24, %s15
    %p26 = scmp.ge.s32.totalorder %s25, 2
    %s27 = scalar_select %p26, 0, %s25
    %s28 = ssub.s32 %s15, %s27
    %s29 = ssub.s32 %s16, %s23
    %s30 = sor.u32 %s28, %s29
    %p31 = scmp.eq.s32.totalorder %s30, 0
    %s33 = sadd.s32 %s32, 1
    %s34 = scalar_select %p31, %s32, %s33
    %p37 = pneg %p31
    %p38 = scmp.eq.s32.totalorder %s8, 1
    %p39 = por %p37, %p38
    %p40 = scmp.ne.s32.totalorder %s32, %s35
    %p41 = scmp.eq.s32.totalorder %s8, 0
    %p42 = por %p40, %p41
    %p43 = scmp.ne.s32.totalorder %s32, %s35
    %p44 = scmp.eq.s32.totalorder %s13, 1
    %p45 = por %p43, %p44
    %p46 = scmp.ne.s32.totalorder %s35, %s36
    %p47 = scmp.eq.s32.totalorder %s13, 0
    %p48 = por %p46, %p47
    %p49 = scmp.ne.s32.totalorder %s35, %s36
    %p50 = scmp.eq.s32.totalorder %s14, 1
    %p51 = por %p49, %p50
    %p53 = scmp.ne.s32.totalorder %s36, %s52
    %p54 = scmp.eq.s32.totalorder %s14, 0
    %p55 = por %p53, %p54
    %s56 = ssub.s32 %s15, %s27
    %p57 = scmp.eq.s32.totalorder %s56, 0
    %s59 = sadd.s32 %s58, 1
    %s60 = scalar_select %p57, %s58, %s59
    %p63 = pneg %p57
    %p64 = scmp.eq.s32.totalorder %s8, 1
    %p65 = por %p63, %p64
    %p66 = scmp.ne.s32.totalorder %s58, %s61
    %p67 = scmp.eq.s32.totalorder %s8, 0
    %p68 = por %p66, %p67
    %p69 = scmp.ne.s32.totalorder %s58, %s61
    %p70 = scmp.eq.s32.totalorder %s13, 1
    %p71 = por %p69, %p70
    %p72 = scmp.ne.s32.totalorder %s61, %s62
    %p73 = scmp.eq.s32.totalorder %s13, 0
    %p74 = por %p72, %p73
    %p75 = scmp.ne.s32.totalorder %s61, %s62
    %p76 = scmp.eq.s32.totalorder %s14, 1
    %p77 = por %p75, %p76
    %p79 = scmp.ne.s32.totalorder %s62, %s78
    %p80 = scmp.eq.s32.totalorder %s14, 0
    %p81 = por %p79, %p80
    %s82 = ssub.s32 %s15, %s27
    %s83 = ssub.s32 %s16, %s23
    %s84 = sor.u32 %s82, %s83
    %p85 = scmp.eq.s32.totalorder %s84, 0
    %s87 = sadd.s32 %s86, 1
    %s88 = scalar_select %p85, %s86, %s87
    %p91 = pneg %p85
    %p92 = scmp.eq.s32.totalorder %s8, 1
    %p93 = por %p91, %p92
    %p94 = scmp.ne.s32.totalorder %s86, %s89
    %p95 = scmp.eq.s32.totalorder %s8, 0
    %p96 = por %p94, %p95
    %p97 = scmp.ne.s32.totalorder %s86, %s89
    %p98 = scmp.eq.s32.totalorder %s13, 1
    %p99 = por %p97, %p98
    %p100 = scmp.ne.s32.totalorder %s89, %s90
    %p101 = scmp.eq.s32.totalorder %s13, 0
    %p102 = por %p100, %p101
    %p103 = scmp.ne.s32.totalorder %s89, %s90
    %p104 = scmp.eq.s32.totalorder %s14, 1
    %p105 = por %p103, %p104
    %p107 = scmp.ne.s32.totalorder %s90, %s106
    %p108 = scmp.eq.s32.totalorder %s14, 0
    %p109 = por %p107, %p108
    %p110 = scmp.le.s32.totalorder 1, %s8
    %p111 = scmp.lt.s32.totalorder %s8, 3
    %p112 = pnand %p110, %p111
    %p113 = pneg %p112
    // Predicated region
    $region9: #{_lambda_.12} parent=5 // pred_check
      _
    $region10: #{_lambda_.12} parent=5 // pred_check_branch
      %115 = sbr.rel (%p112) target = $region12
    $region11: #{_lambda_.12} parent=5 // pred_region
      %s116 = ssub.s32 %s8, 1
    $region12: #{_lambda_.12} parent=5 // pred_fallthru
      _
    %p117 = scmp.lt.s32.totalorder %s8, 2
    // Predicated region
    $region13: #{_lambda_.12} parent=5 // pred_check
      %p118 = pneg %p117
    $region14: #{_lambda_.12} parent=5 // pred_check_branch
      %120 = sbr.rel (%p118) target = $region16
    $region15: #{_lambda_.12} parent=5 // pred_region
      // Predicated region
      $region17: #{_lambda_.12} parent=15 // pred_check
        %p121 = pneg %p42
      $region18: #{_lambda_.12} parent=15 // pred_check_branch
        %123 = sbr.rel (%p121) target = $region20
      $region19: #{_lambda_.12} parent=15 // pred_region
        %s124 = smul.u32 8, %s16
        %p125 = scmp.lt.s32.totalorder %s15, 1
        %s126 = scalar_select %p125, %s15, 1
        %p127 = scmp.lt.s32.totalorder %s124, 7
        %s128 = scalar_select %p127, %s124, 7
        %s129 = smul.addr %s126, 8
        %s130 = sadd.s32 %s128, %s129
        %s131 = smul.addr %s130, 8
        %s132 = scalar_lea.vmem %s0, %s131
        %s133 = smul.u32 8, %s16
      $region20: #{_lambda_.12} parent=15 // pred_fallthru
        _
      // Predicated region
      $region21: #{_lambda_.12} parent=15 // pred_check
        %p134 = pneg %p68
      $region22: #{_lambda_.12} parent=15 // pred_check_branch
        %136 = sbr.rel (%p134) target = $region24
      $region23: #{_lambda_.12} parent=15 // pred_region
        %p137 = scmp.lt.s32.totalorder %s15, 1
        %s138 = scalar_select %p137, %s15, 1
        %s139 = scalar_lea.vmem %s1, %s138
      $region24: #{_lambda_.12} parent=15 // pred_fallthru
        _
    $region16: #{_lambda_.12} parent=5 // pred_fallthru
      _
    %p140 = scmp.le.s32.totalorder 1, %s8
    %p141 = scmp.lt.s32.totalorder %s8, 3
    %p142 = pnand %p140, %p141
    %p143 = pneg %p142
    // Predicated region
    $region25: #{_lambda_.12} parent=5 // pred_check
      _
    $region26: #{_lambda_.12} parent=5 // pred_check_branch
      %145 = sbr.rel (%p142) target = $region28
    $region27: #{_lambda_.12} parent=5 // pred_region
      %s146 = ssub.s32 %s8, 1
      %s147 = smul.u32 8, %s18
      %p148 = scmp.lt.s32.totalorder %s17, 1
      %s149 = scalar_select %p148, %s17, 1
      %p150 = scmp.lt.s32.totalorder %s147, 7
      %s151 = scalar_select %p150, %s147, 7
      %s152 = smul.addr %s149, 8
      %s153 = sadd.s32 %s151, %s152
      %s154 = smul.addr %s153, 8
      %s155 = scalar_lea.vmem %s0, %s154
      %p156 = pneg %p48
      %p157 = pneg %p45
      %p158 = scmp.lt.s32.totalorder %s17, 1
      %s159 = scalar_select %p158, %s17, 1
      %s160 = scalar_lea.vmem %s1, %s159
      %p161 = pneg %p74
      %p162 = pneg %p71
      %p163 = pneg %p102
      %p164 = pneg %p99
      %s165 = smul.u32 8, %s18
      %p166 = scmp.lt.s32.totalorder %s17, 1
      %s167 = scalar_select %p166, %s17, 1
      %p168 = scmp.lt.s32.totalorder %s165, 7
      %s169 = scalar_select %p168, %s165, 7
      %s170 = smul.addr %s167, 8
      %s171 = sadd.s32 %s169, %s170
      %s172 = smul.addr %s171, 8
      %s173 = scalar_lea.vmem %s2, %s172
      %s174 = smul.u32 8, %s18
      %p175 = scmp.lt.s32.totalorder %s17, 1
      %s176 = scalar_select %p175, %s17, 1
      %p177 = scmp.lt.s32.totalorder %s174, 7
      %s178 = scalar_select %p177, %s174, 7
      %s179 = smul.addr %s176, 8
      %s180 = sadd.s32 %s178, %s179
      %s181 = smul.addr %s180, 8
      %s182 = scalar_lea.vmem %s0, %s181
      %s183 = smul.u32 8, %s18
      %p184 = scmp.lt.s32.totalorder %s17, 1
      %s185 = scalar_select %p184, %s17, 1
      %s186 = scalar_lea.vmem %s1, %s185
      %s187 = smul.u32 8, %s18
      %p188 = scmp.lt.s32.totalorder %s17, 1
      %s189 = scalar_select %p188, %s17, 1
      %p190 = scmp.lt.s32.totalorder %s187, 7
      %s191 = scalar_select %p190, %s187, 7
      %s192 = smul.addr %s189, 8
      %s193 = sadd.s32 %s191, %s192
      %s194 = smul.addr %s193, 8
      %s195 = scalar_lea.vmem %s2, %s194
      %s196 = smul.u32 8, %s18
      %v197 = vld [vmem:[%s182] sm:$0xff]
      %v198 = vld [vmem:[%s182 + $0x8] sm:$0xff]
      %v199 = vld [vmem:[%s182 + $0x10] sm:$0xff]
      %v200 = vld [vmem:[%s182 + $0x18] sm:$0xff]
      %v201 = vld [vmem:[%s182 + $0x20] sm:$0xff]
      %v202 = vld [vmem:[%s182 + $0x28] sm:$0xff]
      %v203 = vld [vmem:[%s182 + $0x30] sm:$0xff]
      %v204 = vld [vmem:[%s182 + $0x38] sm:$0xff]
      %v205 = vld [vmem:[%s186] sm:$0x1]
      %v207 = vperm.slane %v205, 0
      %v209 = vmul.f32 %v197, %v207
      %v210 = vmul.f32 %v198, %v207
      %v211 = vmul.f32 %v199, %v207
      %v212 = vmul.f32 %v200, %v207
      %v213 = vmul.f32 %v201, %v207
      %v214 = vmul.f32 %v202, %v207
      %v215 = vmul.f32 %v203, %v207
      %v216 = vmul.f32 %v204, %v207
      %vm217 = vcmask 130048
      %v218 = vsel %vm217, %v209, 0.0
      %219 = vadd.xlane.f32.xlu0 %v218
      %v220 = vpop.xlane.xlu0 %219
      %v221 = vsel %vm217, %v210, 0.0
      %222 = vadd.xlane.f32.xlu0 %v221
      %v223 = vpop.xlane.xlu0 %222
      %v224 = vsel %vm217, %v211, 0.0
      %225 = vadd.xlane.f32.xlu0 %v224
      %v226 = vpop.xlane.xlu0 %225
      %v227 = vsel %vm217, %v212, 0.0
      %228 = vadd.xlane.f32.xlu0 %v227
      %v229 = vpop.xlane.xlu0 %228
      %v230 = vsel %vm217, %v213, 0.0
      %231 = vadd.xlane.f32.xlu0 %v230
      %v232 = vpop.xlane.xlu0 %231
      %v233 = vsel %vm217, %v214, 0.0
      %234 = vadd.xlane.f32.xlu0 %v233
      %v235 = vpop.xlane.xlu0 %234
      %v236 = vsel %vm217, %v215, 0.0
      %237 = vadd.xlane.f32.xlu0 %v236
      %v238 = vpop.xlane.xlu0 %237
      %v239 = vsel %vm217, %v216, 0.0
      %240 = vadd.xlane.f32.xlu0 %v239
      %v241 = vpop.xlane.xlu0 %240
      %v242 = vrcp.pop 16.0
      %v243 = vmul.f32 16.0, %v242
      %v244 = vsub.f32 1.0, %v243
      %v245 = vmul.f32 %v242, %v244
      %v246 = vadd.f32 %v242, %v245
      %vm247 = vweird.f32 %v242
      %v248 = vsel %vm247, %v242, %v246
      %v249 = vmul.f32 %v220, %v248
      %v250 = vmul.f32 %v223, %v248
      %v251 = vmul.f32 %v226, %v248
      %v252 = vmul.f32 %v229, %v248
      %v253 = vmul.f32 %v232, %v248
      %v254 = vmul.f32 %v235, %v248
      %v255 = vmul.f32 %v238, %v248
      %v256 = vmul.f32 %v241, %v248
      %v257 = vsel %vm217, %v209, -inf
      %258 = vmax.xlane.f32.xlu0 %v257
      %v259 = vpop.xlane.xlu0 %258
      %v260 = vsel %vm217, %v210, -inf
      %261 = vmax.xlane.f32.xlu0 %v260
      %v262 = vpop.xlane.xlu0 %261
      %v263 = vsel %vm217, %v211, -inf
      %264 = vmax.xlane.f32.xlu0 %v263
      %v265 = vpop.xlane.xlu0 %264
      %v266 = vsel %vm217, %v212, -inf
      %267 = vmax.xlane.f32.xlu0 %v266
      %v268 = vpop.xlane.xlu0 %267
      %v269 = vsel %vm217, %v213, -inf
      %270 = vmax.xlane.f32.xlu0 %v269
      %v271 = vpop.xlane.xlu0 %270
      %v272 = vsel %vm217, %v214, -inf
      %273 = vmax.xlane.f32.xlu0 %v272
      %v274 = vpop.xlane.xlu0 %273
      %v275 = vsel %vm217, %v215, -inf
      %276 = vmax.xlane.f32.xlu0 %v275
      %v277 = vpop.xlane.xlu0 %276
      %v278 = vsel %vm217, %v216, -inf
      %279 = vmax.xlane.f32.xlu0 %v278
      %v280 = vpop.xlane.xlu0 %279
      %vm281 = vcmask 7168
      %v282 = vsel %vm281, %v249, %v259
      %v283 = vsel %vm281, %v250, %v262
      %v284 = vsel %vm281, %v251, %v265
      %v285 = vsel %vm281, %v252, %v268
      %v286 = vsel %vm281, %v253, %v271
      %v287 = vsel %vm281, %v254, %v274
      %v288 = vsel %vm281, %v255, %v277
      %v289 = vsel %vm281, %v256, %v280
      %vm290 = vcmask 15360
      %291 = vst.msk [vmem:[%s195] sm:$0xff] %vm290, %v282
      %292 = vst.msk [vmem:[%s195 + $0x8] sm:$0xff] %vm290, %v283
      %293 = vst.msk [vmem:[%s195 + $0x10] sm:$0xff] %vm290, %v284
      %294 = vst.msk [vmem:[%s195 + $0x18] sm:$0xff] %vm290, %v285
      %295 = vst.msk [vmem:[%s195 + $0x20] sm:$0xff] %vm290, %v286
      %296 = vst.msk [vmem:[%s195 + $0x28] sm:$0xff] %vm290, %v287
      %297 = vst.msk [vmem:[%s195 + $0x30] sm:$0xff] %vm290, %v288
      %298 = vst.msk [vmem:[%s195 + $0x38] sm:$0xff] %vm290, %v289
      %s299 = smul.u32 8, %s18
      %p300 = scmp.lt.s32.totalorder %s17, 1
      %s301 = scalar_select %p300, %s17, 1
      %p302 = scmp.lt.s32.totalorder %s299, 7
      %s303 = scalar_select %p302, %s299, 7
      %s304 = smul.addr %s301, 8
      %s305 = sadd.s32 %s303, %s304
      %s306 = smul.addr %s305, 8
      %s307 = scalar_lea.vmem %s2, %s306
      // Predicated region
      $region29: #{_lambda_.12} parent=27 // pred_check
        %p308 = pneg %p99
      $region30: #{_lambda_.12} parent=27 // pred_check_branch
        %310 = sbr.rel (%p308) target = $region32
      $region31: #{_lambda_.12} parent=27 // pred_region
        %s311 = smul.u32 8, %s18
      $region32: #{_lambda_.12} parent=27 // pred_fallthru
        _
    $region28: #{_lambda_.12} parent=5 // pred_fallthru
      _
    %p312 = scmp.le.s32.totalorder 2, %s8
    // Predicated region
    $region33: #{_lambda_.12} parent=5 // pred_check
      %p313 = pneg %p312
    $region34: #{_lambda_.12} parent=5 // pred_check_branch
      %315 = sbr.rel (%p313) target = $region36
    $region35: #{_lambda_.12} parent=5 // pred_region
      %s316 = ssub.s32 %s8, 2
      // Predicated region
      $region37: #{_lambda_.12} parent=35 // pred_check
        %p317 = pneg %p105
      $region38: #{_lambda_.12} parent=35 // pred_check_branch
        %319 = sbr.rel (%p317) target = $region40
      $region39: #{_lambda_.12} parent=35 // pred_region
        %s320 = smul.u32 8, %s20
        %p321 = scmp.lt.s32.totalorder %s19, 1
        %s322 = scalar_select %p321, %s19, 1
        %p323 = scmp.lt.s32.totalorder %s320, 7
        %s324 = scalar_select %p323, %s320, 7
        %s325 = smul.addr %s322, 8
        %s326 = sadd.s32 %s324, %s325
        %s327 = smul.addr %s326, 8
        %s328 = scalar_lea.vmem %s2, %s327
      $region40: #{_lambda_.12} parent=35 // pred_fallthru
        _
    $region36: #{_lambda_.12} parent=5 // pred_fallthru
      _
  $region6: #{_lambda_.12} parent=0 // loop_footer
    %s12 = sadd.s32 1, %s8
  $region7: #{_lambda_.12} parent=0 // loop_footer_branch
    %7 = sbr.rel target = $region3
  $region8: #{_lambda_.12} parent=0 // loop_exit
    _

// kernel: _lambda_.8
$region0: #{_lambda_.8}
  #allocation0 [shape = 'u32[]', space=smem, size = 0x4, offset = 0x4, fixed_abs, tag = 'smem constant byte address 0x4 - core index']
  #allocation1 [shape = 'u32[72,128]{1,0:T(1,128)}', space=vmem, size = 0x9000, scoped, tag = 'internal scratch']
  #allocation2 [shape = 'f32[71,4]{1,0:T(8,128)}', space=vmem, size = 0x9000, scoped, tag = 'scratch operand']
  %s0 = inlined_call_operand.vmem [shape: f32[2,4,81,4], index: 0, kind: input, shape index: {}]
  %s1 = inlined_call_operand.vmem [shape: f32[9,4,4], index: 1, kind: input, shape index: {}]
  %s2 = inlined_call_operand.vmem [shape: f32[1,4], index: 2, kind: input, shape index: {}]
  %s3 = inlined_call_operand.vmem [shape: f32[1,4], index: 3, kind: input, shape index: {}]
  %s4 = inlined_call_operand.vmem [shape: f32[2,71,4], index: 4, kind: output, shape index: {}]
  %s5 = sld [smem:[#allocation0]]
  $region49: #{_lambda_.8} parent=0
    _
  %s7 = ssub.s32 1, %s5
  %s8 = scalar_select 0, %s7, %s5
  loop: start=0, step=1, limit=4
  $region2: #{_lambda_.8} parent=0 // loop_pre_header
    _
  $region3: #{_lambda_.8} parent=0 // loop_header
    %s10 = sphi 0, %s14
    %p11 = scmp.ge.s32.totalorder %s10, 4
    %s20 = sphi 0, %s22
    %s23 = sphi 0, %s20
    %s24 = sphi 0, %s23
    %s40 = sphi 0, %s24
    %s44 = sphi 0, %s44
    %s46 = sphi 0, %s44
    %s47 = sphi 0, %s46
    %s61 = sphi 0, %s47
    %s65 = sphi 0, %s65
    %s67 = sphi 0, %s65
    %s68 = sphi 0, %s67
    %s82 = sphi 0, %s68
    %s86 = sphi 0, %s86
    %s88 = sphi 0, %s86
    %s89 = sphi 0, %s88
    %s103 = sphi 0, %s89
    %s109 = sphi 0, %s111
    %s112 = sphi 0, %s109
    %s113 = sphi 0, %s112
    %s129 = sphi 0, %s113
  $region4: #{_lambda_.8} parent=0 // loop_header_branch
    %13 = sbr.rel (%p11) target = $region8
  $region5: #{_lambda_.8} parent=0 // loop_body
    %s15 = ssub.s32 %s10, 1
    %s16 = ssub.s32 %s10, 2
    %s17 = sadd.s32 %s10, 1
    %s18 = ssub.s32 %s10, %s17
    %p19 = scmp.eq.s32.totalorder %s18, 0
    %s21 = sadd.s32 %s20, 1
    %s22 = scalar_select %p19, %s20, %s21
    %p25 = pneg %p19
    %p26 = scmp.eq.s32.totalorder %s10, 1
    %p27 = por %p25, %p26
    %p28 = scmp.ne.s32.totalorder %s20, %s23
    %p29 = scmp.eq.s32.totalorder %s10, 0
    %p30 = por %p28, %p29
    %p31 = scmp.ne.s32.totalorder %s20, %s23
    %p32 = scmp.eq.s32.totalorder %s15, 1
    %p33 = por %p31, %p32
    %p34 = scmp.ne.s32.totalorder %s23, %s24
    %p35 = scmp.eq.s32.totalorder %s15, 0
    %p36 = por %p34, %p35
    %p37 = scmp.ne.s32.totalorder %s23, %s24
    %p38 = scmp.eq.s32.totalorder %s16, 1
    %p39 = por %p37, %p38
    %p41 = scmp.ne.s32.totalorder %s24, %s40
    %p42 = scmp.eq.s32.totalorder %s16, 0
    %p43 = por %p41, %p42
    %s45 = sadd.s32 %s44, 1
    %p48 = scmp.eq.s32.totalorder %s10, 1
    %p49 = scmp.ne.s32.totalorder %s44, %s46
    %p50 = scmp.eq.s32.totalorder %s10, 0
    %p51 = por %p49, %p50
    %p52 = scmp.ne.s32.totalorder %s44, %s46
    %p53 = scmp.eq.s32.totalorder %s15, 1
    %p54 = por %p52, %p53
    %p55 = scmp.ne.s32.totalorder %s46, %s47
    %p56 = scmp.eq.s32.totalorder %s15, 0
    %p57 = por %p55, %p56
    %p58 = scmp.ne.s32.totalorder %s46, %s47
    %p59 = scmp.eq.s32.totalorder %s16, 1
    %p60 = por %p58, %p59
    %p62 = scmp.ne.s32.totalorder %s47, %s61
    %p63 = scmp.eq.s32.totalorder %s16, 0
    %p64 = por %p62, %p63
    %s66 = sadd.s32 %s65, 1
    %p69 = scmp.eq.s32.totalorder %s10, 1
    %p70 = scmp.ne.s32.totalorder %s65, %s67
    %p71 = scmp.eq.s32.totalorder %s10, 0
    %p72 = por %p70, %p71
    %p73 = scmp.ne.s32.totalorder %s65, %s67
    %p74 = scmp.eq.s32.totalorder %s15, 1
    %p75 = por %p73, %p74
    %p76 = scmp.ne.s32.totalorder %s67, %s68
    %p77 = scmp.eq.s32.totalorder %s15, 0
    %p78 = por %p76, %p77
    %p79 = scmp.ne.s32.totalorder %s67, %s68
    %p80 = scmp.eq.s32.totalorder %s16, 1
    %p81 = por %p79, %p80
    %p83 = scmp.ne.s32.totalorder %s68, %s82
    %p84 = scmp.eq.s32.totalorder %s16, 0
    %p85 = por %p83, %p84
    %s87 = sadd.s32 %s86, 1
    %p90 = scmp.eq.s32.totalorder %s10, 1
    %p91 = scmp.ne.s32.totalorder %s86, %s88
    %p92 = scmp.eq.s32.totalorder %s10, 0
    %p93 = por %p91, %p92
    %p94 = scmp.ne.s32.totalorder %s86, %s88
    %p95 = scmp.eq.s32.totalorder %s15, 1
    %p96 = por %p94, %p95
    %p97 = scmp.ne.s32.totalorder %s88, %s89
    %p98 = scmp.eq.s32.totalorder %s15, 0
    %p99 = por %p97, %p98
    %p100 = scmp.ne.s32.totalorder %s88, %s89
    %p101 = scmp.eq.s32.totalorder %s16, 1
    %p102 = por %p100, %p101
    %p104 = scmp.ne.s32.totalorder %s89, %s103
    %p105 = scmp.eq.s32.totalorder %s16, 0
    %p106 = por %p104, %p105
    %s107 = ssub.s32 %s10, %s17
    %p108 = scmp.eq.s32.totalorder %s107, 0
    %s110 = sadd.s32 %s109, 1
    %s111 = scalar_select %p108, %s109, %s110
    %p114 = pneg %p108
    %p115 = scmp.eq.s32.totalorder %s10, 1
    %p116 = por %p114, %p115
    %p117 = scmp.ne.s32.totalorder %s109, %s112
    %p118 = scmp.eq.s32.totalorder %s10, 0
    %p119 = por %p117, %p118
    %p120 = scmp.ne.s32.totalorder %s109, %s112
    %p121 = scmp.eq.s32.totalorder %s15, 1
    %p122 = por %p120, %p121
    %p123 = scmp.ne.s32.totalorder %s112, %s113
    %p124 = scmp.eq.s32.totalorder %s15, 0
    %p125 = por %p123, %p124
    %p126 = scmp.ne.s32.totalorder %s112, %s113
    %p127 = scmp.eq.s32.totalorder %s16, 1
    %p128 = por %p126, %p127
    %p130 = scmp.ne.s32.totalorder %s113, %s129
    %p131 = scmp.eq.s32.totalorder %s16, 0
    %p132 = por %p130, %p131
    %p133 = scmp.le.s32.totalorder 1, %s10
    %p134 = scmp.lt.s32.totalorder %s10, 3
    %p135 = pnand %p133, %p134
    %p136 = pneg %p135
    // Predicated region
    $region9: #{_lambda_.8} parent=5 // pred_check
      _
    $region10: #{_lambda_.8} parent=5 // pred_check_branch
      %138 = sbr.rel (%p135) target = $region12
    $region11: #{_lambda_.8} parent=5 // pred_region
      %s139 = ssub.s32 %s10, 1
      // Predicated region
      $region13: #{_lambda_.8} parent=11 // pred_check
        %p140 = pneg %p57
      $region14: #{_lambda_.8} parent=11 // pred_check_branch
        %142 = sbr.rel (%p140) target = $region16
      $region15: #{_lambda_.8} parent=11 // pred_region
        _
      $region16: #{_lambda_.8} parent=11 // pred_fallthru
        _
      // Predicated region
      $region17: #{_lambda_.8} parent=11 // pred_check
        %p143 = pneg %p78
      $region18: #{_lambda_.8} parent=11 // pred_check_branch
        %145 = sbr.rel (%p143) target = $region20
      $region19: #{_lambda_.8} parent=11 // pred_region
        _
      $region20: #{_lambda_.8} parent=11 // pred_fallthru
        _
      // Predicated region
      $region21: #{_lambda_.8} parent=11 // pred_check
        %p146 = pneg %p99
      $region22: #{_lambda_.8} parent=11 // pred_check_branch
        %148 = sbr.rel (%p146) target = $region24
      $region23: #{_lambda_.8} parent=11 // pred_region
        _
      $region24: #{_lambda_.8} parent=11 // pred_fallthru
        _
    $region12: #{_lambda_.8} parent=5 // pred_fallthru
      _
    %p149 = scmp.lt.s32.totalorder %s10, 2
    // Predicated region
    $region25: #{_lambda_.8} parent=5 // pred_check
      %p150 = pneg %p149
    $region26: #{_lambda_.8} parent=5 // pred_check_branch
      %152 = sbr.rel (%p150) target = $region28
    $region27: #{_lambda_.8} parent=5 // pred_region
      // Predicated region
      $region29: #{_lambda_.8} parent=27 // pred_check
        %p153 = pneg %p30
      $region30: #{_lambda_.8} parent=27 // pred_check_branch
        %155 = sbr.rel (%p153) target = $region32
      $region31: #{_lambda_.8} parent=27 // pred_region
        %p156 = scmp.lt.s32.totalorder %s10, 1
        %s157 = scalar_select %p156, %s10, 1
        %s158 = smul.addr %s157, 44
        %s159 = smul.addr %s158, 8
        %s160 = scalar_lea.vmem %s0, %s159
      $region32: #{_lambda_.8} parent=27 // pred_fallthru
        _
    $region28: #{_lambda_.8} parent=5 // pred_fallthru
      _
    %p161 = scmp.le.s32.totalorder 1, %s10
    %p162 = scmp.lt.s32.totalorder %s10, 3
    %p163 = pnand %p161, %p162
    %p164 = pneg %p163
    // Predicated region
    $region33: #{_lambda_.8} parent=5 // pred_check
      _
    $region34: #{_lambda_.8} parent=5 // pred_check_branch
      %166 = sbr.rel (%p163) target = $region36
    $region35: #{_lambda_.8} parent=5 // pred_region
      %s167 = ssub.s32 %s10, 1
      %p168 = scmp.lt.s32.totalorder %s15, 1
      %s169 = scalar_select %p168, %s15, 1
      %s170 = smul.addr %s169, 44
      %s171 = smul.addr %s170, 8
      %s172 = scalar_lea.vmem %s0, %s171
      %p173 = pneg %p36
      %p174 = pneg %p33
      %p175 = pneg %p57
      %p176 = pneg %p54
      %p177 = pneg %p78
      %p178 = pneg %p75
      %p179 = pneg %p99
      %p180 = pneg %p96
      %p181 = pneg %p125
      %p182 = pneg %p122
      %p183 = scmp.lt.s32.totalorder %s15, 1
      %s184 = scalar_select %p183, %s15, 1
      %s185 = smul.addr %s184, 9
      %s186 = smul.addr %s185, 8
      %s187 = scalar_lea.vmem %s4, %s186
      %p188 = scmp.lt.s32.totalorder %s15, 1
      %s189 = scalar_select %p188, %s15, 1
      %s190 = smul.addr %s189, 44
      %s191 = smul.addr %s190, 8
      %s192 = scalar_lea.vmem %s0, %s191
      %p193 = scmp.lt.s32.totalorder %s15, 1
      %s194 = scalar_select %p193, %s15, 1
      %s195 = smul.addr %s194, 9
      %s196 = smul.addr %s195, 8
      %s197 = scalar_lea.vmem %s4, %s196
      %vm198 = vcmask 31744
      %199 = vst.msk [vmem:[#allocation2] sm:$0xff] %vm198, 0.0
      %200 = vst.msk [vmem:[#allocation2 + $0x8] sm:$0xff] %vm198, 0.0
      %201 = vst.msk [vmem:[#allocation2 + $0x10] sm:$0xff] %vm198, 0.0
      %202 = vst.msk [vmem:[#allocation2 + $0x18] sm:$0xff] %vm198, 0.0
      %203 = vst.msk [vmem:[#allocation2 + $0x20] sm:$0xff] %vm198, 0.0
      %204 = vst.msk [vmem:[#allocation2 + $0x28] sm:$0xff] %vm198, 0.0
      %205 = vst.msk [vmem:[#allocation2 + $0x30] sm:$0xff] %vm198, 0.0
      %206 = vst.msk [vmem:[#allocation2 + $0x38] sm:$0xff] %vm198, 0.0
      %vm207 = vcmask 30720
      %208 = vst.msk [vmem:[#allocation2 + $0x40] sm:$0x7f] %vm207, 0.0
      %v209 = vld [vmem:[%s192] sm:$0xff]
      %v210 = vld [vmem:[%s192 + $0x8] sm:$0xff]
      %v211 = vld [vmem:[%s192 + $0x10] sm:$0xff]
      %v212 = vld [vmem:[%s192 + $0x18] sm:$0xff]
      %v213 = vld [vmem:[%s192 + $0x20] sm:$0xff]
      %v214 = vld [vmem:[%s192 + $0x28] sm:$0xff]
      %v215 = vld [vmem:[%s192 + $0x30] sm:$0xff]
      %v216 = vld [vmem:[%s192 + $0x38] sm:$0xff]
      %v217 = vld [vmem:[%s192 + $0x40] sm:$0x7f]
      %v218 = vld [vmem:[#allocation2] sm:$0xff]
      %v219 = vld [vmem:[#allocation2 + $0x8] sm:$0xff]
      %v220 = vld [vmem:[#allocation2 + $0x10] sm:$0xff]
      %v221 = vld [vmem:[#allocation2 + $0x18] sm:$0xff]
      %v222 = vld [vmem:[#allocation2 + $0x20] sm:$0xff]
      %v223 = vld [vmem:[#allocation2 + $0x28] sm:$0xff]
      %v224 = vld [vmem:[#allocation2 + $0x30] sm:$0xff]
      %v225 = vld [vmem:[#allocation2 + $0x38] sm:$0xff]
      %v226 = vld [vmem:[#allocation2 + $0x40] sm:$0x7f]
      %v227 = vld [vmem:[%s1] sm:$0xf]
      %v229 = vsel %vm198, %v209, 0
      %v232 = vsel %vm198, %v210, 0
      %v235 = vsel %vm198, %v211, 0
      %v238 = vsel %vm198, %v212, 0
      %v241 = vsel %vm198, %v213, 0
      %v244 = vsel %vm198, %v214, 0
      %v247 = vsel %vm198, %v215, 0
      %v250 = vsel %vm198, %v216, 0
      %v253 = vsel %vm198, %v217, 0
      %vm255 = vcmask 1043456
      %v257 = vsel %vm255, %v227, 0
      %259 = vmatpush.msra.mxu0 0.0
      %260 = vmatpush.msra.mxu0 0.0
      %261 = vmatpush.msra.mxu0 0.0
      %262 = vmatpush.msra.mxu0 0.0
      %263 = vmatpush.msra.mxu0 0.0
      %264 = vmatpush.msra.mxu0 0.0
      %265 = vmatpush.msra.mxu0 0.0
      %266 = vmatpush.msra.mxu0 0.0
      %267 = vmatpush.msra.mxu0 0.0
      %268 = vmatpush.msra.mxu0 0.0
      %269 = vmatpush.msra.mxu0 0.0
      %270 = vmatpush.msra.mxu0 0.0
      %271 = vmatpush.msra.mxu0 0.0
      %272 = vmatpush.msra.mxu0 0.0
      %273 = vmatpush.msra.mxu0 0.0
      %274 = vmatpush.msra.mxu0 %v257
      %275 = vmatmul.f32.gmra.mxu0 %v229
      %v276 = vpop.f32.mrf.mxu0
      %v277 = vadd.f32 0.0, %v276
      %278 = vmatmul.f32.gmra.mxu0 %v232
      %v279 = vpop.f32.mrf.mxu0
      %v280 = vadd.f32 0.0, %v279
      %281 = vmatmul.f32.gmra.mxu0 %v235
      %v282 = vpop.f32.mrf.mxu0
      %v283 = vadd.f32 0.0, %v282
      %284 = vmatmul.f32.gmra.mxu0 %v238
      %v285 = vpop.f32.mrf.mxu0
      %v286 = vadd.f32 0.0, %v285
      %287 = vmatmul.f32.gmra.mxu0 %v241
      %v288 = vpop.f32.mrf.mxu0
      %v289 = vadd.f32 0.0, %v288
      %290 = vmatmul.f32.gmra.mxu0 %v244
      %v291 = vpop.f32.mrf.mxu0
      %v292 = vadd.f32 0.0, %v291
      %293 = vmatmul.f32.gmra.mxu0 %v247
      %v294 = vpop.f32.mrf.mxu0
      %v295 = vadd.f32 0.0, %v294
      %296 = vmatmul.f32.gmra.mxu0 %v250
      %v297 = vpop.f32.mrf.mxu0
      %v298 = vadd.f32 0.0, %v297
      %299 = vmatmul.f32.gmra.mxu0 %v253
      %v300 = vpop.f32.mrf.mxu0
      %v301 = vadd.f32 0.0, %v300
      %302 = vdwg.mxu0
      %v303 = vadd.f32 %v218, %v277
      %v304 = vadd.f32 %v219, %v280
      %v305 = vadd.f32 %v220, %v283
      %v306 = vadd.f32 %v221, %v286
      %v307 = vadd.f32 %v222, %v289
      %v308 = vadd.f32 %v223, %v292
      %v309 = vadd.f32 %v224, %v295
      %v310 = vadd.f32 %v225, %v298
      %v311 = vadd.f32 %v226, %v301
      %312 = vst.msk [vmem:[#allocation2] sm:$0xff] %vm198, %v303
      %313 = vst.msk [vmem:[#allocation2 + $0x8] sm:$0xff] %vm198, %v304
      %314 = vst.msk [vmem:[#allocation2 + $0x10] sm:$0xff] %vm198, %v305
      %315 = vst.msk [vmem:[#allocation2 + $0x18] sm:$0xff] %vm198, %v306
      %316 = vst.msk [vmem:[#allocation2 + $0x20] sm:$0xff] %vm198, %v307
      %317 = vst.msk [vmem:[#allocation2 + $0x28] sm:$0xff] %vm198, %v308
      %318 = vst.msk [vmem:[#allocation2 + $0x30] sm:$0xff] %vm198, %v309
      %319 = vst.msk [vmem:[#allocation2 + $0x38] sm:$0xff] %vm198, %v310
      %320 = vst.msk [vmem:[#allocation2 + $0x40] sm:$0x7f] %vm207, %v311
      %s321 = scalar_lea.vmem %s192, 88
      %v322 = vld [vmem:[%s321] sm:$0xff]
      %v323 = vld [vmem:[%s321 + $0x8] sm:$0xff]
      %v324 = vld [vmem:[%s321 + $0x10] sm:$0xff]
      %v325 = vld [vmem:[%s321 + $0x18] sm:$0xff]
      %v326 = vld [vmem:[%s321 + $0x20] sm:$0xff]
      %v327 = vld [vmem:[%s321 + $0x28] sm:$0xff]
      %v328 = vld [vmem:[%s321 + $0x30] sm:$0xff]
      %v329 = vld [vmem:[%s321 + $0x38] sm:$0xff]
      %v330 = vld [vmem:[%s321 + $0x40] sm:$0x7f]
      %v331 = vld [vmem:[#allocation2] sm:$0xff]
      %v332 = vld [vmem:[#allocation2 + $0x8] sm:$0xff]
      %v333 = vld [vmem:[#allocation2 + $0x10] sm:$0xff]
      %v334 = vld [vmem:[#allocation2 + $0x18] sm:$0xff]
      %v335 = vld [vmem:[#allocation2 + $0x20] sm:$0xff]
      %v336 = vld [vmem:[#allocation2 + $0x28] sm:$0xff]
      %v337 = vld [vmem:[#allocation2 + $0x30] sm:$0xff]
      %v338 = vld [vmem:[#allocation2 + $0x38] sm:$0xff]
      %v339 = vld [vmem:[#allocation2 + $0x40] sm:$0x7f]
      %s340 = scalar_lea.vmem %s1, 4
      %v341 = vld [vmem:[%s340] sm:$0xf]
      %v343 = vsel %vm198, %v322, 0
      %v346 = vsel %vm198, %v323, 0
      %v349 = vsel %vm198, %v324, 0
      %v352 = vsel %vm198, %v325, 0
      %v355 = vsel %vm198, %v326, 0
      %v358 = vsel %vm198, %v327, 0
      %v361 = vsel %vm198, %v328, 0
      %v364 = vsel %vm198, %v329, 0
      %v367 = vsel %vm198, %v330, 0
      %v370 = vsel %vm255, %v341, 0
      %372 = vmatpush.msra.mxu0 0.0
      %373 = vmatpush.msra.mxu0 0.0
      %374 = vmatpush.msra.mxu0 0.0
      %375 = vmatpush.msra.mxu0 0.0
      %376 = vmatpush.msra.mxu0 0.0
      %377 = vmatpush.msra.mxu0 0.0
      %378 = vmatpush.msra.mxu0 0.0
      %379 = vmatpush.msra.mxu0 0.0
      %380 = vmatpush.msra.mxu0 0.0
      %381 = vmatpush.msra.mxu0 0.0
      %382 = vmatpush.msra.mxu0 0.0
      %383 = vmatpush.msra.mxu0 0.0
      %384 = vmatpush.msra.mxu0 0.0
      %385 = vmatpush.msra.mxu0 0.0
      %386 = vmatpush.msra.mxu0 0.0
      %387 = vmatpush.msra.mxu0 %v370
      %388 = vmatmul.f32.gmra.mxu0 %v343
      %v389 = vpop.f32.mrf.mxu0
      %v390 = vadd.f32 0.0, %v389
      %391 = vmatmul.f32.gmra.mxu0 %v346
      %v392 = vpop.f32.mrf.mxu0
      %v393 = vadd.f32 0.0, %v392
      %394 = vmatmul.f32.gmra.mxu0 %v349
      %v395 = vpop.f32.mrf.mxu0
      %v396 = vadd.f32 0.0, %v395
      %397 = vmatmul.f32.gmra.mxu0 %v352
      %v398 = vpop.f32.mrf.mxu0
      %v399 = vadd.f32 0.0, %v398
      %400 = vmatmul.f32.gmra.mxu0 %v355
      %v401 = vpop.f32.mrf.mxu0
      %v402 = vadd.f32 0.0, %v401
      %403 = vmatmul.f32.gmra.mxu0 %v358
      %v404 = vpop.f32.mrf.mxu0
      %v405 = vadd.f32 0.0, %v404
      %406 = vmatmul.f32.gmra.mxu0 %v361
      %v407 = vpop.f32.mrf.mxu0
      %v408 = vadd.f32 0.0, %v407
      %409 = vmatmul.f32.gmra.mxu0 %v364
      %v410 = vpop.f32.mrf.mxu0
      %v411 = vadd.f32 0.0, %v410
      %412 = vmatmul.f32.gmra.mxu0 %v367
      %v413 = vpop.f32.mrf.mxu0
      %v414 = vadd.f32 0.0, %v413
      %415 = vdwg.mxu0
      %v416 = vadd.f32 %v331, %v390
      %v417 = vadd.f32 %v332, %v393
      %v418 = vadd.f32 %v333, %v396
      %v419 = vadd.f32 %v334, %v399
      %v420 = vadd.f32 %v335, %v402
      %v421 = vadd.f32 %v336, %v405
      %v422 = vadd.f32 %v337, %v408
      %v423 = vadd.f32 %v338, %v411
      %v424 = vadd.f32 %v339, %v414
      %425 = vst.msk [vmem:[#allocation2] sm:$0xff] %vm198, %v416
      %426 = vst.msk [vmem:[#allocation2 + $0x8] sm:$0xff] %vm198, %v417
      %427 = vst.msk [vmem:[#allocation2 + $0x10] sm:$0xff] %vm198, %v418
      %428 = vst.msk [vmem:[#allocation2 + $0x18] sm:$0xff] %vm198, %v419
      %429 = vst.msk [vmem:[#allocation2 + $0x20] sm:$0xff] %vm198, %v420
      %430 = vst.msk [vmem:[#allocation2 + $0x28] sm:$0xff] %vm198, %v421
      %431 = vst.msk [vmem:[#allocation2 + $0x30] sm:$0xff] %vm198, %v422
      %432 = vst.msk [vmem:[#allocation2 + $0x38] sm:$0xff] %vm198, %v423
      %433 = vst.msk [vmem:[#allocation2 + $0x40] sm:$0x7f] %vm207, %v424
      %v434 = vld [vmem:[%s192 + $0x1] sm:$0xff]
      %v435 = vld [vmem:[%s192 + $0x9] sm:$0xff]
      %v436 = vld [vmem:[%s192 + $0x11] sm:$0xff]
      %v437 = vld [vmem:[%s192 + $0x19] sm:$0xff]
      %v438 = vld [vmem:[%s192 + $0x21] sm:$0xff]
      %v439 = vld [vmem:[%s192 + $0x29] sm:$0xff]
      %v440 = vld [vmem:[%s192 + $0x31] sm:$0xff]
      %v441 = vld [vmem:[%s192 + $0x39] sm:$0xff]
      %v442 = vld [vmem:[%s192 + $0x41] sm:$0x7f]
      %v443 = vld [vmem:[#allocation2] sm:$0xff]
      %v444 = vld [vmem:[#allocation2 + $0x8] sm:$0xff]
      %v445 = vld [vmem:[#allocation2 + $0x10] sm:$0xff]
      %v446 = vld [vmem:[#allocation2 + $0x18] sm:$0xff]
      %v447 = vld [vmem:[#allocation2 + $0x20] sm:$0xff]
      %v448 = vld [vmem:[#allocation2 + $0x28] sm:$0xff]
      %v449 = vld [vmem:[#allocation2 + $0x30] sm:$0xff]
      %v450 = vld [vmem:[#allocation2 + $0x38] sm:$0xff]
      %v451 = vld [vmem:[#allocation2 + $0x40] sm:$0x7f]
      %s452 = scalar_lea.vmem %s1, 8
      %v453 = vld [vmem:[%s452] sm:$0xf]
      %v455 = vsel %vm198, %v434, 0
      %v458 = vsel %vm198, %v435, 0
      %v461 = vsel %vm198, %v436, 0
      %v464 = vsel %vm198, %v437, 0
      %v467 = vsel %vm198, %v438, 0
      %v470 = vsel %vm198, %v439, 0
      %v473 = vsel %vm198, %v440, 0
      %v476 = vsel %vm198, %v441, 0
      %v479 = vsel %vm198, %v442, 0
      %v482 = vsel %vm255, %v453, 0
      %484 = vmatpush.msra.mxu0 0.0
      %485 = vmatpush.msra.mxu0 0.0
      %486 = vmatpush.msra.mxu0 0.0
      %487 = vmatpush.msra.mxu0 0.0
      %488 = vmatpush.msra.mxu0 0.0
      %489 = vmatpush.msra.mxu0 0.0
      %490 = vmatpush.msra.mxu0 0.0
      %491 = vmatpush.msra.mxu0 0.0
      %492 = vmatpush.msra.mxu0 0.0
      %493 = vmatpush.msra.mxu0 0.0
      %494 = vmatpush.msra.mxu0 0.0
      %495 = vmatpush.msra.mxu0 0.0
      %496 = vmatpush.msra.mxu0 0.0
      %497 = vmatpush.msra.mxu0 0.0
      %498 = vmatpush.msra.mxu0 0.0
      %499 = vmatpush.msra.mxu0 %v482
      %500 = vmatmul.f32.gmra.mxu0 %v455
      %v501 = vpop.f32.mrf.mxu0
      %v502 = vadd.f32 0.0, %v501
      %503 = vmatmul.f32.gmra.mxu0 %v458
      %v504 = vpop.f32.mrf.mxu0
      %v505 = vadd.f32 0.0, %v504
      %506 = vmatmul.f32.gmra.mxu0 %v461
      %v507 = vpop.f32.mrf.mxu0
      %v508 = vadd.f32 0.0, %v507
      %509 = vmatmul.f32.gmra.mxu0 %v464
      %v510 = vpop.f32.mrf.mxu0
      %v511 = vadd.f32 0.0, %v510
      %512 = vmatmul.f32.gmra.mxu0 %v467
      %v513 = vpop.f32.mrf.mxu0
      %v514 = vadd.f32 0.0, %v513
      %515 = vmatmul.f32.gmra.mxu0 %v470
      %v516 = vpop.f32.mrf.mxu0
      %v517 = vadd.f32 0.0, %v516
      %518 = vmatmul.f32.gmra.mxu0 %v473
      %v519 = vpop.f32.mrf.mxu0
      %v520 = vadd.f32 0.0, %v519
      %521 = vmatmul.f32.gmra.mxu0 %v476
      %v522 = vpop.f32.mrf.mxu0
      %v523 = vadd.f32 0.0, %v522
      %524 = vmatmul.f32.gmra.mxu0 %v479
      %v525 = vpop.f32.mrf.mxu0
      %v526 = vadd.f32 0.0, %v525
      %527 = vdwg.mxu0
      %v528 = vadd.f32 %v443, %v502
      %v529 = vadd.f32 %v444, %v505
      %v530 = vadd.f32 %v445, %v508
      %v531 = vadd.f32 %v446, %v511
      %v532 = vadd.f32 %v447, %v514
      %v533 = vadd.f32 %v448, %v517
      %v534 = vadd.f32 %v449, %v520
      %v535 = vadd.f32 %v450, %v523
      %v536 = vadd.f32 %v451, %v526
      %537 = vst.msk [vmem:[#allocation2] sm:$0xff] %vm198, %v528
      %538 = vst.msk [vmem:[#allocation2 + $0x8] sm:$0xff] %vm198, %v529
      %539 = vst.msk [vmem:[#allocation2 + $0x10] sm:$0xff] %vm198, %v530
      %540 = vst.msk [vmem:[#allocation2 + $0x18] sm:$0xff] %vm198, %v531
      %541 = vst.msk [vmem:[#allocation2 + $0x20] sm:$0xff] %vm198, %v532
      %542 = vst.msk [vmem:[#allocation2 + $0x28] sm:$0xff] %vm198, %v533
      %543 = vst.msk [vmem:[#allocation2 + $0x30] sm:$0xff] %vm198, %v534
      %544 = vst.msk [vmem:[#allocation2 + $0x38] sm:$0xff] %vm198, %v535
      %545 = vst.msk [vmem:[#allocation2 + $0x40] sm:$0x7f] %vm207, %v536
      %s546 = scalar_lea.vmem %s192, 176
      %v547 = vld [vmem:[%s546] sm:$0xff]
      %v548 = vld [vmem:[%s546 + $0x8] sm:$0xff]
      %v549 = vld [vmem:[%s546 + $0x10] sm:$0xff]
      %v550 = vld [vmem:[%s546 + $0x18] sm:$0xff]
      %v551 = vld [vmem:[%s546 + $0x20] sm:$0xff]
      %v552 = vld [vmem:[%s546 + $0x28] sm:$0xff]
      %v553 = vld [vmem:[%s546 + $0x30] sm:$0xff]
      %v554 = vld [vmem:[%s546 + $0x38] sm:$0xff]
      %v555 = vld [vmem:[%s546 + $0x40] sm:$0x7f]
      %v556 = vld [vmem:[#allocation2] sm:$0xff]
      %v557 = vld [vmem:[#allocation2 + $0x8] sm:$0xff]
      %v558 = vld [vmem:[#allocation2 + $0x10] sm:$0xff]
      %v559 = vld [vmem:[#allocation2 + $0x18] sm:$0xff]
      %v560 = vld [vmem:[#allocation2 + $0x20] sm:$0xff]
      %v561 = vld [vmem:[#allocation2 + $0x28] sm:$0xff]
      %v562 = vld [vmem:[#allocation2 + $0x30] sm:$0xff]
      %v563 = vld [vmem:[#allocation2 + $0x38] sm:$0xff]
      %v564 = vld [vmem:[#allocation2 + $0x40] sm:$0x7f]
      %s565 = scalar_lea.vmem %s1, 12
      %v566 = vld [vmem:[%s565] sm:$0xf]
      %v568 = vsel %vm198, %v547, 0
      %v571 = vsel %vm198, %v548, 0
      %v574 = vsel %vm198, %v549, 0
      %v577 = vsel %vm198, %v550, 0
      %v580 = vsel %vm198, %v551, 0
      %v583 = vsel %vm198, %v552, 0
      %v586 = vsel %vm198, %v553, 0
      %v589 = vsel %vm198, %v554, 0
      %v592 = vsel %vm198, %v555, 0
      %v595 = vsel %vm255, %v566, 0
      %597 = vmatpush.msra.mxu0 0.0
      %598 = vmatpush.msra.mxu0 0.0
      %599 = vmatpush.msra.mxu0 0.0
      %600 = vmatpush.msra.mxu0 0.0
      %601 = vmatpush.msra.mxu0 0.0
      %602 = vmatpush.msra.mxu0 0.0
      %603 = vmatpush.msra.mxu0 0.0
      %604 = vmatpush.msra.mxu0 0.0
      %605 = vmatpush.msra.mxu0 0.0
      %606 = vmatpush.msra.mxu0 0.0
      %607 = vmatpush.msra.mxu0 0.0
      %608 = vmatpush.msra.mxu0 0.0
      %609 = vmatpush.msra.mxu0 0.0
      %610 = vmatpush.msra.mxu0 0.0
      %611 = vmatpush.msra.mxu0 0.0
      %612 = vmatpush.msra.mxu0 %v595
      %613 = vmatmul.f32.gmra.mxu0 %v568
      %v614 = vpop.f32.mrf.mxu0
      %v615 = vadd.f32 0.0, %v614
      %616 = vmatmul.f32.gmra.mxu0 %v571
      %v617 = vpop.f32.mrf.mxu0
      %v618 = vadd.f32 0.0, %v617
      %619 = vmatmul.f32.gmra.mxu0 %v574
      %v620 = vpop.f32.mrf.mxu0
      %v621 = vadd.f32 0.0, %v620
      %622 = vmatmul.f32.gmra.mxu0 %v577
      %v623 = vpop.f32.mrf.mxu0
      %v624 = vadd.f32 0.0, %v623
      %625 = vmatmul.f32.gmra.mxu0 %v580
      %v626 = vpop.f32.mrf.mxu0
      %v627 = vadd.f32 0.0, %v626
      %628 = vmatmul.f32.gmra.mxu0 %v583
      %v629 = vpop.f32.mrf.mxu0
      %v630 = vadd.f32 0.0, %v629
      %631 = vmatmul.f32.gmra.mxu0 %v586
      %v632 = vpop.f32.mrf.mxu0
      %v633 = vadd.f32 0.0, %v632
      %634 = vmatmul.f32.gmra.mxu0 %v589
      %v635 = vpop.f32.mrf.mxu0
      %v636 = vadd.f32 0.0, %v635
      %637 = vmatmul.f32.gmra.mxu0 %v592
      %v638 = vpop.f32.mrf.mxu0
      %v639 = vadd.f32 0.0, %v638
      %640 = vdwg.mxu0
      %v641 = vadd.f32 %v556, %v615
      %v642 = vadd.f32 %v557, %v618
      %v643 = vadd.f32 %v558, %v621
      %v644 = vadd.f32 %v559, %v624
      %v645 = vadd.f32 %v560, %v627
      %v646 = vadd.f32 %v561, %v630
      %v647 = vadd.f32 %v562, %v633
      %v648 = vadd.f32 %v563, %v636
      %v649 = vadd.f32 %v564, %v639
      %650 = vst.msk [vmem:[#allocation2] sm:$0xff] %vm198, %v641
      %651 = vst.msk [vmem:[#allocation2 + $0x8] sm:$0xff] %vm198, %v642
      %652 = vst.msk [vmem:[#allocation2 + $0x10] sm:$0xff] %vm198, %v643
      %653 = vst.msk [vmem:[#allocation2 + $0x18] sm:$0xff] %vm198, %v644
      %654 = vst.msk [vmem:[#allocation2 + $0x20] sm:$0xff] %vm198, %v645
      %655 = vst.msk [vmem:[#allocation2 + $0x28] sm:$0xff] %vm198, %v646
      %656 = vst.msk [vmem:[#allocation2 + $0x30] sm:$0xff] %vm198, %v647
      %657 = vst.msk [vmem:[#allocation2 + $0x38] sm:$0xff] %vm198, %v648
      %658 = vst.msk [vmem:[#allocation2 + $0x40] sm:$0x7f] %vm207, %v649
      %s659 = scalar_lea.vmem %s192, 264
      %v660 = vld [vmem:[%s659] sm:$0xff]
      %v661 = vld [vmem:[%s659 + $0x8] sm:$0xff]
      %v662 = vld [vmem:[%s659 + $0x10] sm:$0xff]
      %v663 = vld [vmem:[%s659 + $0x18] sm:$0xff]
      %v664 = vld [vmem:[%s659 + $0x20] sm:$0xff]
      %v665 = vld [vmem:[%s659 + $0x28] sm:$0xff]
      %v666 = vld [vmem:[%s659 + $0x30] sm:$0xff]
      %v667 = vld [vmem:[%s659 + $0x38] sm:$0xff]
      %v668 = vld [vmem:[%s659 + $0x40] sm:$0x7f]
      %v669 = vld [vmem:[#allocation2] sm:$0xff]
      %v670 = vld [vmem:[#allocation2 + $0x8] sm:$0xff]
      %v671 = vld [vmem:[#allocation2 + $0x10] sm:$0xff]
      %v672 = vld [vmem:[#allocation2 + $0x18] sm:$0xff]
      %v673 = vld [vmem:[#allocation2 + $0x20] sm:$0xff]
      %v674 = vld [vmem:[#allocation2 + $0x28] sm:$0xff]
      %v675 = vld [vmem:[#allocation2 + $0x30] sm:$0xff]
      %v676 = vld [vmem:[#allocation2 + $0x38] sm:$0xff]
      %v677 = vld [vmem:[#allocation2 + $0x40] sm:$0x7f]
      %s678 = scalar_lea.vmem %s1, 16
      %v679 = vld [vmem:[%s678] sm:$0xf]
      %v681 = vsel %vm198, %v660, 0
      %v684 = vsel %vm198, %v661, 0
      %v687 = vsel %vm198, %v662, 0
      %v690 = vsel %vm198, %v663, 0
      %v693 = vsel %vm198, %v664, 0
      %v696 = vsel %vm198, %v665, 0
      %v699 = vsel %vm198, %v666, 0
      %v702 = vsel %vm198, %v667, 0
      %v705 = vsel %vm198, %v668, 0
      %v708 = vsel %vm255, %v679, 0
      %710 = vmatpush.msra.mxu0 0.0
      %711 = vmatpush.msra.mxu0 0.0
      %712 = vmatpush.msra.mxu0 0.0
      %713 = vmatpush.msra.mxu0 0.0
      %714 = vmatpush.msra.mxu0 0.0
      %715 = vmatpush.msra.mxu0 0.0
      %716 = vmatpush.msra.mxu0 0.0
      %717 = vmatpush.msra.mxu0 0.0
      %718 = vmatpush.msra.mxu0 0.0
      %719 = vmatpush.msra.mxu0 0.0
      %720 = vmatpush.msra.mxu0 0.0
      %721 = vmatpush.msra.mxu0 0.0
      %722 = vmatpush.msra.mxu0 0.0
      %723 = vmatpush.msra.mxu0 0.0
      %724 = vmatpush.msra.mxu0 0.0
      %725 = vmatpush.msra.mxu0 %v708
      %726 = vmatmul.f32.gmra.mxu0 %v681
      %v727 = vpop.f32.mrf.mxu0
      %v728 = vadd.f32 0.0, %v727
      %729 = vmatmul.f32.gmra.mxu0 %v684
      %v730 = vpop.f32.mrf.mxu0
      %v731 = vadd.f32 0.0, %v730
      %732 = vmatmul.f32.gmra.mxu0 %v687
      %v733 = vpop.f32.mrf.mxu0
      %v734 = vadd.f32 0.0, %v733
      %735 = vmatmul.f32.gmra.mxu0 %v690
      %v736 = vpop.f32.mrf.mxu0
      %v737 = vadd.f32 0.0, %v736
      %738 = vmatmul.f32.gmra.mxu0 %v693
      %v739 = vpop.f32.mrf.mxu0
      %v740 = vadd.f32 0.0, %v739
      %741 = vmatmul.f32.gmra.mxu0 %v696
      %v742 = vpop.f32.mrf.mxu0
      %v743 = vadd.f32 0.0, %v742
      %744 = vmatmul.f32.gmra.mxu0 %v699
      %v745 = vpop.f32.mrf.mxu0
      %v746 = vadd.f32 0.0, %v745
      %747 = vmatmul.f32.gmra.mxu0 %v702
      %v748 = vpop.f32.mrf.mxu0
      %v749 = vadd.f32 0.0, %v748
      %750 = vmatmul.f32.gmra.mxu0 %v705
      %v751 = vpop.f32.mrf.mxu0
      %v752 = vadd.f32 0.0, %v751
      %753 = vdwg.mxu0
      %v754 = vadd.f32 %v669, %v728
      %v755 = vadd.f32 %v670, %v731
      %v756 = vadd.f32 %v671, %v734
      %v757 = vadd.f32 %v672, %v737
      %v758 = vadd.f32 %v673, %v740
      %v759 = vadd.f32 %v674, %v743
      %v760 = vadd.f32 %v675, %v746
      %v761 = vadd.f32 %v676, %v749
      %v762 = vadd.f32 %v677, %v752
      %763 = vst.msk [vmem:[#allocation2] sm:$0xff] %vm198, %v754
      %764 = vst.msk [vmem:[#allocation2 + $0x8] sm:$0xff] %vm198, %v755
      %765 = vst.msk [vmem:[#allocation2 + $0x10] sm:$0xff] %vm198, %v756
      %766 = vst.msk [vmem:[#allocation2 + $0x18] sm:$0xff] %vm198, %v757
      %767 = vst.msk [vmem:[#allocation2 + $0x20] sm:$0xff] %vm198, %v758
      %768 = vst.msk [vmem:[#allocation2 + $0x28] sm:$0xff] %vm198, %v759
      %769 = vst.msk [vmem:[#allocation2 + $0x30] sm:$0xff] %vm198, %v760
      %770 = vst.msk [vmem:[#allocation2 + $0x38] sm:$0xff] %vm198, %v761
      %771 = vst.msk [vmem:[#allocation2 + $0x40] sm:$0x7f] %vm207, %v762
      %v772 = vld [vmem:[%s546 + $0x1] sm:$0xff]
      %v773 = vld [vmem:[%s546 + $0x9] sm:$0xff]
      %v774 = vld [vmem:[%s546 + $0x11] sm:$0xff]
      %v775 = vld [vmem:[%s546 + $0x19] sm:$0xff]
      %v776 = vld [vmem:[%s546 + $0x21] sm:$0xff]
      %v777 = vld [vmem:[%s546 + $0x29] sm:$0xff]
      %v778 = vld [vmem:[%s546 + $0x31] sm:$0xff]
      %v779 = vld [vmem:[%s546 + $0x39] sm:$0xff]
      %v780 = vld [vmem:[%s546 + $0x41] sm:$0x7f]
      %v781 = vld [vmem:[#allocation2] sm:$0xff]
      %v782 = vld [vmem:[#allocation2 + $0x8] sm:$0xff]
      %v783 = vld [vmem:[#allocation2 + $0x10] sm:$0xff]
      %v784 = vld [vmem:[#allocation2 + $0x18] sm:$0xff]
      %v785 = vld [vmem:[#allocation2 + $0x20] sm:$0xff]
      %v786 = vld [vmem:[#allocation2 + $0x28] sm:$0xff]
      %v787 = vld [vmem:[#allocation2 + $0x30] sm:$0xff]
      %v788 = vld [vmem:[#allocation2 + $0x38] sm:$0xff]
      %v789 = vld [vmem:[#allocation2 + $0x40] sm:$0x7f]
      %s790 = scalar_lea.vmem %s1, 20
      %v791 = vld [vmem:[%s790] sm:$0xf]
      %v793 = vsel %vm198, %v772, 0
      %v796 = vsel %vm198, %v773, 0
      %v799 = vsel %vm198, %v774, 0
      %v802 = vsel %vm198, %v775, 0
      %v805 = vsel %vm198, %v776, 0
      %v808 = vsel %vm198, %v777, 0
      %v811 = vsel %vm198, %v778, 0
      %v814 = vsel %vm198, %v779, 0
      %v817 = vsel %vm198, %v780, 0
      %v820 = vsel %vm255, %v791, 0
      %822 = vmatpush.msra.mxu0 0.0
      %823 = vmatpush.msra.mxu0 0.0
      %824 = vmatpush.msra.mxu0 0.0
      %825 = vmatpush.msra.mxu0 0.0
      %826 = vmatpush.msra.mxu0 0.0
      %827 = vmatpush.msra.mxu0 0.0
      %828 = vmatpush.msra.mxu0 0.0
      %829 = vmatpush.msra.mxu0 0.0
      %830 = vmatpush.msra.mxu0 0.0
      %831 = vmatpush.msra.mxu0 0.0
      %832 = vmatpush.msra.mxu0 0.0
      %833 = vmatpush.msra.mxu0 0.0
      %834 = vmatpush.msra.mxu0 0.0
      %835 = vmatpush.msra.mxu0 0.0
      %836 = vmatpush.msra.mxu0 0.0
      %837 = vmatpush.msra.mxu0 %v820
      %838 = vmatmul.f32.gmra.mxu0 %v793
      %v839 = vpop.f32.mrf.mxu0
      %v840 = vadd.f32 0.0, %v839
      %841 = vmatmul.f32.gmra.mxu0 %v796
      %v842 = vpop.f32.mrf.mxu0
      %v843 = vadd.f32 0.0, %v842
      %844 = vmatmul.f32.gmra.mxu0 %v799
      %v845 = vpop.f32.mrf.mxu0
      %v846 = vadd.f32 0.0, %v845
      %847 = vmatmul.f32.gmra.mxu0 %v802
      %v848 = vpop.f32.mrf.mxu0
      %v849 = vadd.f32 0.0, %v848
      %850 = vmatmul.f32.gmra.mxu0 %v805
      %v851 = vpop.f32.mrf.mxu0
      %v852 = vadd.f32 0.0, %v851
      %853 = vmatmul.f32.gmra.mxu0 %v808
      %v854 = vpop.f32.mrf.mxu0
      %v855 = vadd.f32 0.0, %v854
      %856 = vmatmul.f32.gmra.mxu0 %v811
      %v857 = vpop.f32.mrf.mxu0
      %v858 = vadd.f32 0.0, %v857
      %859 = vmatmul.f32.gmra.mxu0 %v814
      %v860 = vpop.f32.mrf.mxu0
      %v861 = vadd.f32 0.0, %v860
      %862 = vmatmul.f32.gmra.mxu0 %v817
      %v863 = vpop.f32.mrf.mxu0
      %v864 = vadd.f32 0.0, %v863
      %865 = vdwg.mxu0
      %v866 = vadd.f32 %v781, %v840
      %v867 = vadd.f32 %v782, %v843
      %v868 = vadd.f32 %v783, %v846
      %v869 = vadd.f32 %v784, %v849
      %v870 = vadd.f32 %v785, %v852
      %v871 = vadd.f32 %v786, %v855
      %v872 = vadd.f32 %v787, %v858
      %v873 = vadd.f32 %v788, %v861
      %v874 = vadd.f32 %v789, %v864
      %875 = vst.msk [vmem:[#allocation2] sm:$0xff] %vm198, %v866
      %876 = vst.msk [vmem:[#allocation2 + $0x8] sm:$0xff] %vm198, %v867
      %877 = vst.msk [vmem:[#allocation2 + $0x10] sm:$0xff] %vm198, %v868
      %878 = vst.msk [vmem:[#allocation2 + $0x18] sm:$0xff] %vm198, %v869
      %879 = vst.msk [vmem:[#allocation2 + $0x20] sm:$0xff] %vm198, %v870
      %880 = vst.msk [vmem:[#allocation2 + $0x28] sm:$0xff] %vm198, %v871
      %881 = vst.msk [vmem:[#allocation2 + $0x30] sm:$0xff] %vm198, %v872
      %882 = vst.msk [vmem:[#allocation2 + $0x38] sm:$0xff] %vm198, %v873
      %883 = vst.msk [vmem:[#allocation2 + $0x40] sm:$0x7f] %vm207, %v874
      %v884 = vld [vmem:[%s192 + $0x9] sm:$0xff]
      %v885 = vld [vmem:[%s192 + $0x11] sm:$0xff]
      %v886 = vld [vmem:[%s192 + $0x19] sm:$0xff]
      %v887 = vld [vmem:[%s192 + $0x21] sm:$0xff]
      %v888 = vld [vmem:[%s192 + $0x29] sm:$0xff]
      %v889 = vld [vmem:[%s192 + $0x31] sm:$0xff]
      %v890 = vld [vmem:[%s192 + $0x39] sm:$0xff]
      %v891 = vld [vmem:[%s192 + $0x41] sm:$0xff]
      %v892 = vld [vmem:[%s192 + $0x49] sm:$0x7f]
      %v893 = vld [vmem:[#allocation2] sm:$0xff]
      %v894 = vld [vmem:[#allocation2 + $0x8] sm:$0xff]
      %v895 = vld [vmem:[#allocation2 + $0x10] sm:$0xff]
      %v896 = vld [vmem:[#allocation2 + $0x18] sm:$0xff]
      %v897 = vld [vmem:[#allocation2 + $0x20] sm:$0xff]
      %v898 = vld [vmem:[#allocation2 + $0x28] sm:$0xff]
      %v899 = vld [vmem:[#allocation2 + $0x30] sm:$0xff]
      %v900 = vld [vmem:[#allocation2 + $0x38] sm:$0xff]
      %v901 = vld [vmem:[#allocation2 + $0x40] sm:$0x7f]
      %s902 = scalar_lea.vmem %s1, 24
      %v903 = vld [vmem:[%s902] sm:$0xf]
      %v905 = vsel %vm198, %v884, 0
      %v908 = vsel %vm198, %v885, 0
      %v911 = vsel %vm198, %v886, 0
      %v914 = vsel %vm198, %v887, 0
      %v917 = vsel %vm198, %v888, 0
      %v920 = vsel %vm198, %v889, 0
      %v923 = vsel %vm198, %v890, 0
      %v926 = vsel %vm198, %v891, 0
      %v929 = vsel %vm198, %v892, 0
      %v932 = vsel %vm255, %v903, 0
      %934 = vmatpush.msra.mxu0 0.0
      %935 = vmatpush.msra.mxu0 0.0
      %936 = vmatpush.msra.mxu0 0.0
      %937 = vmatpush.msra.mxu0 0.0
      %938 = vmatpush.msra.mxu0 0.0
      %939 = vmatpush.msra.mxu0 0.0
      %940 = vmatpush.msra.mxu0 0.0
      %941 = vmatpush.msra.mxu0 0.0
      %942 = vmatpush.msra.mxu0 0.0
      %943 = vmatpush.msra.mxu0 0.0
      %944 = vmatpush.msra.mxu0 0.0
      %945 = vmatpush.msra.mxu0 0.0
      %946 = vmatpush.msra.mxu0 0.0
      %947 = vmatpush.msra.mxu0 0.0
      %948 = vmatpush.msra.mxu0 0.0
      %949 = vmatpush.msra.mxu0 %v932
      %950 = vmatmul.f32.gmra.mxu0 %v905
      %v951 = vpop.f32.mrf.mxu0
      %v952 = vadd.f32 0.0, %v951
      %953 = vmatmul.f32.gmra.mxu0 %v908
      %v954 = vpop.f32.mrf.mxu0
      %v955 = vadd.f32 0.0, %v954
      %956 = vmatmul.f32.gmra.mxu0 %v911
      %v957 = vpop.f32.mrf.mxu0
      %v958 = vadd.f32 0.0, %v957
      %959 = vmatmul.f32.gmra.mxu0 %v914
      %v960 = vpop.f32.mrf.mxu0
      %v961 = vadd.f32 0.0, %v960
      %962 = vmatmul.f32.gmra.mxu0 %v917
      %v963 = vpop.f32.mrf.mxu0
      %v964 = vadd.f32 0.0, %v963
      %965 = vmatmul.f32.gmra.mxu0 %v920
      %v966 = vpop.f32.mrf.mxu0
      %v967 = vadd.f32 0.0, %v966
      %968 = vmatmul.f32.gmra.mxu0 %v923
      %v969 = vpop.f32.mrf.mxu0
      %v970 = vadd.f32 0.0, %v969
      %971 = vmatmul.f32.gmra.mxu0 %v926
      %v972 = vpop.f32.mrf.mxu0
      %v973 = vadd.f32 0.0, %v972
      %974 = vmatmul.f32.gmra.mxu0 %v929
      %v975 = vpop.f32.mrf.mxu0
      %v976 = vadd.f32 0.0, %v975
      %977 = vdwg.mxu0
      %v978 = vadd.f32 %v893, %v952
      %v979 = vadd.f32 %v894, %v955
      %v980 = vadd.f32 %v895, %v958
      %v981 = vadd.f32 %v896, %v961
      %v982 = vadd.f32 %v897, %v964
      %v983 = vadd.f32 %v898, %v967
      %v984 = vadd.f32 %v899, %v970
      %v985 = vadd.f32 %v900, %v973
      %v986 = vadd.f32 %v901, %v976
      %987 = vst.msk [vmem:[#allocation2] sm:$0xff] %vm198, %v978
      %988 = vst.msk [vmem:[#allocation2 + $0x8] sm:$0xff] %vm198, %v979
      %989 = vst.msk [vmem:[#allocation2 + $0x10] sm:$0xff] %vm198, %v980
      %990 = vst.msk [vmem:[#allocation2 + $0x18] sm:$0xff] %vm198, %v981
      %991 = vst.msk [vmem:[#allocation2 + $0x20] sm:$0xff] %vm198, %v982
      %992 = vst.msk [vmem:[#allocation2 + $0x28] sm:$0xff] %vm198, %v983
      %993 = vst.msk [vmem:[#allocation2 + $0x30] sm:$0xff] %vm198, %v984
      %994 = vst.msk [vmem:[#allocation2 + $0x38] sm:$0xff] %vm198, %v985
      %995 = vst.msk [vmem:[#allocation2 + $0x40] sm:$0x7f] %vm207, %v986
      %v996 = vld [vmem:[%s321 + $0x9] sm:$0xff]
      %v997 = vld [vmem:[%s321 + $0x11] sm:$0xff]
      %v998 = vld [vmem:[%s321 + $0x19] sm:$0xff]
      %v999 = vld [vmem:[%s321 + $0x21] sm:$0xff]
      %v1000 = vld [vmem:[%s321 + $0x29] sm:$0xff]
      %v1001 = vld [vmem:[%s321 + $0x31] sm:$0xff]
      %v1002 = vld [vmem:[%s321 + $0x39] sm:$0xff]
      %v1003 = vld [vmem:[%s321 + $0x41] sm:$0xff]
      %v1004 = vld [vmem:[%s321 + $0x49] sm:$0x7f]
      %v1005 = vld [vmem:[#allocation2] sm:$0xff]
      %v1006 = vld [vmem:[#allocation2 + $0x8] sm:$0xff]
      %v1007 = vld [vmem:[#allocation2 + $0x10] sm:$0xff]
      %v1008 = vld [vmem:[#allocation2 + $0x18] sm:$0xff]
      %v1009 = vld [vmem:[#allocation2 + $0x20] sm:$0xff]
      %v1010 = vld [vmem:[#allocation2 + $0x28] sm:$0xff]
      %v1011 = vld [vmem:[#allocation2 + $0x30] sm:$0xff]
      %v1012 = vld [vmem:[#allocation2 + $0x38] sm:$0xff]
      %v1013 = vld [vmem:[#allocation2 + $0x40] sm:$0x7f]
      %s1014 = scalar_lea.vmem %s1, 28
      %v1015 = vld [vmem:[%s1014] sm:$0xf]
      %v1017 = vsel %vm198, %v996, 0
      %v1020 = vsel %vm198, %v997, 0
      %v1023 = vsel %vm198, %v998, 0
      %v1026 = vsel %vm198, %v999, 0
      %v1029 = vsel %vm198, %v1000, 0
      %v1032 = vsel %vm198, %v1001, 0
      %v1035 = vsel %vm198, %v1002, 0
      %v1038 = vsel %vm198, %v1003, 0
      %v1041 = vsel %vm198, %v1004, 0
      %v1044 = vsel %vm255, %v1015, 0
      %1046 = vmatpush.msra.mxu0 0.0
      %1047 = vmatpush.msra.mxu0 0.0
      %1048 = vmatpush.msra.mxu0 0.0
      %1049 = vmatpush.msra.mxu0 0.0
      %1050 = vmatpush.msra.mxu0 0.0
      %1051 = vmatpush.msra.mxu0 0.0
      %1052 = vmatpush.msra.mxu0 0.0
      %1053 = vmatpush.msra.mxu0 0.0
      %1054 = vmatpush.msra.mxu0 0.0
      %1055 = vmatpush.msra.mxu0 0.0
      %1056 = vmatpush.msra.mxu0 0.0
      %1057 = vmatpush.msra.mxu0 0.0
      %1058 = vmatpush.msra.mxu0 0.0
      %1059 = vmatpush.msra.mxu0 0.0
      %1060 = vmatpush.msra.mxu0 0.0
      %1061 = vmatpush.msra.mxu0 %v1044
      %1062 = vmatmul.f32.gmra.mxu0 %v1017
      %v1063 = vpop.f32.mrf.mxu0
      %v1064 = vadd.f32 0.0, %v1063
      %1065 = vmatmul.f32.gmra.mxu0 %v1020
      %v1066 = vpop.f32.mrf.mxu0
      %v1067 = vadd.f32 0.0, %v1066
      %1068 = vmatmul.f32.gmra.mxu0 %v1023
      %v1069 = vpop.f32.mrf.mxu0
      %v1070 = vadd.f32 0.0, %v1069
      %1071 = vmatmul.f32.gmra.mxu0 %v1026
      %v1072 = vpop.f32.mrf.mxu0
      %v1073 = vadd.f32 0.0, %v1072
      %1074 = vmatmul.f32.gmra.mxu0 %v1029
      %v1075 = vpop.f32.mrf.mxu0
      %v1076 = vadd.f32 0.0, %v1075
      %1077 = vmatmul.f32.gmra.mxu0 %v1032
      %v1078 = vpop.f32.mrf.mxu0
      %v1079 = vadd.f32 0.0, %v1078
      %1080 = vmatmul.f32.gmra.mxu0 %v1035
      %v1081 = vpop.f32.mrf.mxu0
      %v1082 = vadd.f32 0.0, %v1081
      %1083 = vmatmul.f32.gmra.mxu0 %v1038
      %v1084 = vpop.f32.mrf.mxu0
      %v1085 = vadd.f32 0.0, %v1084
      %1086 = vmatmul.f32.gmra.mxu0 %v1041
      %v1087 = vpop.f32.mrf.mxu0
      %v1088 = vadd.f32 0.0, %v1087
      %1089 = vdwg.mxu0
      %v1090 = vadd.f32 %v1005, %v1064
      %v1091 = vadd.f32 %v1006, %v1067
      %v1092 = vadd.f32 %v1007, %v1070
      %v1093 = vadd.f32 %v1008, %v1073
      %v1094 = vadd.f32 %v1009, %v1076
      %v1095 = vadd.f32 %v1010, %v1079
      %v1096 = vadd.f32 %v1011, %v1082
      %v1097 = vadd.f32 %v1012, %v1085
      %v1098 = vadd.f32 %v1013, %v1088
      %1099 = vst.msk [vmem:[#allocation2] sm:$0xff] %vm198, %v1090
      %1100 = vst.msk [vmem:[#allocation2 + $0x8] sm:$0xff] %vm198, %v1091
      %1101 = vst.msk [vmem:[#allocation2 + $0x10] sm:$0xff] %vm198, %v1092
      %1102 = vst.msk [vmem:[#allocation2 + $0x18] sm:$0xff] %vm198, %v1093
      %1103 = vst.msk [vmem:[#allocation2 + $0x20] sm:$0xff] %vm198, %v1094
      %1104 = vst.msk [vmem:[#allocation2 + $0x28] sm:$0xff] %vm198, %v1095
      %1105 = vst.msk [vmem:[#allocation2 + $0x30] sm:$0xff] %vm198, %v1096
      %1106 = vst.msk [vmem:[#allocation2 + $0x38] sm:$0xff] %vm198, %v1097
      %1107 = vst.msk [vmem:[#allocation2 + $0x40] sm:$0x7f] %vm207, %v1098
      %v1108 = vld [vmem:[%s192 + $0xa] sm:$0xff]
      %v1109 = vld [vmem:[%s192 + $0x12] sm:$0xff]
      %v1110 = vld [vmem:[%s192 + $0x1a] sm:$0xff]
      %v1111 = vld [vmem:[%s192 + $0x22] sm:$0xff]
      %v1112 = vld [vmem:[%s192 + $0x2a] sm:$0xff]
      %v1113 = vld [vmem:[%s192 + $0x32] sm:$0xff]
      %v1114 = vld [vmem:[%s192 + $0x3a] sm:$0xff]
      %v1115 = vld [vmem:[%s192 + $0x42] sm:$0xff]
      %v1116 = vld [vmem:[%s192 + $0x4a] sm:$0x7f]
      %v1117 = vld [vmem:[#allocation2] sm:$0xff]
      %v1118 = vld [vmem:[#allocation2 + $0x8] sm:$0xff]
      %v1119 = vld [vmem:[#allocation2 + $0x10] sm:$0xff]
      %v1120 = vld [vmem:[#allocation2 + $0x18] sm:$0xff]
      %v1121 = vld [vmem:[#allocation2 + $0x20] sm:$0xff]
      %v1122 = vld [vmem:[#allocation2 + $0x28] sm:$0xff]
      %v1123 = vld [vmem:[#allocation2 + $0x30] sm:$0xff]
      %v1124 = vld [vmem:[#allocation2 + $0x38] sm:$0xff]
      %v1125 = vld [vmem:[#allocation2 + $0x40] sm:$0x7f]
      %s1126 = scalar_lea.vmem %s1, 32
      %v1127 = vld [vmem:[%s1126] sm:$0xf]
      %v1129 = vsel %vm198, %v1108, 0
      %v1132 = vsel %vm198, %v1109, 0
      %v1135 = vsel %vm198, %v1110, 0
      %v1138 = vsel %vm198, %v1111, 0
      %v1141 = vsel %vm198, %v1112, 0
      %v1144 = vsel %vm198, %v1113, 0
      %v1147 = vsel %vm198, %v1114, 0
      %v1150 = vsel %vm198, %v1115, 0
      %v1153 = vsel %vm198, %v1116, 0
      %v1156 = vsel %vm255, %v1127, 0
      %1158 = vmatpush.msra.mxu0 0.0
      %1159 = vmatpush.msra.mxu0 0.0
      %1160 = vmatpush.msra.mxu0 0.0
      %1161 = vmatpush.msra.mxu0 0.0
      %1162 = vmatpush.msra.mxu0 0.0
      %1163 = vmatpush.msra.mxu0 0.0
      %1164 = vmatpush.msra.mxu0 0.0
      %1165 = vmatpush.msra.mxu0 0.0
      %1166 = vmatpush.msra.mxu0 0.0
      %1167 = vmatpush.msra.mxu0 0.0
      %1168 = vmatpush.msra.mxu0 0.0
      %1169 = vmatpush.msra.mxu0 0.0
      %1170 = vmatpush.msra.mxu0 0.0
      %1171 = vmatpush.msra.mxu0 0.0
      %1172 = vmatpush.msra.mxu0 0.0
      %1173 = vmatpush.msra.mxu0 %v1156
      %1174 = vmatmul.f32.gmra.mxu0 %v1129
      %v1175 = vpop.f32.mrf.mxu0
      %v1176 = vadd.f32 0.0, %v1175
      %1177 = vmatmul.f32.gmra.mxu0 %v1132
      %v1178 = vpop.f32.mrf.mxu0
      %v1179 = vadd.f32 0.0, %v1178
      %1180 = vmatmul.f32.gmra.mxu0 %v1135
      %v1181 = vpop.f32.mrf.mxu0
      %v1182 = vadd.f32 0.0, %v1181
      %1183 = vmatmul.f32.gmra.mxu0 %v1138
      %v1184 = vpop.f32.mrf.mxu0
      %v1185 = vadd.f32 0.0, %v1184
      %1186 = vmatmul.f32.gmra.mxu0 %v1141
      %v1187 = vpop.f32.mrf.mxu0
      %v1188 = vadd.f32 0.0, %v1187
      %1189 = vmatmul.f32.gmra.mxu0 %v1144
      %v1190 = vpop.f32.mrf.mxu0
      %v1191 = vadd.f32 0.0, %v1190
      %1192 = vmatmul.f32.gmra.mxu0 %v1147
      %v1193 = vpop.f32.mrf.mxu0
      %v1194 = vadd.f32 0.0, %v1193
      %1195 = vmatmul.f32.gmra.mxu0 %v1150
      %v1196 = vpop.f32.mrf.mxu0
      %v1197 = vadd.f32 0.0, %v1196
      %1198 = vmatmul.f32.gmra.mxu0 %v1153
      %v1199 = vpop.f32.mrf.mxu0
      %v1200 = vadd.f32 0.0, %v1199
      %1201 = vdwg.mxu0
      %v1202 = vadd.f32 %v1117, %v1176
      %v1203 = vadd.f32 %v1118, %v1179
      %v1204 = vadd.f32 %v1119, %v1182
      %v1205 = vadd.f32 %v1120, %v1185
      %v1206 = vadd.f32 %v1121, %v1188
      %v1207 = vadd.f32 %v1122, %v1191
      %v1208 = vadd.f32 %v1123, %v1194
      %v1209 = vadd.f32 %v1124, %v1197
      %v1210 = vadd.f32 %v1125, %v1200
      %1211 = vst.msk [vmem:[#allocation2] sm:$0xff] %vm198, %v1202
      %1212 = vst.msk [vmem:[#allocation2 + $0x8] sm:$0xff] %vm198, %v1203
      %1213 = vst.msk [vmem:[#allocation2 + $0x10] sm:$0xff] %vm198, %v1204
      %1214 = vst.msk [vmem:[#allocation2 + $0x18] sm:$0xff] %vm198, %v1205
      %1215 = vst.msk [vmem:[#allocation2 + $0x20] sm:$0xff] %vm198, %v1206
      %1216 = vst.msk [vmem:[#allocation2 + $0x28] sm:$0xff] %vm198, %v1207
      %1217 = vst.msk [vmem:[#allocation2 + $0x30] sm:$0xff] %vm198, %v1208
      %1218 = vst.msk [vmem:[#allocation2 + $0x38] sm:$0xff] %vm198, %v1209
      %1219 = vst.msk [vmem:[#allocation2 + $0x40] sm:$0x7f] %vm207, %v1210
      %v1220 = vld [vmem:[#allocation2] sm:$0xff]
      %v1221 = vld [vmem:[#allocation2 + $0x8] sm:$0xff]
      %v1222 = vld [vmem:[#allocation2 + $0x10] sm:$0xff]
      %v1223 = vld [vmem:[#allocation2 + $0x18] sm:$0xff]
      %v1224 = vld [vmem:[#allocation2 + $0x20] sm:$0xff]
      %v1225 = vld [vmem:[#allocation2 + $0x28] sm:$0xff]
      %v1226 = vld [vmem:[#allocation2 + $0x30] sm:$0xff]
      %v1227 = vld [vmem:[#allocation2 + $0x38] sm:$0xff]
      %v1228 = vld [vmem:[#allocation2 + $0x40] sm:$0x7f]
      %v1229 = vld [vmem:[%s2] sm:$0x1]
      %v1231 = vperm.slane %v1229, 0
      %v1233 = vmul.f32 %v1220, %v1231
      %v1234 = vmul.f32 %v1221, %v1231
      %v1235 = vmul.f32 %v1222, %v1231
      %v1236 = vmul.f32 %v1223, %v1231
      %v1237 = vmul.f32 %v1224, %v1231
      %v1238 = vmul.f32 %v1225, %v1231
      %v1239 = vmul.f32 %v1226, %v1231
      %v1240 = vmul.f32 %v1227, %v1231
      %v1241 = vmul.f32 %v1228, %v1231
      %v1242 = vld [vmem:[%s3] sm:$0x1]
      %v1244 = vperm.slane %v1242, 0
      %v1246 = vadd.f32 %v1233, %v1244
      %v1247 = vadd.f32 %v1234, %v1244
      %v1248 = vadd.f32 %v1235, %v1244
      %v1249 = vadd.f32 %v1236, %v1244
      %v1250 = vadd.f32 %v1237, %v1244
      %v1251 = vadd.f32 %v1238, %v1244
      %v1252 = vadd.f32 %v1239, %v1244
      %v1253 = vadd.f32 %v1240, %v1244
      %v1254 = vadd.f32 %v1241, %v1244
      %v1255 = vmax.f32 %v1246, 0.0
      %v1256 = vmax.f32 %v1247, 0.0
      %v1257 = vmax.f32 %v1248, 0.0
      %v1258 = vmax.f32 %v1249, 0.0
      %v1259 = vmax.f32 %v1250, 0.0
      %v1260 = vmax.f32 %v1251, 0.0
      %v1261 = vmax.f32 %v1252, 0.0
      %v1262 = vmax.f32 %v1253, 0.0
      %v1263 = vmax.f32 %v1254, 0.0
      %1264 = vst.msk [vmem:[%s197] sm:$0xff] %vm198, %v1255
      %1265 = vst.msk [vmem:[%s197 + $0x8] sm:$0xff] %vm198, %v1256
      %1266 = vst.msk [vmem:[%s197 + $0x10] sm:$0xff] %vm198, %v1257
      %1267 = vst.msk [vmem:[%s197 + $0x18] sm:$0xff] %vm198, %v1258
      %1268 = vst.msk [vmem:[%s197 + $0x20] sm:$0xff] %vm198, %v1259
      %1269 = vst.msk [vmem:[%s197 + $0x28] sm:$0xff] %vm198, %v1260
      %1270 = vst.msk [vmem:[%s197 + $0x30] sm:$0xff] %vm198, %v1261
      %1271 = vst.msk [vmem:[%s197 + $0x38] sm:$0xff] %vm198, %v1262
      %1272 = vst.msk [vmem:[%s197 + $0x40] sm:$0x7f] %vm207, %v1263
      %p1273 = scmp.lt.s32.totalorder %s15, 1
      %s1274 = scalar_select %p1273, %s15, 1
      %s1275 = smul.addr %s1274, 9
      %s1276 = smul.addr %s1275, 8
      %s1277 = scalar_lea.vmem %s4, %s1276
      // Predicated region
      $region37: #{_lambda_.8} parent=35 // pred_check
        %p1278 = pneg %p122
      $region38: #{_lambda_.8} parent=35 // pred_check_branch
        %1280 = sbr.rel (%p1278) target = $region40
      $region39: #{_lambda_.8} parent=35 // pred_region
        _
      $region40: #{_lambda_.8} parent=35 // pred_fallthru
        _
    $region36: #{_lambda_.8} parent=5 // pred_fallthru
      _
    %p1281 = scmp.le.s32.totalorder 2, %s10
    // Predicated region
    $region41: #{_lambda_.8} parent=5 // pred_check
      %p1282 = pneg %p1281
    $region42: #{_lambda_.8} parent=5 // pred_check_branch
      %1284 = sbr.rel (%p1282) target = $region44
    $region43: #{_lambda_.8} parent=5 // pred_region
      %s1285 = ssub.s32 %s10, 2
      // Predicated region
      $region45: #{_lambda_.8} parent=43 // pred_check
        %p1286 = pneg %p128
      $region46: #{_lambda_.8} parent=43 // pred_check_branch
        %1288 = sbr.rel (%p1286) target = $region48
      $region47: #{_lambda_.8} parent=43 // pred_region
        %p1289 = scmp.lt.s32.totalorder %s16, 1
        %s1290 = scalar_select %p1289, %s16, 1
        %s1291 = smul.addr %s1290, 9
        %s1292 = smul.addr %s1291, 8
        %s1293 = scalar_lea.vmem %s4, %s1292
      $region48: #{_lambda_.8} parent=43 // pred_fallthru
        _
    $region44: #{_lambda_.8} parent=5 // pred_fallthru
      _
  $region6: #{_lambda_.8} parent=0 // loop_footer
    %s14 = sadd.s32 1, %s10
  $region7: #{_lambda_.8} parent=0 // loop_footer_branch
    %9 = sbr.rel target = $region3
  $region8: #{_lambda_.8} parent=0 // loop_exit
    _

// kernel: _lambda_.13
$region0: #{_lambda_.13}
  #allocation0 [shape = 'u32[]', space=smem, size = 0x4, offset = 0x4, fixed_abs, tag = 'smem constant byte address 0x4 - core index']
  #allocation1 [shape = 'u32[72,128]{1,0:T(1,128)}', space=vmem, size = 0x9000, scoped, tag = 'internal scratch']
  %s0 = inlined_call_operand.vmem [shape: f32[2,64,98], index: 0, kind: input, shape index: {}]
  %s1 = inlined_call_operand.vmem [shape: f32[98,1], index: 1, kind: input, shape index: {}]
  %s2 = inlined_call_operand.vmem [shape: f32[2,64,16], index: 2, kind: input, shape index: {}]
  %s3 = inlined_call_operand.vmem [shape: f32[2,1,16], index: 3, kind: input, shape index: {}]
  %s4 = inlined_call_operand.vmem [shape: f32[2,64,16], index: 4, kind: input, shape index: {}]
  %s5 = inlined_call_operand.hbm [shape: f32[2,64,16], index: 5, kind: output, shape index: {}]
  %s6 = sld [smem:[#allocation0]]
  $region53: #{_lambda_.13} parent=0
    _
  %s8 = ssub.s32 1, %s6
  %s9 = scalar_select 0, %s8, %s6
  $region1: #{_lambda_.13} parent=0
    #allocation2 [shape = 'u8[65536]{0}', space=vmem, size = 0x10000, scoped, tag = 'output window, operand 0']
    #allocation3 [shape = 's32[2]{0}', space=sflag, size = 0x8, scoped, tag = 'scoped memory for _lambda_.13']
    %10 = vsyncpa [#allocation3], 0
    %s11 = scalar_lea.sflag [#allocation3], 1
    %12 = vsyncpa %s11, 0
    loop: start=0, step=1, limit=4
    $region2: #{_lambda_.13} parent=1 // loop_pre_header
      _
    $region3: #{_lambda_.13} parent=1 // loop_header
      %s14 = sphi 0, %s18
      %p15 = scmp.ge.s32.totalorder %s14, 4
      %s21 = sphi 0, %s33
      %s22 = sphi 0, %s29
      %s23 = sphi 0, %s21
      %s24 = sphi 0, %s22
      %s25 = sphi 0, %s23
      %s26 = sphi 0, %s24
      %s38 = sphi 0, %s40
      %s41 = sphi 0, %s38
      %s42 = sphi 0, %s41
      %s58 = sphi 0, %s42
      %s62 = sphi 0, %s62
      %s64 = sphi 0, %s62
      %s65 = sphi 0, %s64
      %s79 = sphi 0, %s65
      %s87 = sphi 0, %s89
      %s90 = sphi 0, %s87
      %s91 = sphi 0, %s90
      %s107 = sphi 0, %s91
      %s113 = sphi 0, %s115
      %s116 = sphi 0, %s113
      %s117 = sphi 0, %s116
      %s133 = sphi 0, %s117
      %s141 = sphi 0, %s143
      %s144 = sphi 0, %s141
      %s145 = sphi 0, %s144
      %s161 = sphi 0, %s145
      %s169 = sphi 0, %s171
      %s172 = sphi 0, %s169
      %s173 = sphi 0, %s172
      %s189 = sphi 0, %s173
    $region4: #{_lambda_.13} parent=1 // loop_header_branch
      %17 = sbr.rel (%p15) target = $region8
    $region5: #{_lambda_.13} parent=1 // loop_body
      %s19 = ssub.s32 %s14, 1
      %s20 = ssub.s32 %s14, 2
      %s27 = sadd.s32 1, %s22
      %p28 = scmp.ge.s32.totalorder %s27, 1
      %s29 = scalar_select %p28, 0, %s27
      %s30 = sadd.s32 1, %s21
      %s31 = scalar_select %p28, %s30, %s21
      %p32 = scmp.ge.s32.totalorder %s31, 2
      %s33 = scalar_select %p32, 0, %s31
      %s34 = ssub.s32 %s21, %s33
      %s35 = ssub.s32 %s22, %s29
      %s36 = sor.u32 %s34, %s35
      %p37 = scmp.eq.s32.totalorder %s36, 0
      %s39 = sadd.s32 %s38, 1
      %s40 = scalar_select %p37, %s38, %s39
      %p43 = pneg %p37
      %p44 = scmp.eq.s32.totalorder %s14, 1
      %p45 = por %p43, %p44
      %p46 = scmp.ne.s32.totalorder %s38, %s41
      %p47 = scmp.eq.s32.totalorder %s14, 0
      %p48 = por %p46, %p47
      %p49 = scmp.ne.s32.totalorder %s38, %s41
      %p50 = scmp.eq.s32.totalorder %s19, 1
      %p51 = por %p49, %p50
      %p52 = scmp.ne.s32.totalorder %s41, %s42
      %p53 = scmp.eq.s32.totalorder %s19, 0
      %p54 = por %p52, %p53
      %p55 = scmp.ne.s32.totalorder %s41, %s42
      %p56 = scmp.eq.s32.totalorder %s20, 1
      %p57 = por %p55, %p56
      %p59 = scmp.ne.s32.totalorder %s42, %s58
      %p60 = scmp.eq.s32.totalorder %s20, 0
      %p61 = por %p59, %p60
      %s63 = sadd.s32 %s62, 1
      %p66 = scmp.eq.s32.totalorder %s14, 1
      %p67 = scmp.ne.s32.totalorder %s62, %s64
      %p68 = scmp.eq.s32.totalorder %s14, 0
      %p69 = por %p67, %p68
      %p70 = scmp.ne.s32.totalorder %s62, %s64
      %p71 = scmp.eq.s32.totalorder %s19, 1
      %p72 = por %p70, %p71
      %p73 = scmp.ne.s32.totalorder %s64, %s65
      %p74 = scmp.eq.s32.totalorder %s19, 0
      %p75 = por %p73, %p74
      %p76 = scmp.ne.s32.totalorder %s64, %s65
      %p77 = scmp.eq.s32.totalorder %s20, 1
      %p78 = por %p76, %p77
      %p80 = scmp.ne.s32.totalorder %s65, %s79
      %p81 = scmp.eq.s32.totalorder %s20, 0
      %p82 = por %p80, %p81
      %s83 = ssub.s32 %s21, %s33
      %s84 = ssub.s32 %s22, %s29
      %s85 = sor.u32 %s83, %s84
      %p86 = scmp.eq.s32.totalorder %s85, 0
      %s88 = sadd.s32 %s87, 1
      %s89 = scalar_select %p86, %s87, %s88
      %p92 = pneg %p86
      %p93 = scmp.eq.s32.totalorder %s14, 1
      %p94 = por %p92, %p93
      %p95 = scmp.ne.s32.totalorder %s87, %s90
      %p96 = scmp.eq.s32.totalorder %s14, 0
      %p97 = por %p95, %p96
      %p98 = scmp.ne.s32.totalorder %s87, %s90
      %p99 = scmp.eq.s32.totalorder %s19, 1
      %p100 = por %p98, %p99
      %p101 = scmp.ne.s32.totalorder %s90, %s91
      %p102 = scmp.eq.s32.totalorder %s19, 0
      %p103 = por %p101, %p102
      %p104 = scmp.ne.s32.totalorder %s90, %s91
      %p105 = scmp.eq.s32.totalorder %s20, 1
      %p106 = por %p104, %p105
      %p108 = scmp.ne.s32.totalorder %s91, %s107
      %p109 = scmp.eq.s32.totalorder %s20, 0
      %p110 = por %p108, %p109
      %s111 = ssub.s32 %s21, %s33
      %p112 = scmp.eq.s32.totalorder %s111, 0
      %s114 = sadd.s32 %s113, 1
      %s115 = scalar_select %p112, %s113, %s114
      %p118 = pneg %p112
      %p119 = scmp.eq.s32.totalorder %s14, 1
      %p120 = por %p118, %p119
      %p121 = scmp.ne.s32.totalorder %s113, %s116
      %p122 = scmp.eq.s32.totalorder %s14, 0
      %p123 = por %p121, %p122
      %p124 = scmp.ne.s32.totalorder %s113, %s116
      %p125 = scmp.eq.s32.totalorder %s19, 1
      %p126 = por %p124, %p125
      %p127 = scmp.ne.s32.totalorder %s116, %s117
      %p128 = scmp.eq.s32.totalorder %s19, 0
      %p129 = por %p127, %p128
      %p130 = scmp.ne.s32.totalorder %s116, %s117
      %p131 = scmp.eq.s32.totalorder %s20, 1
      %p132 = por %p130, %p131
      %p134 = scmp.ne.s32.totalorder %s117, %s133
      %p135 = scmp.eq.s32.totalorder %s20, 0
      %p136 = por %p134, %p135
      %s137 = ssub.s32 %s21, %s33
      %s138 = ssub.s32 %s22, %s29
      %s139 = sor.u32 %s137, %s138
      %p140 = scmp.eq.s32.totalorder %s139, 0
      %s142 = sadd.s32 %s141, 1
      %s143 = scalar_select %p140, %s141, %s142
      %p146 = pneg %p140
      %p147 = scmp.eq.s32.totalorder %s14, 1
      %p148 = por %p146, %p147
      %p149 = scmp.ne.s32.totalorder %s141, %s144
      %p150 = scmp.eq.s32.totalorder %s14, 0
      %p151 = por %p149, %p150
      %p152 = scmp.ne.s32.totalorder %s141, %s144
      %p153 = scmp.eq.s32.totalorder %s19, 1
      %p154 = por %p152, %p153
      %p155 = scmp.ne.s32.totalorder %s144, %s145
      %p156 = scmp.eq.s32.totalorder %s19, 0
      %p157 = por %p155, %p156
      %p158 = scmp.ne.s32.totalorder %s144, %s145
      %p159 = scmp.eq.s32.totalorder %s20, 1
      %p160 = por %p158, %p159
      %p162 = scmp.ne.s32.totalorder %s145, %s161
      %p163 = scmp.eq.s32.totalorder %s20, 0
      %p164 = por %p162, %p163
      %s165 = ssub.s32 %s21, %s33
      %s166 = ssub.s32 %s22, %s29
      %s167 = sor.u32 %s165, %s166
      %p168 = scmp.eq.s32.totalorder %s167, 0
      %s170 = sadd.s32 %s169, 1
      %s171 = scalar_select %p168, %s169, %s170
      %p174 = pneg %p168
      %p175 = scmp.eq.s32.totalorder %s14, 1
      %p176 = por %p174, %p175
      %p177 = scmp.ne.s32.totalorder %s169, %s172
      %p178 = scmp.eq.s32.totalorder %s14, 0
      %p179 = por %p177, %p178
      %p180 = scmp.ne.s32.totalorder %s169, %s172
      %p181 = scmp.eq.s32.totalorder %s19, 1
      %p182 = por %p180, %p181
      %p183 = scmp.ne.s32.totalorder %s172, %s173
      %p184 = scmp.eq.s32.totalorder %s19, 0
      %p185 = por %p183, %p184
      %p186 = scmp.ne.s32.totalorder %s172, %s173
      %p187 = scmp.eq.s32.totalorder %s20, 1
      %p188 = por %p186, %p187
      %p190 = scmp.ne.s32.totalorder %s173, %s189
      %p191 = scmp.eq.s32.totalorder %s20, 0
      %p192 = por %p190, %p191
      %p193 = scmp.le.s32.totalorder 1, %s14
      %p194 = scmp.lt.s32.totalorder %s14, 3
      %p195 = pnand %p193, %p194
      %p196 = pneg %p195
      // Predicated region
      $region9: #{_lambda_.13} parent=5 // pred_check
        _
      $region10: #{_lambda_.13} parent=5 // pred_check_branch
        %198 = sbr.rel (%p195) target = $region12
      $region11: #{_lambda_.13} parent=5 // pred_region
        %s199 = ssub.s32 %s14, 1
        // Predicated region
        $region13: #{_lambda_.13} parent=11 // pred_check
          %p200 = pneg %p75
        $region14: #{_lambda_.13} parent=11 // pred_check_branch
          %202 = sbr.rel (%p200) target = $region16
        $region15: #{_lambda_.13} parent=11 // pred_region
          _
        $region16: #{_lambda_.13} parent=11 // pred_fallthru
          _
      $region12: #{_lambda_.13} parent=5 // pred_fallthru
        _
      %p203 = scmp.lt.s32.totalorder %s14, 2
      // Predicated region
      $region17: #{_lambda_.13} parent=5 // pred_check
        %p204 = pneg %p203
      $region18: #{_lambda_.13} parent=5 // pred_check_branch
        %206 = sbr.rel (%p204) target = $region20
      $region19: #{_lambda_.13} parent=5 // pred_region
        // Predicated region
        $region21: #{_lambda_.13} parent=19 // pred_check
          %p207 = pneg %p48
        $region22: #{_lambda_.13} parent=19 // pred_check_branch
          %209 = sbr.rel (%p207) target = $region24
        $region23: #{_lambda_.13} parent=19 // pred_region
          %s210 = smul.u32 8, %s22
          %p211 = scmp.lt.s32.totalorder %s21, 1
          %s212 = scalar_select %p211, %s21, 1
          %p213 = scmp.lt.s32.totalorder %s210, 7
          %s214 = scalar_select %p213, %s210, 7
          %s215 = smul.addr %s212, 8
          %s216 = sadd.s32 %s214, %s215
          %s217 = smul.addr %s216, 8
          %s218 = scalar_lea.vmem %s0, %s217
          %s219 = smul.u32 8, %s22
        $region24: #{_lambda_.13} parent=19 // pred_fallthru
          _
        // Predicated region
        $region25: #{_lambda_.13} parent=19 // pred_check
          %p220 = pneg %p97
        $region26: #{_lambda_.13} parent=19 // pred_check_branch
          %222 = sbr.rel (%p220) target = $region28
        $region27: #{_lambda_.13} parent=19 // pred_region
          %s223 = smul.u32 8, %s22
          %p224 = scmp.lt.s32.totalorder %s21, 1
          %s225 = scalar_select %p224, %s21, 1
          %p226 = scmp.lt.s32.totalorder %s223, 7
          %s227 = scalar_select %p226, %s223, 7
          %s228 = smul.addr %s225, 8
          %s229 = sadd.s32 %s227, %s228
          %s230 = smul.addr %s229, 8
          %s231 = scalar_lea.vmem %s2, %s230
          %s232 = smul.u32 8, %s22
        $region28: #{_lambda_.13} parent=19 // pred_fallthru
          _
        // Predicated region
        $region29: #{_lambda_.13} parent=19 // pred_check
          %p233 = pneg %p123
        $region30: #{_lambda_.13} parent=19 // pred_check_branch
          %235 = sbr.rel (%p233) target = $region32
        $region31: #{_lambda_.13} parent=19 // pred_region
          %p236 = scmp.lt.s32.totalorder %s21, 1
          %s237 = scalar_select %p236, %s21, 1
          %s238 = scalar_lea.vmem %s3, %s237
        $region32: #{_lambda_.13} parent=19 // pred_fallthru
          _
        // Predicated region
        $region33: #{_lambda_.13} parent=19 // pred_check
          %p239 = pneg %p151
        $region34: #{_lambda_.13} parent=19 // pred_check_branch
          %241 = sbr.rel (%p239) target = $region36
        $region35: #{_lambda_.13} parent=19 // pred_region
          %s242 = smul.u32 8, %s22
          %p243 = scmp.lt.s32.totalorder %s21, 1
          %s244 = scalar_select %p243, %s21, 1
          %p245 = scmp.lt.s32.totalorder %s242, 7
          %s246 = scalar_select %p245, %s242, 7
          %s247 = smul.addr %s244, 8
          %s248 = sadd.s32 %s246, %s247
          %s249 = smul.addr %s248, 8
          %s250 = scalar_lea.vmem %s4, %s249
          %s251 = smul.u32 8, %s22
        $region36: #{_lambda_.13} parent=19 // pred_fallthru
          _
      $region20: #{_lambda_.13} parent=5 // pred_fallthru
        _
      %p252 = scmp.le.s32.totalorder 1, %s14
      %p253 = scmp.lt.s32.totalorder %s14, 3
      %p254 = pnand %p252, %p253
      %p255 = pneg %p254
      // Predicated region
      $region37: #{_lambda_.13} parent=5 // pred_check
        _
      $region38: #{_lambda_.13} parent=5 // pred_check_branch
        %257 = sbr.rel (%p254) target = $region40
      $region39: #{_lambda_.13} parent=5 // pred_region
        %s258 = ssub.s32 %s14, 1
        %s259 = smul.u32 8, %s24
        %p260 = scmp.lt.s32.totalorder %s23, 1
        %s261 = scalar_select %p260, %s23, 1
        %p262 = scmp.lt.s32.totalorder %s259, 7
        %s263 = scalar_select %p262, %s259, 7
        %s264 = smul.addr %s261, 8
        %s265 = sadd.s32 %s263, %s264
        %s266 = smul.addr %s265, 8
        %s267 = scalar_lea.vmem %s0, %s266
        %p268 = pneg %p54
        %p269 = pneg %p51
        %p270 = pneg %p75
        %p271 = pneg %p72
        %s272 = smul.u32 8, %s24
        %p273 = scmp.lt.s32.totalorder %s23, 1
        %s274 = scalar_select %p273, %s23, 1
        %p275 = scmp.lt.s32.totalorder %s272, 7
        %s276 = scalar_select %p275, %s272, 7
        %s277 = smul.addr %s274, 8
        %s278 = sadd.s32 %s276, %s277
        %s279 = smul.addr %s278, 8
        %s280 = scalar_lea.vmem %s2, %s279
        %p281 = pneg %p103
        %p282 = pneg %p100
        %p283 = scmp.lt.s32.totalorder %s23, 1
        %s284 = scalar_select %p283, %s23, 1
        %s285 = scalar_lea.vmem %s3, %s284
        %p286 = pneg %p129
        %p287 = pneg %p126
        %s288 = smul.u32 8, %s24
        %p289 = scmp.lt.s32.totalorder %s23, 1
        %s290 = scalar_select %p289, %s23, 1
        %p291 = scmp.lt.s32.totalorder %s288, 7
        %s292 = scalar_select %p291, %s288, 7
        %s293 = smul.addr %s290, 8
        %s294 = sadd.s32 %s292, %s293
        %s295 = smul.addr %s294, 8
        %s296 = scalar_lea.vmem %s4, %s295
        %p297 = pneg %p157
        %p298 = pneg %p154
        %p299 = pneg %p185
        %p300 = pneg %p182
        %s301 = sand.u32 %s172, 1
        %s302 = scalar_lea.sflag [#allocation3], %s301
        %s303 = sand.u32 %s172, 1
        %s304 = smul.addr %s303, 64
        %s305 = scalar_lea.vmem [#allocation2], %s304
        %s306 = smul.u32 8, %s24
        %p307 = scmp.lt.s32.totalorder %s23, 1
        %s308 = scalar_select %p307, %s23, 1
        %p309 = scmp.lt.s32.totalorder %s306, 7
        %s310 = scalar_select %p309, %s306, 7
        %s311 = smul.addr %s308, 8
        %s312 = sadd.s32 %s310, %s311
        %s313 = smul.addr %s312, 8
        %s314 = scalar_lea.vmem %s0, %s313
        %s315 = smul.u32 8, %s24
        %s316 = smul.u32 8, %s24
        %p317 = scmp.lt.s32.totalorder %s23, 1
        %s318 = scalar_select %p317, %s23, 1
        %p319 = scmp.lt.s32.totalorder %s316, 7
        %s320 = scalar_select %p319, %s316, 7
        %s321 = smul.addr %s318, 8
        %s322 = sadd.s32 %s320, %s321
        %s323 = smul.addr %s322, 8
        %s324 = scalar_lea.vmem %s2, %s323
        %s325 = smul.u32 8, %s24
        %p326 = scmp.lt.s32.totalorder %s23, 1
        %s327 = scalar_select %p326, %s23, 1
        %s328 = scalar_lea.vmem %s3, %s327
        %s329 = smul.u32 8, %s24
        %p330 = scmp.lt.s32.totalorder %s23, 1
        %s331 = scalar_select %p330, %s23, 1
        %p332 = scmp.lt.s32.totalorder %s329, 7
        %s333 = scalar_select %p332, %s329, 7
        %s334 = smul.addr %s331, 8
        %s335 = sadd.s32 %s333, %s334
        %s336 = smul.addr %s335, 8
        %s337 = scalar_lea.vmem %s4, %s336
        %s338 = smul.u32 8, %s24
        %s339 = smul.u32 8, %s24
        %v340 = vld [vmem:[%s314] sm:$0xff]
        %v341 = vld [vmem:[%s314 + $0x8] sm:$0xff]
        %v342 = vld [vmem:[%s314 + $0x10] sm:$0xff]
        %v343 = vld [vmem:[%s314 + $0x18] sm:$0xff]
        %v344 = vld [vmem:[%s314 + $0x20] sm:$0xff]
        %v345 = vld [vmem:[%s314 + $0x28] sm:$0xff]
        %v346 = vld [vmem:[%s314 + $0x30] sm:$0xff]
        %v347 = vld [vmem:[%s314 + $0x38] sm:$0xff]
        %v348 = vld [vmem:[%s1] sm:$0xff]
        %v349 = vld [vmem:[%s1 + $0x8] sm:$0xff]
        %v350 = vld [vmem:[%s1 + $0x10] sm:$0xff]
        %v351 = vld [vmem:[%s1 + $0x18] sm:$0xff]
        %v352 = vld [vmem:[%s1 + $0x20] sm:$0xff]
        %v353 = vld [vmem:[%s1 + $0x28] sm:$0xff]
        %v354 = vld [vmem:[%s1 + $0x30] sm:$0xff]
        %v355 = vld [vmem:[%s1 + $0x38] sm:$0xff]
        %v356 = vld [vmem:[%s1 + $0x40] sm:$0xff]
        %v357 = vld [vmem:[%s1 + $0x48] sm:$0xff]
        %v358 = vld [vmem:[%s1 + $0x50] sm:$0xff]
        %v359 = vld [vmem:[%s1 + $0x58] sm:$0xff]
        %v360 = vld [vmem:[%s1 + $0x60] sm:$0x3]
        %vm361 = vcmask 801792
        %v363 = vsel %vm361, %v340, 0
        %v366 = vsel %vm361, %v341, 0
        %v369 = vsel %vm361, %v342, 0
        %v372 = vsel %vm361, %v343, 0
        %v375 = vsel %vm361, %v344, 0
        %v378 = vsel %vm361, %v345, 0
        %v381 = vsel %vm361, %v346, 0
        %v384 = vsel %vm361, %v347, 0
        %vm386 = vcmask 1041408
        %v388 = vsel %vm386, %v360, 0
        %390 = vmatpush.msra.mxu0 0.0
        %391 = vmatpush.msra.mxu0 0.0
        %392 = vmatpush.msra.mxu0 0.0
        %393 = vmatpush.msra.mxu0 %v388
        %394 = vmatpush.msra.mxu0 %v359
        %395 = vmatpush.msra.mxu0 %v358
        %396 = vmatpush.msra.mxu0 %v357
        %397 = vmatpush.msra.mxu0 %v356
        %398 = vmatpush.msra.mxu0 %v355
        %399 = vmatpush.msra.mxu0 %v354
        %400 = vmatpush.msra.mxu0 %v353
        %401 = vmatpush.msra.mxu0 %v352
        %402 = vmatpush.msra.mxu0 %v351
        %403 = vmatpush.msra.mxu0 %v350
        %404 = vmatpush.msra.mxu0 %v349
        %405 = vmatpush.msra.mxu0 %v348
        %406 = vmatmul.f32.gmra.mxu0 %v363
        %v407 = vpop.f32.mrf.mxu0
        %v408 = vadd.f32 0.0, %v407
        %409 = vmatmul.f32.gmra.mxu0 %v366
        %v410 = vpop.f32.mrf.mxu0
        %v411 = vadd.f32 0.0, %v410
        %412 = vmatmul.f32.gmra.mxu0 %v369
        %v413 = vpop.f32.mrf.mxu0
        %v414 = vadd.f32 0.0, %v413
        %415 = vmatmul.f32.gmra.mxu0 %v372
        %v416 = vpop.f32.mrf.mxu0
        %v417 = vadd.f32 0.0, %v416
        %418 = vmatmul.f32.gmra.mxu0 %v375
        %v419 = vpop.f32.mrf.mxu0
        %v420 = vadd.f32 0.0, %v419
        %421 = vmatmul.f32.gmra.mxu0 %v378
        %v422 = vpop.f32.mrf.mxu0
        %v423 = vadd.f32 0.0, %v422
        %424 = vmatmul.f32.gmra.mxu0 %v381
        %v425 = vpop.f32.mrf.mxu0
        %v426 = vadd.f32 0.0, %v425
        %427 = vmatmul.f32.gmra.mxu0 %v384
        %v428 = vpop.f32.mrf.mxu0
        %v429 = vadd.f32 0.0, %v428
        %430 = vdwg.mxu0
        %v431 = vsub.f32 0.0, %v408
        %v432 = vsub.f32 0.0, %v411
        %v433 = vsub.f32 0.0, %v414
        %v434 = vsub.f32 0.0, %v417
        %v435 = vsub.f32 0.0, %v420
        %v436 = vsub.f32 0.0, %v423
        %v437 = vsub.f32 0.0, %v426
        %v438 = vsub.f32 0.0, %v429
        %v439 = vmul.f32 %v431, 1.442695
        %v440 = vpow.pop %v439
        %v441 = vmul.f32 %v432, 1.442695
        %v442 = vpow.pop %v441
        %v443 = vmul.f32 %v433, 1.442695
        %v444 = vpow.pop %v443
        %v445 = vmul.f32 %v434, 1.442695
        %v446 = vpow.pop %v445
        %v447 = vmul.f32 %v435, 1.442695
        %v448 = vpow.pop %v447
        %v449 = vmul.f32 %v436, 1.442695
        %v450 = vpow.pop %v449
        %v451 = vmul.f32 %v437, 1.442695
        %v452 = vpow.pop %v451
        %v453 = vmul.f32 %v438, 1.442695
        %v454 = vpow.pop %v453
        %v455 = vadd.f32 %v440, 1.0
        %v456 = vadd.f32 %v442, 1.0
        %v457 = vadd.f32 %v444, 1.0
        %v458 = vadd.f32 %v446, 1.0
        %v459 = vadd.f32 %v448, 1.0
        %v460 = vadd.f32 %v450, 1.0
        %v461 = vadd.f32 %v452, 1.0
        %v462 = vadd.f32 %v454, 1.0
        %v463 = vrcp.pop %v455
        %v464 = vmul.f32 %v455, %v463
        %v465 = vsub.f32 1.0, %v464
        %v466 = vmul.f32 %v463, %v465
        %v467 = vadd.f32 %v463, %v466
        %vm468 = vweird.f32 %v455
        %vm469 = vweird.f32 %v463
        %vm470 = vmor %vm468, %vm469
        %v471 = vsel %vm470, %v463, %v467
        %v472 = vand.u32 2147483647, %v455
        %vm473 = vcmp.eq.f32.partialorder %v472, 8.507059e+37
        %v474 = vand.u32 %v455, 2147483648
        %v475 = vor.u32 1.1754944e-38, %v474
        %v476 = vsel %vm473, %v475, %v471
        %v477 = vmul.f32 1.0, %v476
        %v478 = vrcp.pop %v456
        %v479 = vmul.f32 %v456, %v478
        %v480 = vsub.f32 1.0, %v479
        %v481 = vmul.f32 %v478, %v480
        %v482 = vadd.f32 %v478, %v481
        %vm483 = vweird.f32 %v456
        %vm484 = vweird.f32 %v478
        %vm485 = vmor %vm483, %vm484
        %v486 = vsel %vm485, %v478, %v482
        %v487 = vand.u32 2147483647, %v456
        %vm488 = vcmp.eq.f32.partialorder %v487, 8.507059e+37
        %v489 = vand.u32 %v456, 2147483648
        %v490 = vor.u32 1.1754944e-38, %v489
        %v491 = vsel %vm488, %v490, %v486
        %v492 = vmul.f32 1.0, %v491
        %v493 = vrcp.pop %v457
        %v494 = vmul.f32 %v457, %v493
        %v495 = vsub.f32 1.0, %v494
        %v496 = vmul.f32 %v493, %v495
        %v497 = vadd.f32 %v493, %v496
        %vm498 = vweird.f32 %v457
        %vm499 = vweird.f32 %v493
        %vm500 = vmor %vm498, %vm499
        %v501 = vsel %vm500, %v493, %v497
        %v502 = vand.u32 2147483647, %v457
        %vm503 = vcmp.eq.f32.partialorder %v502, 8.507059e+37
        %v504 = vand.u32 %v457, 2147483648
        %v505 = vor.u32 1.1754944e-38, %v504
        %v506 = vsel %vm503, %v505, %v501
        %v507 = vmul.f32 1.0, %v506
        %v508 = vrcp.pop %v458
        %v509 = vmul.f32 %v458, %v508
        %v510 = vsub.f32 1.0, %v509
        %v511 = vmul.f32 %v508, %v510
        %v512 = vadd.f32 %v508, %v511
        %vm513 = vweird.f32 %v458
        %vm514 = vweird.f32 %v508
        %vm515 = vmor %vm513, %vm514
        %v516 = vsel %vm515, %v508, %v512
        %v517 = vand.u32 2147483647, %v458
        %vm518 = vcmp.eq.f32.partialorder %v517, 8.507059e+37
        %v519 = vand.u32 %v458, 2147483648
        %v520 = vor.u32 1.1754944e-38, %v519
        %v521 = vsel %vm518, %v520, %v516
        %v522 = vmul.f32 1.0, %v521
        %v523 = vrcp.pop %v459
        %v524 = vmul.f32 %v459, %v523
        %v525 = vsub.f32 1.0, %v524
        %v526 = vmul.f32 %v523, %v525
        %v527 = vadd.f32 %v523, %v526
        %vm528 = vweird.f32 %v459
        %vm529 = vweird.f32 %v523
        %vm530 = vmor %vm528, %vm529
        %v531 = vsel %vm530, %v523, %v527
        %v532 = vand.u32 2147483647, %v459
        %vm533 = vcmp.eq.f32.partialorder %v532, 8.507059e+37
        %v534 = vand.u32 %v459, 2147483648
        %v535 = vor.u32 1.1754944e-38, %v534
        %v536 = vsel %vm533, %v535, %v531
        %v537 = vmul.f32 1.0, %v536
        %v538 = vrcp.pop %v460
        %v539 = vmul.f32 %v460, %v538
        %v540 = vsub.f32 1.0, %v539
        %v541 = vmul.f32 %v538, %v540
        %v542 = vadd.f32 %v538, %v541
        %vm543 = vweird.f32 %v460
        %vm544 = vweird.f32 %v538
        %vm545 = vmor %vm543, %vm544
        %v546 = vsel %vm545, %v538, %v542
        %v547 = vand.u32 2147483647, %v460
        %vm548 = vcmp.eq.f32.partialorder %v547, 8.507059e+37
        %v549 = vand.u32 %v460, 2147483648
        %v550 = vor.u32 1.1754944e-38, %v549
        %v551 = vsel %vm548, %v550, %v546
        %v552 = vmul.f32 1.0, %v551
        %v553 = vrcp.pop %v461
        %v554 = vmul.f32 %v461, %v553
        %v555 = vsub.f32 1.0, %v554
        %v556 = vmul.f32 %v553, %v555
        %v557 = vadd.f32 %v553, %v556
        %vm558 = vweird.f32 %v461
        %vm559 = vweird.f32 %v553
        %vm560 = vmor %vm558, %vm559
        %v561 = vsel %vm560, %v553, %v557
        %v562 = vand.u32 2147483647, %v461
        %vm563 = vcmp.eq.f32.partialorder %v562, 8.507059e+37
        %v564 = vand.u32 %v461, 2147483648
        %v565 = vor.u32 1.1754944e-38, %v564
        %v566 = vsel %vm563, %v565, %v561
        %v567 = vmul.f32 1.0, %v566
        %v568 = vrcp.pop %v462
        %v569 = vmul.f32 %v462, %v568
        %v570 = vsub.f32 1.0, %v569
        %v571 = vmul.f32 %v568, %v570
        %v572 = vadd.f32 %v568, %v571
        %vm573 = vweird.f32 %v462
        %vm574 = vweird.f32 %v568
        %vm575 = vmor %vm573, %vm574
        %v576 = vsel %vm575, %v568, %v572
        %v577 = vand.u32 2147483647, %v462
        %vm578 = vcmp.eq.f32.partialorder %v577, 8.507059e+37
        %v579 = vand.u32 %v462, 2147483648
        %v580 = vor.u32 1.1754944e-38, %v579
        %v581 = vsel %vm578, %v580, %v576
        %v582 = vmul.f32 1.0, %v581
        %v583 = vld [vmem:[%s324] sm:$0xff]
        %v584 = vld [vmem:[%s324 + $0x8] sm:$0xff]
        %v585 = vld [vmem:[%s324 + $0x10] sm:$0xff]
        %v586 = vld [vmem:[%s324 + $0x18] sm:$0xff]
        %v587 = vld [vmem:[%s324 + $0x20] sm:$0xff]
        %v588 = vld [vmem:[%s324 + $0x28] sm:$0xff]
        %v589 = vld [vmem:[%s324 + $0x30] sm:$0xff]
        %v590 = vld [vmem:[%s324 + $0x38] sm:$0xff]
        %v591 = vld [vmem:[%s328] sm:$0x1]
        %v593 = vperm.slane %v591, 0
        %v595 = vmul.f32 %v583, %v593
        %v596 = vmul.f32 %v584, %v593
        %v597 = vmul.f32 %v585, %v593
        %v598 = vmul.f32 %v586, %v593
        %v599 = vmul.f32 %v587, %v593
        %v600 = vmul.f32 %v588, %v593
        %v601 = vmul.f32 %v589, %v593
        %v602 = vmul.f32 %v590, %v593
        %604 = vset.pattern.permute.xlu0 0
        %605 = vperm.xlu0 %604, %v477
        %v606 = vpop.permute.xlu0 %605
        %609 = vset.pattern.permute.xlu0 0
        %610 = vperm.xlu0 %609, %v492
        %v611 = vpop.permute.xlu0 %610
        %614 = vset.pattern.permute.xlu0 0
        %615 = vperm.xlu0 %614, %v507
        %v616 = vpop.permute.xlu0 %615
        %619 = vset.pattern.permute.xlu0 0
        %620 = vperm.xlu0 %619, %v522
        %v621 = vpop.permute.xlu0 %620
        %624 = vset.pattern.permute.xlu0 0
        %625 = vperm.xlu0 %624, %v537
        %v626 = vpop.permute.xlu0 %625
        %629 = vset.pattern.permute.xlu0 0
        %630 = vperm.xlu0 %629, %v552
        %v631 = vpop.permute.xlu0 %630
        %634 = vset.pattern.permute.xlu0 0
        %635 = vperm.xlu0 %634, %v567
        %v636 = vpop.permute.xlu0 %635
        %639 = vset.pattern.permute.xlu0 0
        %640 = vperm.xlu0 %639, %v582
        %v641 = vpop.permute.xlu0 %640
        %v643 = vmul.f32 %v606, %v595
        %v644 = vmul.f32 %v611, %v596
        %v645 = vmul.f32 %v616, %v597
        %v646 = vmul.f32 %v621, %v598
        %v647 = vmul.f32 %v626, %v599
        %v648 = vmul.f32 %v631, %v600
        %v649 = vmul.f32 %v636, %v601
        %v650 = vmul.f32 %v641, %v602
        %v651 = vld [vmem:[%s337] sm:$0xff]
        %v652 = vld [vmem:[%s337 + $0x8] sm:$0xff]
        %v653 = vld [vmem:[%s337 + $0x10] sm:$0xff]
        %v654 = vld [vmem:[%s337 + $0x18] sm:$0xff]
        %v655 = vld [vmem:[%s337 + $0x20] sm:$0xff]
        %v656 = vld [vmem:[%s337 + $0x28] sm:$0xff]
        %v657 = vld [vmem:[%s337 + $0x30] sm:$0xff]
        %v658 = vld [vmem:[%s337 + $0x38] sm:$0xff]
        %v659 = vadd.f32 %v643, %v651
        %v660 = vadd.f32 %v644, %v652
        %v661 = vadd.f32 %v645, %v653
        %v662 = vadd.f32 %v646, %v654
        %v663 = vadd.f32 %v647, %v655
        %v664 = vadd.f32 %v648, %v656
        %v665 = vadd.f32 %v649, %v657
        %v666 = vadd.f32 %v650, %v658
        %v667 = vmax.f32 %v659, 0.0
        %v668 = vmax.f32 %v660, 0.0
        %v669 = vmax.f32 %v661, 0.0
        %v670 = vmax.f32 %v662, 0.0
        %v671 = vmax.f32 %v663, 0.0
        %v672 = vmax.f32 %v664, 0.0
        %v673 = vmax.f32 %v665, 0.0
        %v674 = vmax.f32 %v666, 0.0
        %vm675 = vcmask 130048
        %676 = vst.msk [vmem:[%s305] sm:$0xff] %vm675, %v667
        %677 = vst.msk [vmem:[%s305 + $0x8] sm:$0xff] %vm675, %v668
        %678 = vst.msk [vmem:[%s305 + $0x10] sm:$0xff] %vm675, %v669
        %679 = vst.msk [vmem:[%s305 + $0x18] sm:$0xff] %vm675, %v670
        %680 = vst.msk [vmem:[%s305 + $0x20] sm:$0xff] %vm675, %v671
        %681 = vst.msk [vmem:[%s305 + $0x28] sm:$0xff] %vm675, %v672
        %682 = vst.msk [vmem:[%s305 + $0x30] sm:$0xff] %vm675, %v673
        %683 = vst.msk [vmem:[%s305 + $0x38] sm:$0xff] %vm675, %v674
        %s684 = sand.u32 %s172, 1
        %s685 = scalar_lea.sflag [#allocation3], %s684
        %s686 = sand.u32 %s172, 1
        %s687 = smul.addr %s686, 64
        %s688 = scalar_lea.vmem [#allocation2], %s687
        // Predicated region
        $region41: #{_lambda_.13} parent=39 // pred_check
          %p689 = pneg %p182
        $region42: #{_lambda_.13} parent=39 // pred_check_branch
          %691 = sbr.rel (%p689) target = $region44
        $region43: #{_lambda_.13} parent=39 // pred_region
          %s692 = smul.u32 8, %s24
          %694 = vsyncadd %s685, 0
          %s695 = smul.addr %s23, 8
          %s696 = sadd.s32 %s692, %s695
          %s697 = smul.addr %s696, 8
          %s698 = scalar_lea.hbm %s5, %s697
          %s699 = sshll.u32 %s688, 4
          %s700 = int_to_ptr.vmem [resolvable:$true] %s699
          %s701 = sshll.u32 %s698, 4
          %s702 = int_to_ptr.hbm [resolvable:$true] %s701
          %707 = dma.vmem_to_hbm [thread:$0]  %s700, 1024, %s702, %s685, 128, 128, 8
        $region44: #{_lambda_.13} parent=39 // pred_fallthru
          _
      $region40: #{_lambda_.13} parent=5 // pred_fallthru
        _
      %p708 = scmp.le.s32.totalorder 2, %s14
      // Predicated region
      $region45: #{_lambda_.13} parent=5 // pred_check
        %p709 = pneg %p708
      $region46: #{_lambda_.13} parent=5 // pred_check_branch
        %711 = sbr.rel (%p709) target = $region48
      $region47: #{_lambda_.13} parent=5 // pred_region
        %s712 = ssub.s32 %s14, 2
        // Predicated region
        $region49: #{_lambda_.13} parent=47 // pred_check
          %p713 = pneg %p188
        $region50: #{_lambda_.13} parent=47 // pred_check_branch
          %715 = sbr.rel (%p713) target = $region52
        $region51: #{_lambda_.13} parent=47 // pred_region
          %s716 = sand.u32 %s173, 1
          %s717 = scalar_lea.sflag [#allocation3], %s716
          %s718 = sand.u32 %s173, 1
          %s719 = smul.addr %s718, 64
          %s720 = scalar_lea.vmem [#allocation2], %s719
          %722 = dma.done %s717, 1024
        $region52: #{_lambda_.13} parent=47 // pred_fallthru
          _
      $region48: #{_lambda_.13} parent=5 // pred_fallthru
        _
    $region6: #{_lambda_.13} parent=1 // loop_footer
      %s18 = sadd.s32 1, %s14
    $region7: #{_lambda_.13} parent=1 // loop_footer_branch
      %13 = sbr.rel target = $region3
    $region8: #{_lambda_.13} parent=1 // loop_exit
      _
    %723 = vsyncpa [#allocation3], 1
    %s724 = scalar_lea.sflag [#allocation3], 1
    %725 = vsyncpa %s724, 1

// kernel: _lambda_.10
$region0: #{_lambda_.10}
  #allocation0 [shape = 'u32[]', space=smem, size = 0x4, offset = 0x4, fixed_abs, tag = 'smem constant byte address 0x4 - core index']
  #allocation1 [shape = 'u32[72,128]{1,0:T(1,128)}', space=vmem, size = 0x9000, scoped, tag = 'internal scratch']
  %s0 = inlined_call_operand.vmem [shape: f32[128,8], index: 0, kind: input, shape index: {}]
  %s1 = inlined_call_operand.vmem [shape: f32[8,16], index: 1, kind: input, shape index: {}]
  %s2 = inlined_call_operand.vmem [shape: f32[1,16], index: 2, kind: input, shape index: {}]
  %s3 = inlined_call_operand.vmem [shape: f32[1,16], index: 3, kind: input, shape index: {}]
  %s4 = inlined_call_operand.vmem [shape: f32[128,16], index: 4, kind: output, shape index: {}]
  %s5 = sld [smem:[#allocation0]]
  $region26: #{_lambda_.10} parent=0
    _
  %s7 = ssub.s32 1, %s5
  %s8 = scalar_select 0, %s7, %s5
  // Predicated region
  $region2: #{_lambda_.10} parent=0 // pred_check
    _
  $region3: #{_lambda_.10} parent=0 // pred_check_branch
    %10 = sbr.rel (0) target = $region5
  $region4: #{_lambda_.10} parent=0 // pred_region
    _
  $region5: #{_lambda_.10} parent=0 // pred_fallthru
    _
  // Predicated region
  $region6: #{_lambda_.10} parent=0 // pred_check
    _
  $region7: #{_lambda_.10} parent=0 // pred_check_branch
    %12 = sbr.rel (0) target = $region9
  $region8: #{_lambda_.10} parent=0 // pred_region
    _
  $region9: #{_lambda_.10} parent=0 // pred_fallthru
    _
  // Predicated region
  $region10: #{_lambda_.10} parent=0 // pred_check
    _
  $region11: #{_lambda_.10} parent=0 // pred_check_branch
    %14 = sbr.rel (0) target = $region13
  $region12: #{_lambda_.10} parent=0 // pred_region
    _
  $region13: #{_lambda_.10} parent=0 // pred_fallthru
    _
  // Predicated region
  $region14: #{_lambda_.10} parent=0 // pred_check
    _
  $region15: #{_lambda_.10} parent=0 // pred_check_branch
    %16 = sbr.rel (0) target = $region17
  $region16: #{_lambda_.10} parent=0 // pred_region
    _
  $region17: #{_lambda_.10} parent=0 // pred_fallthru
    _
  %v17 = vld [vmem:[%s0] sm:$0xff]
  %v18 = vld [vmem:[%s0 + $0x8] sm:$0xff]
  %v19 = vld [vmem:[%s0 + $0x10] sm:$0xff]
  %v20 = vld [vmem:[%s0 + $0x18] sm:$0xff]
  %v21 = vld [vmem:[%s0 + $0x20] sm:$0xff]
  %v22 = vld [vmem:[%s0 + $0x28] sm:$0xff]
  %v23 = vld [vmem:[%s0 + $0x30] sm:$0xff]
  %v24 = vld [vmem:[%s0 + $0x38] sm:$0xff]
  %v25 = vld [vmem:[%s0 + $0x40] sm:$0xff]
  %v26 = vld [vmem:[%s0 + $0x48] sm:$0xff]
  %v27 = vld [vmem:[%s0 + $0x50] sm:$0xff]
  %v28 = vld [vmem:[%s0 + $0x58] sm:$0xff]
  %v29 = vld [vmem:[%s0 + $0x60] sm:$0xff]
  %v30 = vld [vmem:[%s0 + $0x68] sm:$0xff]
  %v31 = vld [vmem:[%s0 + $0x70] sm:$0xff]
  %v32 = vld [vmem:[%s0 + $0x78] sm:$0xff]
  %v33 = vld [vmem:[%s1] sm:$0xff]
  %vm34 = vcmask 64512
  %v36 = vsel %vm34, %v17, 0
  %v39 = vsel %vm34, %v18, 0
  %v42 = vsel %vm34, %v19, 0
  %v45 = vsel %vm34, %v20, 0
  %v48 = vsel %vm34, %v21, 0
  %v51 = vsel %vm34, %v22, 0
  %v54 = vsel %vm34, %v23, 0
  %v57 = vsel %vm34, %v24, 0
  %v60 = vsel %vm34, %v25, 0
  %v63 = vsel %vm34, %v26, 0
  %v66 = vsel %vm34, %v27, 0
  %v69 = vsel %vm34, %v28, 0
  %v72 = vsel %vm34, %v29, 0
  %v75 = vsel %vm34, %v30, 0
  %v78 = vsel %vm34, %v31, 0
  %v81 = vsel %vm34, %v32, 0
  %83 = vmatpush.msra.mxu0 0.0
  %84 = vmatpush.msra.mxu0 0.0
  %85 = vmatpush.msra.mxu0 0.0
  %86 = vmatpush.msra.mxu0 0.0
  %87 = vmatpush.msra.mxu0 0.0
  %88 = vmatpush.msra.mxu0 0.0
  %89 = vmatpush.msra.mxu0 0.0
  %90 = vmatpush.msra.mxu0 0.0
  %91 = vmatpush.msra.mxu0 0.0
  %92 = vmatpush.msra.mxu0 0.0
  %93 = vmatpush.msra.mxu0 0.0
  %94 = vmatpush.msra.mxu0 0.0
  %95 = vmatpush.msra.mxu0 0.0
  %96 = vmatpush.msra.mxu0 0.0
  %97 = vmatpush.msra.mxu0 0.0
  %98 = vmatpush.msra.mxu0 %v33
  %99 = vmatmul.f32.gmra.mxu0 %v36
  %v100 = vpop.f32.mrf.mxu0
  %v101 = vadd.f32 0.0, %v100
  %102 = vmatmul.f32.gmra.mxu0 %v39
  %v103 = vpop.f32.mrf.mxu0
  %v104 = vadd.f32 0.0, %v103
  %105 = vmatmul.f32.gmra.mxu0 %v42
  %v106 = vpop.f32.mrf.mxu0
  %v107 = vadd.f32 0.0, %v106
  %108 = vmatmul.f32.gmra.mxu0 %v45
  %v109 = vpop.f32.mrf.mxu0
  %v110 = vadd.f32 0.0, %v109
  %111 = vmatmul.f32.gmra.mxu0 %v48
  %v112 = vpop.f32.mrf.mxu0
  %v113 = vadd.f32 0.0, %v112
  %114 = vmatmul.f32.gmra.mxu0 %v51
  %v115 = vpop.f32.mrf.mxu0
  %v116 = vadd.f32 0.0, %v115
  %117 = vmatmul.f32.gmra.mxu0 %v54
  %v118 = vpop.f32.mrf.mxu0
  %v119 = vadd.f32 0.0, %v118
  %120 = vmatmul.f32.gmra.mxu0 %v57
  %v121 = vpop.f32.mrf.mxu0
  %v122 = vadd.f32 0.0, %v121
  %123 = vmatmul.f32.gmra.mxu0 %v60
  %v124 = vpop.f32.mrf.mxu0
  %v125 = vadd.f32 0.0, %v124
  %126 = vmatmul.f32.gmra.mxu0 %v63
  %v127 = vpop.f32.mrf.mxu0
  %v128 = vadd.f32 0.0, %v127
  %129 = vmatmul.f32.gmra.mxu0 %v66
  %v130 = vpop.f32.mrf.mxu0
  %v131 = vadd.f32 0.0, %v130
  %132 = vmatmul.f32.gmra.mxu0 %v69
  %v133 = vpop.f32.mrf.mxu0
  %v134 = vadd.f32 0.0, %v133
  %135 = vmatmul.f32.gmra.mxu0 %v72
  %v136 = vpop.f32.mrf.mxu0
  %v137 = vadd.f32 0.0, %v136
  %138 = vmatmul.f32.gmra.mxu0 %v75
  %v139 = vpop.f32.mrf.mxu0
  %v140 = vadd.f32 0.0, %v139
  %141 = vmatmul.f32.gmra.mxu0 %v78
  %v142 = vpop.f32.mrf.mxu0
  %v143 = vadd.f32 0.0, %v142
  %144 = vmatmul.f32.gmra.mxu0 %v81
  %v145 = vpop.f32.mrf.mxu0
  %v146 = vadd.f32 0.0, %v145
  %147 = vdwg.mxu0
  %v148 = vld [vmem:[%s2] sm:$0x1]
  %v150 = vperm.slane %v148, 0
  %v152 = vmul.f32 %v101, %v150
  %v153 = vmul.f32 %v104, %v150
  %v154 = vmul.f32 %v107, %v150
  %v155 = vmul.f32 %v110, %v150
  %v156 = vmul.f32 %v113, %v150
  %v157 = vmul.f32 %v116, %v150
  %v158 = vmul.f32 %v119, %v150
  %v159 = vmul.f32 %v122, %v150
  %v160 = vmul.f32 %v125, %v150
  %v161 = vmul.f32 %v128, %v150
  %v162 = vmul.f32 %v131, %v150
  %v163 = vmul.f32 %v134, %v150
  %v164 = vmul.f32 %v137, %v150
  %v165 = vmul.f32 %v140, %v150
  %v166 = vmul.f32 %v143, %v150
  %v167 = vmul.f32 %v146, %v150
  %v168 = vld [vmem:[%s3] sm:$0x1]
  %v170 = vperm.slane %v168, 0
  %v172 = vadd.f32 %v152, %v170
  %v173 = vadd.f32 %v153, %v170
  %v174 = vadd.f32 %v154, %v170
  %v175 = vadd.f32 %v155, %v170
  %v176 = vadd.f32 %v156, %v170
  %v177 = vadd.f32 %v157, %v170
  %v178 = vadd.f32 %v158, %v170
  %v179 = vadd.f32 %v159, %v170
  %v180 = vadd.f32 %v160, %v170
  %v181 = vadd.f32 %v161, %v170
  %v182 = vadd.f32 %v162, %v170
  %v183 = vadd.f32 %v163, %v170
  %v184 = vadd.f32 %v164, %v170
  %v185 = vadd.f32 %v165, %v170
  %v186 = vadd.f32 %v166, %v170
  %v187 = vadd.f32 %v167, %v170
  %vm188 = vcmask 130048
  %189 = vst.msk [vmem:[%s4] sm:$0xff] %vm188, %v172
  %190 = vst.msk [vmem:[%s4 + $0x8] sm:$0xff] %vm188, %v173
  %191 = vst.msk [vmem:[%s4 + $0x10] sm:$0xff] %vm188, %v174
  %192 = vst.msk [vmem:[%s4 + $0x18] sm:$0xff] %vm188, %v175
  %193 = vst.msk [vmem:[%s4 + $0x20] sm:$0xff] %vm188, %v176
  %194 = vst.msk [vmem:[%s4 + $0x28] sm:$0xff] %vm188, %v177
  %195 = vst.msk [vmem:[%s4 + $0x30] sm:$0xff] %vm188, %v178
  %196 = vst.msk [vmem:[%s4 + $0x38] sm:$0xff] %vm188, %v179
  %197 = vst.msk [vmem:[%s4 + $0x40] sm:$0xff] %vm188, %v180
  %198 = vst.msk [vmem:[%s4 + $0x48] sm:$0xff] %vm188, %v181
  %199 = vst.msk [vmem:[%s4 + $0x50] sm:$0xff] %vm188, %v182
  %200 = vst.msk [vmem:[%s4 + $0x58] sm:$0xff] %vm188, %v183
  %201 = vst.msk [vmem:[%s4 + $0x60] sm:$0xff] %vm188, %v184
  %202 = vst.msk [vmem:[%s4 + $0x68] sm:$0xff] %vm188, %v185
  %203 = vst.msk [vmem:[%s4 + $0x70] sm:$0xff] %vm188, %v186
  %204 = vst.msk [vmem:[%s4 + $0x78] sm:$0xff] %vm188, %v187
  // Predicated region
  $region18: #{_lambda_.10} parent=0 // pred_check
    _
  $region19: #{_lambda_.10} parent=0 // pred_check_branch
    %206 = sbr.rel (0) target = $region21
  $region20: #{_lambda_.10} parent=0 // pred_region
    _
  $region21: #{_lambda_.10} parent=0 // pred_fallthru
    _
  // Predicated region
  $region22: #{_lambda_.10} parent=0 // pred_check
    _
  $region23: #{_lambda_.10} parent=0 // pred_check_branch
    %208 = sbr.rel (0) target = $region25
  $region24: #{_lambda_.10} parent=0 // pred_region
    _
  $region25: #{_lambda_.10} parent=0 // pred_fallthru
    _

</llo_original>
